<compile_context>
chip_gen: v7x
topology: tpu7x:2x2x1
jax: 0.10.0
libtpu: 0.0.40
codegen_flags: <defaults>
</compile_context>

<pallas_src>
import jax
import jax.numpy as jnp
import numpy as np
from jax.experimental import pallas as pl
from jax.experimental.pallas import tpu as pltpu


def _round_up(x, m):
    return (x + m - 1) // m * m


def _cores_per_chip():
    """TensorCores per chip (2 on v7x megacore, else 1).  Best-effort probe."""
    try:
        dev = jax.devices()[0]
        n = getattr(dev, "num_cores", None)
        if n:
            return int(n)
        if "v7" in str(getattr(dev, "device_kind", "")).lower():
            return 2
    except Exception:
        pass
    return 1


def prepare_params(params, latent_dim, *, param_dtype=jnp.bfloat16):
    """One-time weight prep (per model, NOT per forward call).

    Splits W1 into its latent / class halves (so the one_hot+concat glue is
    fused into the kernel), reshapes biases to (1, n) rows, and casts the
    weight matrices to `param_dtype` (bf16 default; float32 for exact parity
    with the PyTorch module).  Biases stay float32 (added to f32 accumulators).
    """
    w1, b1, w2, b2 = params
    hidden = w1.shape[1]
    image_dim = w2.shape[1]
    w1x = w1[:latent_dim].astype(param_dtype)            # (latent, H)
    w1c = w1[latent_dim:].astype(param_dtype)            # (n_classes, H)
    b1p = b1.reshape(1, hidden).astype(jnp.float32)      # (1, H)
    w2p = w2.astype(param_dtype)                         # (H, image_dim)
    b2p = b2.reshape(1, image_dim).astype(jnp.float32)   # (1, image_dim)
    return w1x, w1c, b1p, w2p, b2p


def generator_kernel(x_ref, lbl_ref, w1x_ref, w1c_ref, b1_ref, w2_ref, b2_ref,
                     o_ref):
    # x_ref:   (bt, latent)   f32
    # lbl_ref: (bt, 1)        int32
    # w1x_ref: (latent, H)    w1c_ref: (n_classes, H)      [param_dtype]
    # b1_ref:  (1, H) f32     w2_ref: (H, D) [param_dtype]  b2_ref: (1, D) f32
    # o_ref:   (bt, D)
    cd = w2_ref.dtype                     # MXU operand dtype = prepared weight dtype
    bt = x_ref.shape[0]
    n_classes = w1c_ref.shape[0]

    x = x_ref[...].astype(cd)
    # Fused one-hot: compare a lane-iota against the label column.
    classes = jax.lax.broadcasted_iota(jnp.int32, (bt, n_classes), 1)
    one_hot = (classes == lbl_ref[...]).astype(cd)

    # Layer 1: split-W1 matmuls (one_hot/concat fused), f32 accumulation.
    # (Kept as two MXU pushes; merging into a single K=128 push would need an
    #  in-kernel lane concat for a negligible gain at these K sizes.)
    h = (jnp.dot(x, w1x_ref[...], preferred_element_type=jnp.float32)
         + jnp.dot(one_hot, w1c_ref[...], preferred_element_type=jnp.float32)
         + b1_ref[...])
    h = jnp.maximum(h, 0.0)                               # ReLU, f32 (v5e-safe)

    # Layer 2 + Tanh (f32 elementwise).
    y = (jnp.dot(h.astype(cd), w2_ref[...], preferred_element_type=jnp.float32)
         + b2_ref[...])
    o_ref[...] = jnp.tanh(y).astype(o_ref.dtype)


def generator_forward(x, labels, prepared, *, batch_tile=512, out_dtype=None):
    """x: [B, latent_dim] f32, labels: [B] int -> [B, image_dim].

    `prepared` comes from prepare_params() (call it ONCE per model so the hot
    path is a single pallas_call).
    """
    w1x, w1c, b1p, w2p, b2p = prepared
    B, latent_dim = x.shape
    n_classes = w1c.shape[0]
    H = w1x.shape[1]
    D_out = w2p.shape[1]
    out_dtype = x.dtype if out_dtype is None else out_dtype

    # Batch tile: one big MXU-filling tile on single-core chips (v5e/v6e);
    # on v7x keep the grid a multiple of the TensorCore count.
    cores = _cores_per_chip()
    bt = min(batch_tile, _round_up(max(B, 8), 8))
    if cores > 1:
        bt = min(bt, _round_up(pl.cdiv(B, cores), 8))
    bt = _round_up(bt, 8)
    B_pad = _round_up(B, bt)
    if B_pad != B:
        x = jnp.pad(x, ((0, B_pad - B), (0, 0)))
        labels = jnp.pad(labels, (0, B_pad - B))       # padded rows -> class 0
    lbl2d = labels.astype(jnp.int32).reshape(B_pad, 1)

    grid = (B_pad // bt,)

    wbytes = jnp.dtype(w2p.dtype).itemsize
    flops = 2 * B_pad * (latent_dim * H + n_classes * H + H * D_out)
    bytes_accessed = (4 * B_pad * latent_dim + 4 * B_pad
                      + wbytes * (latent_dim * H + n_classes * H + H * D_out)
                      + 4 * (H + D_out)
                      + jnp.dtype(out_dtype).itemsize * B_pad * D_out)

    # Grid-invariant operands (constant index_map -> never re-DMA'd): single
    # buffer them so default double-buffering doesn't waste VMEM.
    def inv(shape):
        return pl.BlockSpec(shape, lambda i: (0, 0),
                            pipeline_mode=pl.Buffered(1))

    out = pl.pallas_call(
        generator_kernel,
        out_shape=jax.ShapeDtypeStruct((B_pad, D_out), out_dtype),
        grid_spec=pltpu.PrefetchScalarGridSpec(
            num_scalar_prefetch=0,
            grid=grid,
            in_specs=[
                pl.BlockSpec((bt, latent_dim), lambda i: (i, 0)),   # x tile
                pl.BlockSpec((bt, 1), lambda i: (i, 0)),            # label tile
                inv((latent_dim, H)),                               # W1_latent
                inv((n_classes, H)),                                # W1_class
                inv((1, H)),                                        # b1
                inv((H, D_out)),                                    # W2
                inv((1, D_out)),                                    # b2
            ],
            out_specs=pl.BlockSpec((bt, D_out), lambda i: (i, 0)),
        ),
        compiler_params=pltpu.CompilerParams(
            dimension_semantics=("parallel",)),
        cost_estimate=pl.CostEstimate(
            flops=flops,
            transcendentals=B_pad * D_out,
            bytes_accessed=bytes_accessed),
    )(x, lbl2d, w1x, w1c, b1p, w2p, b2p)

    # Output already has the real image_dim; only slice if the batch was padded.
    return out if B_pad == B else out[:B]


def init_linear(key, fan_in, fan_out):
    # PyTorch nn.Linear default init: U(-1/sqrt(fan_in), 1/sqrt(fan_in))
    kw, kb = jax.random.split(key)
    bound = 1.0 / np.sqrt(fan_in)
    w = jax.random.uniform(kw, (fan_in, fan_out), jnp.float32, -bound, bound)
    b = jax.random.uniform(kb, (fan_out,), jnp.float32, -bound, bound)
    return w, b


if __name__ == "__main__":
    latent_dim = 64
    n_classes = 10
    image_dim = 784          # not a multiple of 128 -> exercises the tail store
    hidden_size = 256        # nn.Linear default in the module
    batch = 512

    key = jax.random.PRNGKey(0)
    kx, kl, k1, k2 = jax.random.split(key, 4)

    x = jax.random.normal(kx, (batch, latent_dim), dtype=jnp.float32)
    labels = jax.random.randint(kl, (batch,), 0, n_classes, dtype=jnp.int32)

    w1, b1 = init_linear(k1, latent_dim + n_classes, hidden_size)
    w2, b2 = init_linear(k2, hidden_size, image_dim)
    params = (w1, b1, w2, b2)

    # Float64 NumPy reference (same semantics as the PyTorch module),
    # independent of XLA matmul precision defaults.
    one_hot = np.eye(n_classes, dtype=np.float64)[np.asarray(labels)]
    xin = np.concatenate([np.asarray(x, np.float64), one_hot], axis=1)
    h = np.maximum(xin @ np.asarray(w1, np.float64) + np.asarray(b1, np.float64), 0.0)
    ref = np.tanh(h @ np.asarray(w2, np.float64) + np.asarray(b2, np.float64))

    # f32 parity path: exact semantics of the PyTorch module, tight tolerance.
    prep_f32 = prepare_params(params, latent_dim, param_dtype=jnp.float32)
    out_f32 = jax.block_until_ready(generator_forward(x, labels, prep_f32))
    np.testing.assert_allclose(np.asarray(out_f32), ref, rtol=1e-4, atol=1e-4)

    # Default fast path: bf16 MXU operands, f32 accumulation (documented ~1e-2).
    prep_bf16 = prepare_params(params, latent_dim)     # bf16 weights
    out_bf16 = jax.block_until_ready(generator_forward(x, labels, prep_bf16))
    np.testing.assert_allclose(np.asarray(out_bf16), ref, rtol=0, atol=3e-2)

    assert out_f32.shape == (batch, image_dim)
    assert out_bf16.shape == (batch, image_dim)
    print("KERNEL_OK")
</pallas_src>

<mosaic_0001>
module attributes {stable_mosaic.version = 11 : i64} {
  func.func @generator_kernel(%arg0: i32, %arg1: memref<512x64xf32, #tpu.memory_space<vmem>>, %arg2: memref<512x1xi32, #tpu.memory_space<vmem>>, %arg3: memref<64x256xf32, #tpu.memory_space<vmem>>, %arg4: memref<10x256xf32, #tpu.memory_space<vmem>>, %arg5: memref<1x256xf32, #tpu.memory_space<vmem>>, %arg6: memref<256x784xf32, #tpu.memory_space<vmem>>, %arg7: memref<1x784xf32, #tpu.memory_space<vmem>>, %arg8: memref<512x784xf32, #tpu.memory_space<vmem>>) attributes {dimension_semantics = [#tpu.dimension_semantics<parallel>], iteration_bounds = array<i64: 1>, scalar_prefetch = 0 : i64, scratch_operands = 0 : i64, tpu.core_type = #tpu.core_type<tc>, window_params = [{transform_indices = @transform_0, window_bounds = array<i64: 512, 64>}, {transform_indices = @transform_1, window_bounds = array<i64: 512, 1>}, {pipeline_mode = #tpu.pipeline_mode<synchronous>, transform_indices = @transform_2, window_bounds = array<i64: 64, 256>}, {pipeline_mode = #tpu.pipeline_mode<synchronous>, transform_indices = @transform_3, window_bounds = array<i64: 10, 256>}, {pipeline_mode = #tpu.pipeline_mode<synchronous>, transform_indices = @transform_4, window_bounds = array<i64: 1, 256>}, {pipeline_mode = #tpu.pipeline_mode<synchronous>, transform_indices = @transform_5, window_bounds = array<i64: 256, 784>}, {pipeline_mode = #tpu.pipeline_mode<synchronous>, transform_indices = @transform_6, window_bounds = array<i64: 1, 784>}, {transform_indices = @transform_7, window_bounds = array<i64: 512, 784>}]} {
    %c0 = arith.constant 0 : index
    %c0_0 = arith.constant 0 : index
    %0 = vector.load %arg1[%c0, %c0_0] : memref<512x64xf32, #tpu.memory_space<vmem>>, vector<512x64xf32>
    %1 = tpu.iota {dimensions = array<i32: 1>} : vector<512x10xi32>
    %c0_1 = arith.constant 0 : index
    %c0_2 = arith.constant 0 : index
    %2 = vector.load %arg2[%c0_1, %c0_2] : memref<512x1xi32, #tpu.memory_space<vmem>>, vector<512x1xi32>
    %3 = vector.broadcast %2 : vector<512x1xi32> to vector<512x10xi32>
    %4 = arith.cmpi eq, %1, %3 : vector<512x10xi32>
    %5 = arith.extui %4 : vector<512x10xi1> to vector<512x10xi32>
    %6 = arith.sitofp %5 : vector<512x10xi32> to vector<512x10xf32>
    %c0_3 = arith.constant 0 : index
    %c0_4 = arith.constant 0 : index
    %7 = vector.load %arg3[%c0_3, %c0_4] : memref<64x256xf32, #tpu.memory_space<vmem>>, vector<64x256xf32>
    %cst = arith.constant dense<0.000000e+00> : vector<512x256xf32>
    %8 = tpu.matmul %0, %7, %cst {dimension_numbers = #tpu.dot_dimension_numbers<[1], [0], [0], [1], [0, 0, 1, 1], [], []>} : vector<512x64xf32>, vector<64x256xf32>, vector<512x256xf32> -> vector<512x256xf32>
    %c0_5 = arith.constant 0 : index
    %c0_6 = arith.constant 0 : index
    %9 = vector.load %arg4[%c0_5, %c0_6] : memref<10x256xf32, #tpu.memory_space<vmem>>, vector<10x256xf32>
    %cst_7 = arith.constant dense<0.000000e+00> : vector<512x256xf32>
    %10 = tpu.matmul %6, %9, %cst_7 {dimension_numbers = #tpu.dot_dimension_numbers<[1], [0], [0], [1], [0, 0, 1, 1], [], []>} : vector<512x10xf32>, vector<10x256xf32>, vector<512x256xf32> -> vector<512x256xf32>
    %11 = arith.addf %8, %10 : vector<512x256xf32>
    %c0_8 = arith.constant 0 : index
    %c0_9 = arith.constant 0 : index
    %12 = vector.load %arg5[%c0_8, %c0_9] : memref<1x256xf32, #tpu.memory_space<vmem>>, vector<1x256xf32>
    %13 = vector.broadcast %12 : vector<1x256xf32> to vector<512x256xf32>
    %14 = arith.addf %11, %13 : vector<512x256xf32>
    %cst_10 = arith.constant 0.000000e+00 : f32
    %15 = vector.broadcast %cst_10 : f32 to vector<512x256xf32>
    %16 = arith.maximumf %14, %15 : vector<512x256xf32>
    %c0_11 = arith.constant 0 : index
    %c0_12 = arith.constant 0 : index
    %17 = vector.load %arg6[%c0_11, %c0_12] : memref<256x784xf32, #tpu.memory_space<vmem>>, vector<256x784xf32>
    %cst_13 = arith.constant dense<0.000000e+00> : vector<512x784xf32>
    %18 = tpu.matmul %16, %17, %cst_13 {dimension_numbers = #tpu.dot_dimension_numbers<[1], [0], [0], [1], [0, 0, 1, 1], [], []>} : vector<512x256xf32>, vector<256x784xf32>, vector<512x784xf32> -> vector<512x784xf32>
    %c0_14 = arith.constant 0 : index
    %c0_15 = arith.constant 0 : index
    %19 = vector.load %arg7[%c0_14, %c0_15] : memref<1x784xf32, #tpu.memory_space<vmem>>, vector<1x784xf32>
    %20 = vector.broadcast %19 : vector<1x784xf32> to vector<512x784xf32>
    %21 = arith.addf %18, %20 : vector<512x784xf32>
    %22 = math.tanh %21 : vector<512x784xf32>
    %c0_16 = arith.constant 0 : index
    %c0_17 = arith.constant 0 : index
    %23 = vector.load %arg8[%c0_16, %c0_17] : memref<512x784xf32, #tpu.memory_space<vmem>>, vector<512x784xf32>
    tpu.vector_store %arg8[%c0_16, %c0_17], %22 {strides = array<i32>} : memref<512x784xf32, #tpu.memory_space<vmem>>, vector<512x784xf32>,
    return
  }
  func.func @transform_0(%arg0: i32) -> (i32, i32) {
    %c0_i32 = arith.constant 0 : i32
    %c0_i32_0 = arith.constant 0 : i32
    return %arg0, %c0_i32 : i32, i32
  }
  func.func @transform_1(%arg0: i32) -> (i32, i32) {
    %c0_i32 = arith.constant 0 : i32
    %c0_i32_0 = arith.constant 0 : i32
    return %arg0, %c0_i32 : i32, i32
  }
  func.func @transform_2(%arg0: i32) -> (i32, i32) {
    %c0_i32 = arith.constant 0 : i32
    %c0_i32_0 = arith.constant 0 : i32
    %c0_i32_1 = arith.constant 0 : i32
    return %c0_i32, %c0_i32_0 : i32, i32
  }
  func.func @transform_3(%arg0: i32) -> (i32, i32) {
    %c0_i32 = arith.constant 0 : i32
    %c0_i32_0 = arith.constant 0 : i32
    %c0_i32_1 = arith.constant 0 : i32
    return %c0_i32, %c0_i32_0 : i32, i32
  }
  func.func @transform_4(%arg0: i32) -> (i32, i32) {
    %c0_i32 = arith.constant 0 : i32
    %c0_i32_0 = arith.constant 0 : i32
    %c0_i32_1 = arith.constant 0 : i32
    return %c0_i32, %c0_i32_0 : i32, i32
  }
  func.func @transform_5(%arg0: i32) -> (i32, i32) {
    %c0_i32 = arith.constant 0 : i32
    %c0_i32_0 = arith.constant 0 : i32
    %c0_i32_1 = arith.constant 0 : i32
    return %c0_i32, %c0_i32_0 : i32, i32
  }
  func.func @transform_6(%arg0: i32) -> (i32, i32) {
    %c0_i32 = arith.constant 0 : i32
    %c0_i32_0 = arith.constant 0 : i32
    %c0_i32_1 = arith.constant 0 : i32
    return %c0_i32, %c0_i32_0 : i32, i32
  }
  func.func @transform_7(%arg0: i32) -> (i32, i32) {
    %c0_i32 = arith.constant 0 : i32
    %c0_i32_0 = arith.constant 0 : i32
    return %arg0, %c0_i32 : i32, i32
  }
}

</mosaic_0001>

<llo_original>
// kernel: tpu_custom_call.1
$region0: #{tpu_custom_call.1}
  #allocation0 [shape = 'u32[]', space=smem, size = 0x4, offset = 0x4, fixed_abs, tag = 'smem constant byte address 0x4 - core index']
  #allocation1 [shape = 'u32[144,128]{1,0:T(1,128)}', space=vmem, size = 0x12000, scoped, tag = 'internal scratch']
  %s0 = inlined_call_operand.vmem [shape: f32[512,64], index: 0, kind: input, shape index: {}]
  %s1 = inlined_call_operand.vmem [shape: s32[512,1], index: 1, kind: input, shape index: {}]
  %s2 = inlined_call_operand.vmem [shape: f32[64,256], index: 2, kind: input, shape index: {}]
  %s3 = inlined_call_operand.vmem [shape: f32[10,256], index: 3, kind: input, shape index: {}]
  %s4 = inlined_call_operand.vmem [shape: f32[1,256], index: 4, kind: input, shape index: {}]
  %s5 = inlined_call_operand.vmem [shape: f32[256,784], index: 5, kind: input, shape index: {}]
  %s6 = inlined_call_operand.vmem [shape: f32[1,784], index: 6, kind: input, shape index: {}]
  %s7 = inlined_call_operand.vmem [shape: f32[512,784], index: 7, kind: output, shape index: {}]
  %s8 = sld [smem:[#allocation0]]
  $region38: #{tpu_custom_call.1} parent=0
    _
  %s10 = ssub.s32 1, %s8
  %s11 = scalar_select 0, %s10, %s8
  // Predicated region
  $region2: #{tpu_custom_call.1} parent=0 // pred_check
    _
  $region3: #{tpu_custom_call.1} parent=0 // pred_check_branch
    %13 = sbr.rel (0) target = $region5
  $region4: #{tpu_custom_call.1} parent=0 // pred_region
    _
  $region5: #{tpu_custom_call.1} parent=0 // pred_fallthru
    _
  // Predicated region
  $region6: #{tpu_custom_call.1} parent=0 // pred_check
    _
  $region7: #{tpu_custom_call.1} parent=0 // pred_check_branch
    %15 = sbr.rel (0) target = $region9
  $region8: #{tpu_custom_call.1} parent=0 // pred_region
    _
  $region9: #{tpu_custom_call.1} parent=0 // pred_fallthru
    _
  // Predicated region
  $region10: #{tpu_custom_call.1} parent=0 // pred_check
    _
  $region11: #{tpu_custom_call.1} parent=0 // pred_check_branch
    %17 = sbr.rel (0) target = $region13
  $region12: #{tpu_custom_call.1} parent=0 // pred_region
    _
  $region13: #{tpu_custom_call.1} parent=0 // pred_fallthru
    _
  // Predicated region
  $region14: #{tpu_custom_call.1} parent=0 // pred_check
    _
  $region15: #{tpu_custom_call.1} parent=0 // pred_check_branch
    %19 = sbr.rel (0) target = $region17
  $region16: #{tpu_custom_call.1} parent=0 // pred_region
    _
  $region17: #{tpu_custom_call.1} parent=0 // pred_fallthru
    _
  // Predicated region
  $region18: #{tpu_custom_call.1} parent=0 // pred_check
    _
  $region19: #{tpu_custom_call.1} parent=0 // pred_check_branch
    %21 = sbr.rel (0) target = $region21
  $region20: #{tpu_custom_call.1} parent=0 // pred_region
    _
  $region21: #{tpu_custom_call.1} parent=0 // pred_fallthru
    _
  // Predicated region
  $region22: #{tpu_custom_call.1} parent=0 // pred_check
    _
  $region23: #{tpu_custom_call.1} parent=0 // pred_check_branch
    %23 = sbr.rel (0) target = $region25
  $region24: #{tpu_custom_call.1} parent=0 // pred_region
    _
  $region25: #{tpu_custom_call.1} parent=0 // pred_fallthru
    _
  // Predicated region
  $region26: #{tpu_custom_call.1} parent=0 // pred_check
    _
  $region27: #{tpu_custom_call.1} parent=0 // pred_check_branch
    %25 = sbr.rel (0) target = $region29
  $region28: #{tpu_custom_call.1} parent=0 // pred_region
    _
  $region29: #{tpu_custom_call.1} parent=0 // pred_fallthru
    _
  %v26 = vld [vmem:[%s0] sm:$0xff]
  %v27 = vld [vmem:[%s0 + $0x8] sm:$0xff]
  %v28 = vld [vmem:[%s0 + $0x10] sm:$0xff]
  %v29 = vld [vmem:[%s0 + $0x18] sm:$0xff]
  %v30 = vld [vmem:[%s0 + $0x20] sm:$0xff]
  %v31 = vld [vmem:[%s0 + $0x28] sm:$0xff]
  %v32 = vld [vmem:[%s0 + $0x30] sm:$0xff]
  %v33 = vld [vmem:[%s0 + $0x38] sm:$0xff]
  %v34 = vld [vmem:[%s0 + $0x40] sm:$0xff]
  %v35 = vld [vmem:[%s0 + $0x48] sm:$0xff]
  %v36 = vld [vmem:[%s0 + $0x50] sm:$0xff]
  %v37 = vld [vmem:[%s0 + $0x58] sm:$0xff]
  %v38 = vld [vmem:[%s0 + $0x60] sm:$0xff]
  %v39 = vld [vmem:[%s0 + $0x68] sm:$0xff]
  %v40 = vld [vmem:[%s0 + $0x70] sm:$0xff]
  %v41 = vld [vmem:[%s0 + $0x78] sm:$0xff]
  %v42 = vld [vmem:[%s0 + $0x80] sm:$0xff]
  %v43 = vld [vmem:[%s0 + $0x88] sm:$0xff]
  %v44 = vld [vmem:[%s0 + $0x90] sm:$0xff]
  %v45 = vld [vmem:[%s0 + $0x98] sm:$0xff]
  %v46 = vld [vmem:[%s0 + $0xa0] sm:$0xff]
  %v47 = vld [vmem:[%s0 + $0xa8] sm:$0xff]
  %v48 = vld [vmem:[%s0 + $0xb0] sm:$0xff]
  %v49 = vld [vmem:[%s0 + $0xb8] sm:$0xff]
  %v50 = vld [vmem:[%s0 + $0xc0] sm:$0xff]
  %v51 = vld [vmem:[%s0 + $0xc8] sm:$0xff]
  %v52 = vld [vmem:[%s0 + $0xd0] sm:$0xff]
  %v53 = vld [vmem:[%s0 + $0xd8] sm:$0xff]
  %v54 = vld [vmem:[%s0 + $0xe0] sm:$0xff]
  %v55 = vld [vmem:[%s0 + $0xe8] sm:$0xff]
  %v56 = vld [vmem:[%s0 + $0xf0] sm:$0xff]
  %v57 = vld [vmem:[%s0 + $0xf8] sm:$0xff]
  %v58 = vld [vmem:[%s0 + $0x100] sm:$0xff]
  %v59 = vld [vmem:[%s0 + $0x108] sm:$0xff]
  %v60 = vld [vmem:[%s0 + $0x110] sm:$0xff]
  %v61 = vld [vmem:[%s0 + $0x118] sm:$0xff]
  %v62 = vld [vmem:[%s0 + $0x120] sm:$0xff]
  %v63 = vld [vmem:[%s0 + $0x128] sm:$0xff]
  %v64 = vld [vmem:[%s0 + $0x130] sm:$0xff]
  %v65 = vld [vmem:[%s0 + $0x138] sm:$0xff]
  %v66 = vld [vmem:[%s0 + $0x140] sm:$0xff]
  %v67 = vld [vmem:[%s0 + $0x148] sm:$0xff]
  %v68 = vld [vmem:[%s0 + $0x150] sm:$0xff]
  %v69 = vld [vmem:[%s0 + $0x158] sm:$0xff]
  %v70 = vld [vmem:[%s0 + $0x160] sm:$0xff]
  %v71 = vld [vmem:[%s0 + $0x168] sm:$0xff]
  %v72 = vld [vmem:[%s0 + $0x170] sm:$0xff]
  %v73 = vld [vmem:[%s0 + $0x178] sm:$0xff]
  %v74 = vld [vmem:[%s0 + $0x180] sm:$0xff]
  %v75 = vld [vmem:[%s0 + $0x188] sm:$0xff]
  %v76 = vld [vmem:[%s0 + $0x190] sm:$0xff]
  %v77 = vld [vmem:[%s0 + $0x198] sm:$0xff]
  %v78 = vld [vmem:[%s0 + $0x1a0] sm:$0xff]
  %v79 = vld [vmem:[%s0 + $0x1a8] sm:$0xff]
  %v80 = vld [vmem:[%s0 + $0x1b0] sm:$0xff]
  %v81 = vld [vmem:[%s0 + $0x1b8] sm:$0xff]
  %v82 = vld [vmem:[%s0 + $0x1c0] sm:$0xff]
  %v83 = vld [vmem:[%s0 + $0x1c8] sm:$0xff]
  %v84 = vld [vmem:[%s0 + $0x1d0] sm:$0xff]
  %v85 = vld [vmem:[%s0 + $0x1d8] sm:$0xff]
  %v86 = vld [vmem:[%s0 + $0x1e0] sm:$0xff]
  %v87 = vld [vmem:[%s0 + $0x1e8] sm:$0xff]
  %v88 = vld [vmem:[%s0 + $0x1f0] sm:$0xff]
  %v89 = vld [vmem:[%s0 + $0x1f8] sm:$0xff]
  %v90 = vlaneseq
  %v91 = vand.u32 %v90, 127
  %v92 = vld [vmem:[%s1] sm:$0xff]
  %v93 = vld [vmem:[%s1 + $0x8] sm:$0xff]
  %v94 = vld [vmem:[%s1 + $0x10] sm:$0xff]
  %v95 = vld [vmem:[%s1 + $0x18] sm:$0xff]
  %v96 = vld [vmem:[%s1 + $0x20] sm:$0xff]
  %v97 = vld [vmem:[%s1 + $0x28] sm:$0xff]
  %v98 = vld [vmem:[%s1 + $0x30] sm:$0xff]
  %v99 = vld [vmem:[%s1 + $0x38] sm:$0xff]
  %v100 = vld [vmem:[%s1 + $0x40] sm:$0xff]
  %v101 = vld [vmem:[%s1 + $0x48] sm:$0xff]
  %v102 = vld [vmem:[%s1 + $0x50] sm:$0xff]
  %v103 = vld [vmem:[%s1 + $0x58] sm:$0xff]
  %v104 = vld [vmem:[%s1 + $0x60] sm:$0xff]
  %v105 = vld [vmem:[%s1 + $0x68] sm:$0xff]
  %v106 = vld [vmem:[%s1 + $0x70] sm:$0xff]
  %v107 = vld [vmem:[%s1 + $0x78] sm:$0xff]
  %v108 = vld [vmem:[%s1 + $0x80] sm:$0xff]
  %v109 = vld [vmem:[%s1 + $0x88] sm:$0xff]
  %v110 = vld [vmem:[%s1 + $0x90] sm:$0xff]
  %v111 = vld [vmem:[%s1 + $0x98] sm:$0xff]
  %v112 = vld [vmem:[%s1 + $0xa0] sm:$0xff]
  %v113 = vld [vmem:[%s1 + $0xa8] sm:$0xff]
  %v114 = vld [vmem:[%s1 + $0xb0] sm:$0xff]
  %v115 = vld [vmem:[%s1 + $0xb8] sm:$0xff]
  %v116 = vld [vmem:[%s1 + $0xc0] sm:$0xff]
  %v117 = vld [vmem:[%s1 + $0xc8] sm:$0xff]
  %v118 = vld [vmem:[%s1 + $0xd0] sm:$0xff]
  %v119 = vld [vmem:[%s1 + $0xd8] sm:$0xff]
  %v120 = vld [vmem:[%s1 + $0xe0] sm:$0xff]
  %v121 = vld [vmem:[%s1 + $0xe8] sm:$0xff]
  %v122 = vld [vmem:[%s1 + $0xf0] sm:$0xff]
  %v123 = vld [vmem:[%s1 + $0xf8] sm:$0xff]
  %v124 = vld [vmem:[%s1 + $0x100] sm:$0xff]
  %v125 = vld [vmem:[%s1 + $0x108] sm:$0xff]
  %v126 = vld [vmem:[%s1 + $0x110] sm:$0xff]
  %v127 = vld [vmem:[%s1 + $0x118] sm:$0xff]
  %v128 = vld [vmem:[%s1 + $0x120] sm:$0xff]
  %v129 = vld [vmem:[%s1 + $0x128] sm:$0xff]
  %v130 = vld [vmem:[%s1 + $0x130] sm:$0xff]
  %v131 = vld [vmem:[%s1 + $0x138] sm:$0xff]
  %v132 = vld [vmem:[%s1 + $0x140] sm:$0xff]
  %v133 = vld [vmem:[%s1 + $0x148] sm:$0xff]
  %v134 = vld [vmem:[%s1 + $0x150] sm:$0xff]
  %v135 = vld [vmem:[%s1 + $0x158] sm:$0xff]
  %v136 = vld [vmem:[%s1 + $0x160] sm:$0xff]
  %v137 = vld [vmem:[%s1 + $0x168] sm:$0xff]
  %v138 = vld [vmem:[%s1 + $0x170] sm:$0xff]
  %v139 = vld [vmem:[%s1 + $0x178] sm:$0xff]
  %v140 = vld [vmem:[%s1 + $0x180] sm:$0xff]
  %v141 = vld [vmem:[%s1 + $0x188] sm:$0xff]
  %v142 = vld [vmem:[%s1 + $0x190] sm:$0xff]
  %v143 = vld [vmem:[%s1 + $0x198] sm:$0xff]
  %v144 = vld [vmem:[%s1 + $0x1a0] sm:$0xff]
  %v145 = vld [vmem:[%s1 + $0x1a8] sm:$0xff]
  %v146 = vld [vmem:[%s1 + $0x1b0] sm:$0xff]
  %v147 = vld [vmem:[%s1 + $0x1b8] sm:$0xff]
  %v148 = vld [vmem:[%s1 + $0x1c0] sm:$0xff]
  %v149 = vld [vmem:[%s1 + $0x1c8] sm:$0xff]
  %v150 = vld [vmem:[%s1 + $0x1d0] sm:$0xff]
  %v151 = vld [vmem:[%s1 + $0x1d8] sm:$0xff]
  %v152 = vld [vmem:[%s1 + $0x1e0] sm:$0xff]
  %v153 = vld [vmem:[%s1 + $0x1e8] sm:$0xff]
  %v154 = vld [vmem:[%s1 + $0x1f0] sm:$0xff]
  %v155 = vld [vmem:[%s1 + $0x1f8] sm:$0xff]
  %156 = vset.pattern.permute.xlu0 0
  %157 = vperm.xlu0 %156, %v92
  %v158 = vpop.permute.xlu0 %157
  %159 = vset.pattern.permute.xlu0 0
  %160 = vperm.xlu0 %159, %v93
  %v161 = vpop.permute.xlu0 %160
  %162 = vset.pattern.permute.xlu0 0
  %163 = vperm.xlu0 %162, %v94
  %v164 = vpop.permute.xlu0 %163
  %165 = vset.pattern.permute.xlu0 0
  %166 = vperm.xlu0 %165, %v95
  %v167 = vpop.permute.xlu0 %166
  %168 = vset.pattern.permute.xlu0 0
  %169 = vperm.xlu0 %168, %v96
  %v170 = vpop.permute.xlu0 %169
  %171 = vset.pattern.permute.xlu0 0
  %172 = vperm.xlu0 %171, %v97
  %v173 = vpop.permute.xlu0 %172
  %174 = vset.pattern.permute.xlu0 0
  %175 = vperm.xlu0 %174, %v98
  %v176 = vpop.permute.xlu0 %175
  %177 = vset.pattern.permute.xlu0 0
  %178 = vperm.xlu0 %177, %v99
  %v179 = vpop.permute.xlu0 %178
  %180 = vset.pattern.permute.xlu0 0
  %181 = vperm.xlu0 %180, %v100
  %v182 = vpop.permute.xlu0 %181
  %183 = vset.pattern.permute.xlu0 0
  %184 = vperm.xlu0 %183, %v101
  %v185 = vpop.permute.xlu0 %184
  %186 = vset.pattern.permute.xlu0 0
  %187 = vperm.xlu0 %186, %v102
  %v188 = vpop.permute.xlu0 %187
  %189 = vset.pattern.permute.xlu0 0
  %190 = vperm.xlu0 %189, %v103
  %v191 = vpop.permute.xlu0 %190
  %192 = vset.pattern.permute.xlu0 0
  %193 = vperm.xlu0 %192, %v104
  %v194 = vpop.permute.xlu0 %193
  %195 = vset.pattern.permute.xlu0 0
  %196 = vperm.xlu0 %195, %v105
  %v197 = vpop.permute.xlu0 %196
  %198 = vset.pattern.permute.xlu0 0
  %199 = vperm.xlu0 %198, %v106
  %v200 = vpop.permute.xlu0 %199
  %201 = vset.pattern.permute.xlu0 0
  %202 = vperm.xlu0 %201, %v107
  %v203 = vpop.permute.xlu0 %202
  %204 = vset.pattern.permute.xlu0 0
  %205 = vperm.xlu0 %204, %v108
  %v206 = vpop.permute.xlu0 %205
  %207 = vset.pattern.permute.xlu0 0
  %208 = vperm.xlu0 %207, %v109
  %v209 = vpop.permute.xlu0 %208
  %210 = vset.pattern.permute.xlu0 0
  %211 = vperm.xlu0 %210, %v110
  %v212 = vpop.permute.xlu0 %211
  %213 = vset.pattern.permute.xlu0 0
  %214 = vperm.xlu0 %213, %v111
  %v215 = vpop.permute.xlu0 %214
  %216 = vset.pattern.permute.xlu0 0
  %217 = vperm.xlu0 %216, %v112
  %v218 = vpop.permute.xlu0 %217
  %219 = vset.pattern.permute.xlu0 0
  %220 = vperm.xlu0 %219, %v113
  %v221 = vpop.permute.xlu0 %220
  %222 = vset.pattern.permute.xlu0 0
  %223 = vperm.xlu0 %222, %v114
  %v224 = vpop.permute.xlu0 %223
  %225 = vset.pattern.permute.xlu0 0
  %226 = vperm.xlu0 %225, %v115
  %v227 = vpop.permute.xlu0 %226
  %228 = vset.pattern.permute.xlu0 0
  %229 = vperm.xlu0 %228, %v116
  %v230 = vpop.permute.xlu0 %229
  %231 = vset.pattern.permute.xlu0 0
  %232 = vperm.xlu0 %231, %v117
  %v233 = vpop.permute.xlu0 %232
  %234 = vset.pattern.permute.xlu0 0
  %235 = vperm.xlu0 %234, %v118
  %v236 = vpop.permute.xlu0 %235
  %237 = vset.pattern.permute.xlu0 0
  %238 = vperm.xlu0 %237, %v119
  %v239 = vpop.permute.xlu0 %238
  %240 = vset.pattern.permute.xlu0 0
  %241 = vperm.xlu0 %240, %v120
  %v242 = vpop.permute.xlu0 %241
  %243 = vset.pattern.permute.xlu0 0
  %244 = vperm.xlu0 %243, %v121
  %v245 = vpop.permute.xlu0 %244
  %246 = vset.pattern.permute.xlu0 0
  %247 = vperm.xlu0 %246, %v122
  %v248 = vpop.permute.xlu0 %247
  %249 = vset.pattern.permute.xlu0 0
  %250 = vperm.xlu0 %249, %v123
  %v251 = vpop.permute.xlu0 %250
  %252 = vset.pattern.permute.xlu0 0
  %253 = vperm.xlu0 %252, %v124
  %v254 = vpop.permute.xlu0 %253
  %255 = vset.pattern.permute.xlu0 0
  %256 = vperm.xlu0 %255, %v125
  %v257 = vpop.permute.xlu0 %256
  %258 = vset.pattern.permute.xlu0 0
  %259 = vperm.xlu0 %258, %v126
  %v260 = vpop.permute.xlu0 %259
  %261 = vset.pattern.permute.xlu0 0
  %262 = vperm.xlu0 %261, %v127
  %v263 = vpop.permute.xlu0 %262
  %264 = vset.pattern.permute.xlu0 0
  %265 = vperm.xlu0 %264, %v128
  %v266 = vpop.permute.xlu0 %265
  %267 = vset.pattern.permute.xlu0 0
  %268 = vperm.xlu0 %267, %v129
  %v269 = vpop.permute.xlu0 %268
  %270 = vset.pattern.permute.xlu0 0
  %271 = vperm.xlu0 %270, %v130
  %v272 = vpop.permute.xlu0 %271
  %273 = vset.pattern.permute.xlu0 0
  %274 = vperm.xlu0 %273, %v131
  %v275 = vpop.permute.xlu0 %274
  %276 = vset.pattern.permute.xlu0 0
  %277 = vperm.xlu0 %276, %v132
  %v278 = vpop.permute.xlu0 %277
  %279 = vset.pattern.permute.xlu0 0
  %280 = vperm.xlu0 %279, %v133
  %v281 = vpop.permute.xlu0 %280
  %282 = vset.pattern.permute.xlu0 0
  %283 = vperm.xlu0 %282, %v134
  %v284 = vpop.permute.xlu0 %283
  %285 = vset.pattern.permute.xlu0 0
  %286 = vperm.xlu0 %285, %v135
  %v287 = vpop.permute.xlu0 %286
  %288 = vset.pattern.permute.xlu0 0
  %289 = vperm.xlu0 %288, %v136
  %v290 = vpop.permute.xlu0 %289
  %291 = vset.pattern.permute.xlu0 0
  %292 = vperm.xlu0 %291, %v137
  %v293 = vpop.permute.xlu0 %292
  %294 = vset.pattern.permute.xlu0 0
  %295 = vperm.xlu0 %294, %v138
  %v296 = vpop.permute.xlu0 %295
  %297 = vset.pattern.permute.xlu0 0
  %298 = vperm.xlu0 %297, %v139
  %v299 = vpop.permute.xlu0 %298
  %300 = vset.pattern.permute.xlu0 0
  %301 = vperm.xlu0 %300, %v140
  %v302 = vpop.permute.xlu0 %301
  %303 = vset.pattern.permute.xlu0 0
  %304 = vperm.xlu0 %303, %v141
  %v305 = vpop.permute.xlu0 %304
  %306 = vset.pattern.permute.xlu0 0
  %307 = vperm.xlu0 %306, %v142
  %v308 = vpop.permute.xlu0 %307
  %309 = vset.pattern.permute.xlu0 0
  %310 = vperm.xlu0 %309, %v143
  %v311 = vpop.permute.xlu0 %310
  %312 = vset.pattern.permute.xlu0 0
  %313 = vperm.xlu0 %312, %v144
  %v314 = vpop.permute.xlu0 %313
  %315 = vset.pattern.permute.xlu0 0
  %316 = vperm.xlu0 %315, %v145
  %v317 = vpop.permute.xlu0 %316
  %318 = vset.pattern.permute.xlu0 0
  %319 = vperm.xlu0 %318, %v146
  %v320 = vpop.permute.xlu0 %319
  %321 = vset.pattern.permute.xlu0 0
  %322 = vperm.xlu0 %321, %v147
  %v323 = vpop.permute.xlu0 %322
  %324 = vset.pattern.permute.xlu0 0
  %325 = vperm.xlu0 %324, %v148
  %v326 = vpop.permute.xlu0 %325
  %327 = vset.pattern.permute.xlu0 0
  %328 = vperm.xlu0 %327, %v149
  %v329 = vpop.permute.xlu0 %328
  %330 = vset.pattern.permute.xlu0 0
  %331 = vperm.xlu0 %330, %v150
  %v332 = vpop.permute.xlu0 %331
  %333 = vset.pattern.permute.xlu0 0
  %334 = vperm.xlu0 %333, %v151
  %v335 = vpop.permute.xlu0 %334
  %336 = vset.pattern.permute.xlu0 0
  %337 = vperm.xlu0 %336, %v152
  %v338 = vpop.permute.xlu0 %337
  %339 = vset.pattern.permute.xlu0 0
  %340 = vperm.xlu0 %339, %v153
  %v341 = vpop.permute.xlu0 %340
  %342 = vset.pattern.permute.xlu0 0
  %343 = vperm.xlu0 %342, %v154
  %v344 = vpop.permute.xlu0 %343
  %345 = vset.pattern.permute.xlu0 0
  %346 = vperm.xlu0 %345, %v155
  %v347 = vpop.permute.xlu0 %346
  %vm348 = vcmp.eq.s32.totalorder %v91, %v158
  %vm349 = vcmp.eq.s32.totalorder %v91, %v161
  %vm350 = vcmp.eq.s32.totalorder %v91, %v164
  %vm351 = vcmp.eq.s32.totalorder %v91, %v167
  %vm352 = vcmp.eq.s32.totalorder %v91, %v170
  %vm353 = vcmp.eq.s32.totalorder %v91, %v173
  %vm354 = vcmp.eq.s32.totalorder %v91, %v176
  %vm355 = vcmp.eq.s32.totalorder %v91, %v179
  %vm356 = vcmp.eq.s32.totalorder %v91, %v182
  %vm357 = vcmp.eq.s32.totalorder %v91, %v185
  %vm358 = vcmp.eq.s32.totalorder %v91, %v188
  %vm359 = vcmp.eq.s32.totalorder %v91, %v191
  %vm360 = vcmp.eq.s32.totalorder %v91, %v194
  %vm361 = vcmp.eq.s32.totalorder %v91, %v197
  %vm362 = vcmp.eq.s32.totalorder %v91, %v200
  %vm363 = vcmp.eq.s32.totalorder %v91, %v203
  %vm364 = vcmp.eq.s32.totalorder %v91, %v206
  %vm365 = vcmp.eq.s32.totalorder %v91, %v209
  %vm366 = vcmp.eq.s32.totalorder %v91, %v212
  %vm367 = vcmp.eq.s32.totalorder %v91, %v215
  %vm368 = vcmp.eq.s32.totalorder %v91, %v218
  %vm369 = vcmp.eq.s32.totalorder %v91, %v221
  %vm370 = vcmp.eq.s32.totalorder %v91, %v224
  %vm371 = vcmp.eq.s32.totalorder %v91, %v227
  %vm372 = vcmp.eq.s32.totalorder %v91, %v230
  %vm373 = vcmp.eq.s32.totalorder %v91, %v233
  %vm374 = vcmp.eq.s32.totalorder %v91, %v236
  %vm375 = vcmp.eq.s32.totalorder %v91, %v239
  %vm376 = vcmp.eq.s32.totalorder %v91, %v242
  %vm377 = vcmp.eq.s32.totalorder %v91, %v245
  %vm378 = vcmp.eq.s32.totalorder %v91, %v248
  %vm379 = vcmp.eq.s32.totalorder %v91, %v251
  %vm380 = vcmp.eq.s32.totalorder %v91, %v254
  %vm381 = vcmp.eq.s32.totalorder %v91, %v257
  %vm382 = vcmp.eq.s32.totalorder %v91, %v260
  %vm383 = vcmp.eq.s32.totalorder %v91, %v263
  %vm384 = vcmp.eq.s32.totalorder %v91, %v266
  %vm385 = vcmp.eq.s32.totalorder %v91, %v269
  %vm386 = vcmp.eq.s32.totalorder %v91, %v272
  %vm387 = vcmp.eq.s32.totalorder %v91, %v275
  %vm388 = vcmp.eq.s32.totalorder %v91, %v278
  %vm389 = vcmp.eq.s32.totalorder %v91, %v281
  %vm390 = vcmp.eq.s32.totalorder %v91, %v284
  %vm391 = vcmp.eq.s32.totalorder %v91, %v287
  %vm392 = vcmp.eq.s32.totalorder %v91, %v290
  %vm393 = vcmp.eq.s32.totalorder %v91, %v293
  %vm394 = vcmp.eq.s32.totalorder %v91, %v296
  %vm395 = vcmp.eq.s32.totalorder %v91, %v299
  %vm396 = vcmp.eq.s32.totalorder %v91, %v302
  %vm397 = vcmp.eq.s32.totalorder %v91, %v305
  %vm398 = vcmp.eq.s32.totalorder %v91, %v308
  %vm399 = vcmp.eq.s32.totalorder %v91, %v311
  %vm400 = vcmp.eq.s32.totalorder %v91, %v314
  %vm401 = vcmp.eq.s32.totalorder %v91, %v317
  %vm402 = vcmp.eq.s32.totalorder %v91, %v320
  %vm403 = vcmp.eq.s32.totalorder %v91, %v323
  %vm404 = vcmp.eq.s32.totalorder %v91, %v326
  %vm405 = vcmp.eq.s32.totalorder %v91, %v329
  %vm406 = vcmp.eq.s32.totalorder %v91, %v332
  %vm407 = vcmp.eq.s32.totalorder %v91, %v335
  %vm408 = vcmp.eq.s32.totalorder %v91, %v338
  %vm409 = vcmp.eq.s32.totalorder %v91, %v341
  %vm410 = vcmp.eq.s32.totalorder %v91, %v344
  %vm411 = vcmp.eq.s32.totalorder %v91, %v347
  %v412 = vsel %vm348, 1, 0
  %v413 = vsel %vm349, 1, 0
  %v414 = vsel %vm350, 1, 0
  %v415 = vsel %vm351, 1, 0
  %v416 = vsel %vm352, 1, 0
  %v417 = vsel %vm353, 1, 0
  %v418 = vsel %vm354, 1, 0
  %v419 = vsel %vm355, 1, 0
  %v420 = vsel %vm356, 1, 0
  %v421 = vsel %vm357, 1, 0
  %v422 = vsel %vm358, 1, 0
  %v423 = vsel %vm359, 1, 0
  %v424 = vsel %vm360, 1, 0
  %v425 = vsel %vm361, 1, 0
  %v426 = vsel %vm362, 1, 0
  %v427 = vsel %vm363, 1, 0
  %v428 = vsel %vm364, 1, 0
  %v429 = vsel %vm365, 1, 0
  %v430 = vsel %vm366, 1, 0
  %v431 = vsel %vm367, 1, 0
  %v432 = vsel %vm368, 1, 0
  %v433 = vsel %vm369, 1, 0
  %v434 = vsel %vm370, 1, 0
  %v435 = vsel %vm371, 1, 0
  %v436 = vsel %vm372, 1, 0
  %v437 = vsel %vm373, 1, 0
  %v438 = vsel %vm374, 1, 0
  %v439 = vsel %vm375, 1, 0
  %v440 = vsel %vm376, 1, 0
  %v441 = vsel %vm377, 1, 0
  %v442 = vsel %vm378, 1, 0
  %v443 = vsel %vm379, 1, 0
  %v444 = vsel %vm380, 1, 0
  %v445 = vsel %vm381, 1, 0
  %v446 = vsel %vm382, 1, 0
  %v447 = vsel %vm383, 1, 0
  %v448 = vsel %vm384, 1, 0
  %v449 = vsel %vm385, 1, 0
  %v450 = vsel %vm386, 1, 0
  %v451 = vsel %vm387, 1, 0
  %v452 = vsel %vm388, 1, 0
  %v453 = vsel %vm389, 1, 0
  %v454 = vsel %vm390, 1, 0
  %v455 = vsel %vm391, 1, 0
  %v456 = vsel %vm392, 1, 0
  %v457 = vsel %vm393, 1, 0
  %v458 = vsel %vm394, 1, 0
  %v459 = vsel %vm395, 1, 0
  %v460 = vsel %vm396, 1, 0
  %v461 = vsel %vm397, 1, 0
  %v462 = vsel %vm398, 1, 0
  %v463 = vsel %vm399, 1, 0
  %v464 = vsel %vm400, 1, 0
  %v465 = vsel %vm401, 1, 0
  %v466 = vsel %vm402, 1, 0
  %v467 = vsel %vm403, 1, 0
  %v468 = vsel %vm404, 1, 0
  %v469 = vsel %vm405, 1, 0
  %v470 = vsel %vm406, 1, 0
  %v471 = vsel %vm407, 1, 0
  %v472 = vsel %vm408, 1, 0
  %v473 = vsel %vm409, 1, 0
  %v474 = vsel %vm410, 1, 0
  %v475 = vsel %vm411, 1, 0
  %v476 = vcvt.s32.f32 %v412
  %v477 = vcvt.s32.f32 %v413
  %v478 = vcvt.s32.f32 %v414
  %v479 = vcvt.s32.f32 %v415
  %v480 = vcvt.s32.f32 %v416
  %v481 = vcvt.s32.f32 %v417
  %v482 = vcvt.s32.f32 %v418
  %v483 = vcvt.s32.f32 %v419
  %v484 = vcvt.s32.f32 %v420
  %v485 = vcvt.s32.f32 %v421
  %v486 = vcvt.s32.f32 %v422
  %v487 = vcvt.s32.f32 %v423
  %v488 = vcvt.s32.f32 %v424
  %v489 = vcvt.s32.f32 %v425
  %v490 = vcvt.s32.f32 %v426
  %v491 = vcvt.s32.f32 %v427
  %v492 = vcvt.s32.f32 %v428
  %v493 = vcvt.s32.f32 %v429
  %v494 = vcvt.s32.f32 %v430
  %v495 = vcvt.s32.f32 %v431
  %v496 = vcvt.s32.f32 %v432
  %v497 = vcvt.s32.f32 %v433
  %v498 = vcvt.s32.f32 %v434
  %v499 = vcvt.s32.f32 %v435
  %v500 = vcvt.s32.f32 %v436
  %v501 = vcvt.s32.f32 %v437
  %v502 = vcvt.s32.f32 %v438
  %v503 = vcvt.s32.f32 %v439
  %v504 = vcvt.s32.f32 %v440
  %v505 = vcvt.s32.f32 %v441
  %v506 = vcvt.s32.f32 %v442
  %v507 = vcvt.s32.f32 %v443
  %v508 = vcvt.s32.f32 %v444
  %v509 = vcvt.s32.f32 %v445
  %v510 = vcvt.s32.f32 %v446
  %v511 = vcvt.s32.f32 %v447
  %v512 = vcvt.s32.f32 %v448
  %v513 = vcvt.s32.f32 %v449
  %v514 = vcvt.s32.f32 %v450
  %v515 = vcvt.s32.f32 %v451
  %v516 = vcvt.s32.f32 %v452
  %v517 = vcvt.s32.f32 %v453
  %v518 = vcvt.s32.f32 %v454
  %v519 = vcvt.s32.f32 %v455
  %v520 = vcvt.s32.f32 %v456
  %v521 = vcvt.s32.f32 %v457
  %v522 = vcvt.s32.f32 %v458
  %v523 = vcvt.s32.f32 %v459
  %v524 = vcvt.s32.f32 %v460
  %v525 = vcvt.s32.f32 %v461
  %v526 = vcvt.s32.f32 %v462
  %v527 = vcvt.s32.f32 %v463
  %v528 = vcvt.s32.f32 %v464
  %v529 = vcvt.s32.f32 %v465
  %v530 = vcvt.s32.f32 %v466
  %v531 = vcvt.s32.f32 %v467
  %v532 = vcvt.s32.f32 %v468
  %v533 = vcvt.s32.f32 %v469
  %v534 = vcvt.s32.f32 %v470
  %v535 = vcvt.s32.f32 %v471
  %v536 = vcvt.s32.f32 %v472
  %v537 = vcvt.s32.f32 %v473
  %v538 = vcvt.s32.f32 %v474
  %v539 = vcvt.s32.f32 %v475
  %v540 = vld [vmem:[%s2] sm:$0xff]
  %v541 = vld [vmem:[%s2 + $0x8] sm:$0xff]
  %v542 = vld [vmem:[%s2 + $0x10] sm:$0xff]
  %v543 = vld [vmem:[%s2 + $0x18] sm:$0xff]
  %v544 = vld [vmem:[%s2 + $0x20] sm:$0xff]
  %v545 = vld [vmem:[%s2 + $0x28] sm:$0xff]
  %v546 = vld [vmem:[%s2 + $0x30] sm:$0xff]
  %v547 = vld [vmem:[%s2 + $0x38] sm:$0xff]
  %v548 = vld [vmem:[%s2 + $0x40] sm:$0xff]
  %v549 = vld [vmem:[%s2 + $0x48] sm:$0xff]
  %v550 = vld [vmem:[%s2 + $0x50] sm:$0xff]
  %v551 = vld [vmem:[%s2 + $0x58] sm:$0xff]
  %v552 = vld [vmem:[%s2 + $0x60] sm:$0xff]
  %v553 = vld [vmem:[%s2 + $0x68] sm:$0xff]
  %v554 = vld [vmem:[%s2 + $0x70] sm:$0xff]
  %v555 = vld [vmem:[%s2 + $0x78] sm:$0xff]
  %v556 = vld [vmem:[%s3] sm:$0xff]
  %v557 = vld [vmem:[%s3 + $0x8] sm:$0xff]
  %v558 = vld [vmem:[%s3 + $0x10] sm:$0x3]
  %v559 = vld [vmem:[%s3 + $0x18] sm:$0x3]
  %vm560 = vcmask 80896
  %v562 = vsel %vm560, %v476, 0
  %v565 = vsel %vm560, %v477, 0
  %v568 = vsel %vm560, %v478, 0
  %v571 = vsel %vm560, %v479, 0
  %v574 = vsel %vm560, %v480, 0
  %v577 = vsel %vm560, %v481, 0
  %v580 = vsel %vm560, %v482, 0
  %v583 = vsel %vm560, %v483, 0
  %v586 = vsel %vm560, %v484, 0
  %v589 = vsel %vm560, %v485, 0
  %v592 = vsel %vm560, %v486, 0
  %v595 = vsel %vm560, %v487, 0
  %v598 = vsel %vm560, %v488, 0
  %v601 = vsel %vm560, %v489, 0
  %v604 = vsel %vm560, %v490, 0
  %v607 = vsel %vm560, %v491, 0
  %v610 = vsel %vm560, %v492, 0
  %v613 = vsel %vm560, %v493, 0
  %v616 = vsel %vm560, %v494, 0
  %v619 = vsel %vm560, %v495, 0
  %v622 = vsel %vm560, %v496, 0
  %v625 = vsel %vm560, %v497, 0
  %v628 = vsel %vm560, %v498, 0
  %v631 = vsel %vm560, %v499, 0
  %v634 = vsel %vm560, %v500, 0
  %v637 = vsel %vm560, %v501, 0
  %v640 = vsel %vm560, %v502, 0
  %v643 = vsel %vm560, %v503, 0
  %v646 = vsel %vm560, %v504, 0
  %v649 = vsel %vm560, %v505, 0
  %v652 = vsel %vm560, %v506, 0
  %v655 = vsel %vm560, %v507, 0
  %v658 = vsel %vm560, %v508, 0
  %v661 = vsel %vm560, %v509, 0
  %v664 = vsel %vm560, %v510, 0
  %v667 = vsel %vm560, %v511, 0
  %v670 = vsel %vm560, %v512, 0
  %v673 = vsel %vm560, %v513, 0
  %v676 = vsel %vm560, %v514, 0
  %v679 = vsel %vm560, %v515, 0
  %v682 = vsel %vm560, %v516, 0
  %v685 = vsel %vm560, %v517, 0
  %v688 = vsel %vm560, %v518, 0
  %v691 = vsel %vm560, %v519, 0
  %v694 = vsel %vm560, %v520, 0
  %v697 = vsel %vm560, %v521, 0
  %v700 = vsel %vm560, %v522, 0
  %v703 = vsel %vm560, %v523, 0
  %v706 = vsel %vm560, %v524, 0
  %v709 = vsel %vm560, %v525, 0
  %v712 = vsel %vm560, %v526, 0
  %v715 = vsel %vm560, %v527, 0
  %v718 = vsel %vm560, %v528, 0
  %v721 = vsel %vm560, %v529, 0
  %v724 = vsel %vm560, %v530, 0
  %v727 = vsel %vm560, %v531, 0
  %v730 = vsel %vm560, %v532, 0
  %v733 = vsel %vm560, %v533, 0
  %v736 = vsel %vm560, %v534, 0
  %v739 = vsel %vm560, %v535, 0
  %v742 = vsel %vm560, %v536, 0
  %v745 = vsel %vm560, %v537, 0
  %v748 = vsel %vm560, %v538, 0
  %v751 = vsel %vm560, %v539, 0
  %vm753 = vcmask 1041408
  %v755 = vsel %vm753, %v558, 0
  %v758 = vsel %vm753, %v559, 0
  %760 = vmatprep.subr.mxu0 %v557
  %761 = vmatpush1.msra.mxu0 %v556
  %762 = vmatprep.subr.mxu0 %v758
  %763 = vmatpush1.msra.mxu0 %v755
  %764 = vmatprep.subr.mxu0 0.0
  %765 = vmatpush1.msra.mxu0 0.0
  %766 = vmatprep.subr.mxu0 0.0
  %767 = vmatpush1.msra.mxu0 0.0
  %768 = vmatprep.subr.mxu0 0.0
  %769 = vmatpush1.msra.mxu0 0.0
  %770 = vmatprep.subr.mxu0 0.0
  %771 = vmatpush1.msra.mxu0 0.0
  %772 = vmatprep.subr.mxu0 0.0
  %773 = vmatpush1.msra.mxu0 0.0
  %774 = vmatprep.subr.mxu0 0.0
  %775 = vmatpush1.msra.mxu0 0.0
  %776 = vmatprep.subr.mxu0 0.0
  %777 = vmatpush1.msra.mxu0 0.0
  %778 = vmatprep.subr.mxu0 0.0
  %779 = vmatpush1.msra.mxu0 0.0
  %780 = vmatprep.subr.mxu0 0.0
  %781 = vmatpush1.msra.mxu0 0.0
  %782 = vmatprep.subr.mxu0 0.0
  %783 = vmatpush1.msra.mxu0 0.0
  %784 = vmatprep.subr.mxu0 0.0
  %785 = vmatpush1.msra.mxu0 0.0
  %786 = vmatprep.subr.mxu0 0.0
  %787 = vmatpush1.msra.mxu0 0.0
  %788 = vmatprep.subr.mxu0 0.0
  %789 = vmatpush1.msra.mxu0 0.0
  %790 = vmatprep.subr.mxu0 0.0
  %791 = vmatpush1.msra.mxu0 0.0
  %792 = vmatprep.subr.mxu0 0.0
  %793 = vmatpush1.msra.mxu0 0.0
  %794 = vmatprep.subr.mxu0 0.0
  %795 = vmatpush1.msra.mxu0 0.0
  %796 = vmatprep.subr.mxu0 0.0
  %797 = vmatpush1.msra.mxu0 0.0
  %798 = vmatprep.subr.mxu0 0.0
  %799 = vmatpush1.msra.mxu0 0.0
  %800 = vmatprep.subr.mxu0 0.0
  %801 = vmatpush1.msra.mxu0 0.0
  %802 = vmatprep.subr.mxu0 0.0
  %803 = vmatpush1.msra.mxu0 0.0
  %804 = vmatprep.subr.mxu0 0.0
  %805 = vmatpush1.msra.mxu0 0.0
  %806 = vmatprep.subr.mxu0 0.0
  %807 = vmatpush1.msra.mxu0 0.0
  %808 = vmatprep.subr.mxu0 0.0
  %809 = vmatpush1.msra.mxu0 0.0
  %810 = vmatprep.subr.mxu0 0.0
  %811 = vmatpush1.msra.mxu0 0.0
  %812 = vmatprep.subr.mxu0 0.0
  %813 = vmatpush1.msra.mxu0 0.0
  %814 = vmatprep.subr.mxu0 0.0
  %815 = vmatpush1.msra.mxu0 0.0
  %816 = vmatprep.subr.mxu0 0.0
  %817 = vmatpush1.msra.mxu0 0.0
  %818 = vmatprep.subr.mxu0 0.0
  %819 = vmatpush1.msra.mxu0 0.0
  %820 = vmatprep.subr.mxu0 0.0
  %821 = vmatpush1.msra.mxu0 0.0
  %822 = vmatprep.subr.mxu0 0.0
  %823 = vmatpush1.msra.mxu0 0.0
  %824 = vmatprep.mubr.f32.mxu0 0.0
  %825 = vmatmul.mubr.f32.gmra.mrb[0].mxu0 %v562
  %v826 = vpop.f32.mrb[0].mxu0
  %v827 = vadd.f32 0.0, %v826
  %v828 = vpop.f32.mrb[0].mxu0
  %v829 = vadd.f32 0.0, %v828
  %830 = vmatprep.mubr.f32.mxu0 0.0
  %831 = vmatmul.mubr.f32.gmra.mrb[0].mxu0 %v565
  %v832 = vpop.f32.mrb[0].mxu0
  %v833 = vadd.f32 0.0, %v832
  %v834 = vpop.f32.mrb[0].mxu0
  %v835 = vadd.f32 0.0, %v834
  %836 = vmatprep.mubr.f32.mxu0 0.0
  %837 = vmatmul.mubr.f32.gmra.mrb[0].mxu0 %v568
  %v838 = vpop.f32.mrb[0].mxu0
  %v839 = vadd.f32 0.0, %v838
  %v840 = vpop.f32.mrb[0].mxu0
  %v841 = vadd.f32 0.0, %v840
  %842 = vmatprep.mubr.f32.mxu0 0.0
  %843 = vmatmul.mubr.f32.gmra.mrb[0].mxu0 %v571
  %v844 = vpop.f32.mrb[0].mxu0
  %v845 = vadd.f32 0.0, %v844
  %v846 = vpop.f32.mrb[0].mxu0
  %v847 = vadd.f32 0.0, %v846
  %848 = vmatprep.mubr.f32.mxu0 0.0
  %849 = vmatmul.mubr.f32.gmra.mrb[0].mxu0 %v574
  %v850 = vpop.f32.mrb[0].mxu0
  %v851 = vadd.f32 0.0, %v850
  %v852 = vpop.f32.mrb[0].mxu0
  %v853 = vadd.f32 0.0, %v852
  %854 = vmatprep.mubr.f32.mxu0 0.0
  %855 = vmatmul.mubr.f32.gmra.mrb[0].mxu0 %v577
  %v856 = vpop.f32.mrb[0].mxu0
  %v857 = vadd.f32 0.0, %v856
  %v858 = vpop.f32.mrb[0].mxu0
  %v859 = vadd.f32 0.0, %v858
  %860 = vmatprep.mubr.f32.mxu0 0.0
  %861 = vmatmul.mubr.f32.gmra.mrb[0].mxu0 %v580
  %v862 = vpop.f32.mrb[0].mxu0
  %v863 = vadd.f32 0.0, %v862
  %v864 = vpop.f32.mrb[0].mxu0
  %v865 = vadd.f32 0.0, %v864
  %866 = vmatprep.mubr.f32.mxu0 0.0
  %867 = vmatmul.mubr.f32.gmra.mrb[0].mxu0 %v583
  %v868 = vpop.f32.mrb[0].mxu0
  %v869 = vadd.f32 0.0, %v868
  %v870 = vpop.f32.mrb[0].mxu0
  %v871 = vadd.f32 0.0, %v870
  %872 = vmatprep.mubr.f32.mxu0 0.0
  %873 = vmatmul.mubr.f32.gmra.mrb[0].mxu0 %v586
  %v874 = vpop.f32.mrb[0].mxu0
  %v875 = vadd.f32 0.0, %v874
  %v876 = vpop.f32.mrb[0].mxu0
  %v877 = vadd.f32 0.0, %v876
  %878 = vmatprep.mubr.f32.mxu0 0.0
  %879 = vmatmul.mubr.f32.gmra.mrb[0].mxu0 %v589
  %v880 = vpop.f32.mrb[0].mxu0
  %v881 = vadd.f32 0.0, %v880
  %v882 = vpop.f32.mrb[0].mxu0
  %v883 = vadd.f32 0.0, %v882
  %884 = vmatprep.mubr.f32.mxu0 0.0
  %885 = vmatmul.mubr.f32.gmra.mrb[0].mxu0 %v592
  %v886 = vpop.f32.mrb[0].mxu0
  %v887 = vadd.f32 0.0, %v886
  %v888 = vpop.f32.mrb[0].mxu0
  %v889 = vadd.f32 0.0, %v888
  %890 = vmatprep.mubr.f32.mxu0 0.0
  %891 = vmatmul.mubr.f32.gmra.mrb[0].mxu0 %v595
  %v892 = vpop.f32.mrb[0].mxu0
  %v893 = vadd.f32 0.0, %v892
  %v894 = vpop.f32.mrb[0].mxu0
  %v895 = vadd.f32 0.0, %v894
  %896 = vmatprep.mubr.f32.mxu0 0.0
  %897 = vmatmul.mubr.f32.gmra.mrb[0].mxu0 %v598
  %v898 = vpop.f32.mrb[0].mxu0
  %v899 = vadd.f32 0.0, %v898
  %v900 = vpop.f32.mrb[0].mxu0
  %v901 = vadd.f32 0.0, %v900
  %902 = vmatprep.mubr.f32.mxu0 0.0
  %903 = vmatmul.mubr.f32.gmra.mrb[0].mxu0 %v601
  %v904 = vpop.f32.mrb[0].mxu0
  %v905 = vadd.f32 0.0, %v904
  %v906 = vpop.f32.mrb[0].mxu0
  %v907 = vadd.f32 0.0, %v906
  %908 = vmatprep.mubr.f32.mxu0 0.0
  %909 = vmatmul.mubr.f32.gmra.mrb[0].mxu0 %v604
  %v910 = vpop.f32.mrb[0].mxu0
  %v911 = vadd.f32 0.0, %v910
  %v912 = vpop.f32.mrb[0].mxu0
  %v913 = vadd.f32 0.0, %v912
  %914 = vmatprep.mubr.f32.mxu0 0.0
  %915 = vmatmul.mubr.f32.gmra.mrb[0].mxu0 %v607
  %v916 = vpop.f32.mrb[0].mxu0
  %v917 = vadd.f32 0.0, %v916
  %v918 = vpop.f32.mrb[0].mxu0
  %v919 = vadd.f32 0.0, %v918
  %920 = vmatprep.mubr.f32.mxu0 0.0
  %921 = vmatmul.mubr.f32.gmra.mrb[0].mxu0 %v610
  %v922 = vpop.f32.mrb[0].mxu0
  %v923 = vadd.f32 0.0, %v922
  %v924 = vpop.f32.mrb[0].mxu0
  %v925 = vadd.f32 0.0, %v924
  %926 = vmatprep.mubr.f32.mxu0 0.0
  %927 = vmatmul.mubr.f32.gmra.mrb[0].mxu0 %v613
  %v928 = vpop.f32.mrb[0].mxu0
  %v929 = vadd.f32 0.0, %v928
  %v930 = vpop.f32.mrb[0].mxu0
  %v931 = vadd.f32 0.0, %v930
  %932 = vmatprep.mubr.f32.mxu0 0.0
  %933 = vmatmul.mubr.f32.gmra.mrb[0].mxu0 %v616
  %v934 = vpop.f32.mrb[0].mxu0
  %v935 = vadd.f32 0.0, %v934
  %v936 = vpop.f32.mrb[0].mxu0
  %v937 = vadd.f32 0.0, %v936
  %938 = vmatprep.mubr.f32.mxu0 0.0
  %939 = vmatmul.mubr.f32.gmra.mrb[0].mxu0 %v619
  %v940 = vpop.f32.mrb[0].mxu0
  %v941 = vadd.f32 0.0, %v940
  %v942 = vpop.f32.mrb[0].mxu0
  %v943 = vadd.f32 0.0, %v942
  %944 = vmatprep.mubr.f32.mxu0 0.0
  %945 = vmatmul.mubr.f32.gmra.mrb[0].mxu0 %v622
  %v946 = vpop.f32.mrb[0].mxu0
  %v947 = vadd.f32 0.0, %v946
  %v948 = vpop.f32.mrb[0].mxu0
  %v949 = vadd.f32 0.0, %v948
  %950 = vmatprep.mubr.f32.mxu0 0.0
  %951 = vmatmul.mubr.f32.gmra.mrb[0].mxu0 %v625
  %v952 = vpop.f32.mrb[0].mxu0
  %v953 = vadd.f32 0.0, %v952
  %v954 = vpop.f32.mrb[0].mxu0
  %v955 = vadd.f32 0.0, %v954
  %956 = vmatprep.mubr.f32.mxu0 0.0
  %957 = vmatmul.mubr.f32.gmra.mrb[0].mxu0 %v628
  %v958 = vpop.f32.mrb[0].mxu0
  %v959 = vadd.f32 0.0, %v958
  %v960 = vpop.f32.mrb[0].mxu0
  %v961 = vadd.f32 0.0, %v960
  %962 = vmatprep.mubr.f32.mxu0 0.0
  %963 = vmatmul.mubr.f32.gmra.mrb[0].mxu0 %v631
  %v964 = vpop.f32.mrb[0].mxu0
  %v965 = vadd.f32 0.0, %v964
  %v966 = vpop.f32.mrb[0].mxu0
  %v967 = vadd.f32 0.0, %v966
  %968 = vmatprep.mubr.f32.mxu0 0.0
  %969 = vmatmul.mubr.f32.gmra.mrb[0].mxu0 %v634
  %v970 = vpop.f32.mrb[0].mxu0
  %v971 = vadd.f32 0.0, %v970
  %v972 = vpop.f32.mrb[0].mxu0
  %v973 = vadd.f32 0.0, %v972
  %974 = vmatprep.mubr.f32.mxu0 0.0
  %975 = vmatmul.mubr.f32.gmra.mrb[0].mxu0 %v637
  %v976 = vpop.f32.mrb[0].mxu0
  %v977 = vadd.f32 0.0, %v976
  %v978 = vpop.f32.mrb[0].mxu0
  %v979 = vadd.f32 0.0, %v978
  %980 = vmatprep.mubr.f32.mxu0 0.0
  %981 = vmatmul.mubr.f32.gmra.mrb[0].mxu0 %v640
  %v982 = vpop.f32.mrb[0].mxu0
  %v983 = vadd.f32 0.0, %v982
  %v984 = vpop.f32.mrb[0].mxu0
  %v985 = vadd.f32 0.0, %v984
  %986 = vmatprep.mubr.f32.mxu0 0.0
  %987 = vmatmul.mubr.f32.gmra.mrb[0].mxu0 %v643
  %v988 = vpop.f32.mrb[0].mxu0
  %v989 = vadd.f32 0.0, %v988
  %v990 = vpop.f32.mrb[0].mxu0
  %v991 = vadd.f32 0.0, %v990
  %992 = vmatprep.mubr.f32.mxu0 0.0
  %993 = vmatmul.mubr.f32.gmra.mrb[0].mxu0 %v646
  %v994 = vpop.f32.mrb[0].mxu0
  %v995 = vadd.f32 0.0, %v994
  %v996 = vpop.f32.mrb[0].mxu0
  %v997 = vadd.f32 0.0, %v996
  %998 = vmatprep.mubr.f32.mxu0 0.0
  %999 = vmatmul.mubr.f32.gmra.mrb[0].mxu0 %v649
  %v1000 = vpop.f32.mrb[0].mxu0
  %v1001 = vadd.f32 0.0, %v1000
  %v1002 = vpop.f32.mrb[0].mxu0
  %v1003 = vadd.f32 0.0, %v1002
  %1004 = vmatprep.mubr.f32.mxu0 0.0
  %1005 = vmatmul.mubr.f32.gmra.mrb[0].mxu0 %v652
  %v1006 = vpop.f32.mrb[0].mxu0
  %v1007 = vadd.f32 0.0, %v1006
  %v1008 = vpop.f32.mrb[0].mxu0
  %v1009 = vadd.f32 0.0, %v1008
  %1010 = vmatprep.mubr.f32.mxu0 0.0
  %1011 = vmatmul.mubr.f32.gmra.mrb[0].mxu0 %v655
  %v1012 = vpop.f32.mrb[0].mxu0
  %v1013 = vadd.f32 0.0, %v1012
  %v1014 = vpop.f32.mrb[0].mxu0
  %v1015 = vadd.f32 0.0, %v1014
  %1016 = vmatprep.mubr.f32.mxu0 0.0
  %1017 = vmatmul.mubr.f32.gmra.mrb[0].mxu0 %v658
  %v1018 = vpop.f32.mrb[0].mxu0
  %v1019 = vadd.f32 0.0, %v1018
  %v1020 = vpop.f32.mrb[0].mxu0
  %v1021 = vadd.f32 0.0, %v1020
  %1022 = vmatprep.mubr.f32.mxu0 0.0
  %1023 = vmatmul.mubr.f32.gmra.mrb[0].mxu0 %v661
  %v1024 = vpop.f32.mrb[0].mxu0
  %v1025 = vadd.f32 0.0, %v1024
  %v1026 = vpop.f32.mrb[0].mxu0
  %v1027 = vadd.f32 0.0, %v1026
  %1028 = vmatprep.mubr.f32.mxu0 0.0
  %1029 = vmatmul.mubr.f32.gmra.mrb[0].mxu0 %v664
  %v1030 = vpop.f32.mrb[0].mxu0
  %v1031 = vadd.f32 0.0, %v1030
  %v1032 = vpop.f32.mrb[0].mxu0
  %v1033 = vadd.f32 0.0, %v1032
  %1034 = vmatprep.mubr.f32.mxu0 0.0
  %1035 = vmatmul.mubr.f32.gmra.mrb[0].mxu0 %v667
  %v1036 = vpop.f32.mrb[0].mxu0
  %v1037 = vadd.f32 0.0, %v1036
  %v1038 = vpop.f32.mrb[0].mxu0
  %v1039 = vadd.f32 0.0, %v1038
  %1040 = vmatprep.mubr.f32.mxu0 0.0
  %1041 = vmatmul.mubr.f32.gmra.mrb[0].mxu0 %v670
  %v1042 = vpop.f32.mrb[0].mxu0
  %v1043 = vadd.f32 0.0, %v1042
  %v1044 = vpop.f32.mrb[0].mxu0
  %v1045 = vadd.f32 0.0, %v1044
  %1046 = vmatprep.mubr.f32.mxu0 0.0
  %1047 = vmatmul.mubr.f32.gmra.mrb[0].mxu0 %v673
  %v1048 = vpop.f32.mrb[0].mxu0
  %v1049 = vadd.f32 0.0, %v1048
  %v1050 = vpop.f32.mrb[0].mxu0
  %v1051 = vadd.f32 0.0, %v1050
  %1052 = vmatprep.mubr.f32.mxu0 0.0
  %1053 = vmatmul.mubr.f32.gmra.mrb[0].mxu0 %v676
  %v1054 = vpop.f32.mrb[0].mxu0
  %v1055 = vadd.f32 0.0, %v1054
  %v1056 = vpop.f32.mrb[0].mxu0
  %v1057 = vadd.f32 0.0, %v1056
  %1058 = vmatprep.mubr.f32.mxu0 0.0
  %1059 = vmatmul.mubr.f32.gmra.mrb[0].mxu0 %v679
  %v1060 = vpop.f32.mrb[0].mxu0
  %v1061 = vadd.f32 0.0, %v1060
  %v1062 = vpop.f32.mrb[0].mxu0
  %v1063 = vadd.f32 0.0, %v1062
  %1064 = vmatprep.mubr.f32.mxu0 0.0
  %1065 = vmatmul.mubr.f32.gmra.mrb[0].mxu0 %v682
  %v1066 = vpop.f32.mrb[0].mxu0
  %v1067 = vadd.f32 0.0, %v1066
  %v1068 = vpop.f32.mrb[0].mxu0
  %v1069 = vadd.f32 0.0, %v1068
  %1070 = vmatprep.mubr.f32.mxu0 0.0
  %1071 = vmatmul.mubr.f32.gmra.mrb[0].mxu0 %v685
  %v1072 = vpop.f32.mrb[0].mxu0
  %v1073 = vadd.f32 0.0, %v1072
  %v1074 = vpop.f32.mrb[0].mxu0
  %v1075 = vadd.f32 0.0, %v1074
  %1076 = vmatprep.mubr.f32.mxu0 0.0
  %1077 = vmatmul.mubr.f32.gmra.mrb[0].mxu0 %v688
  %v1078 = vpop.f32.mrb[0].mxu0
  %v1079 = vadd.f32 0.0, %v1078
  %v1080 = vpop.f32.mrb[0].mxu0
  %v1081 = vadd.f32 0.0, %v1080
  %1082 = vmatprep.mubr.f32.mxu0 0.0
  %1083 = vmatmul.mubr.f32.gmra.mrb[0].mxu0 %v691
  %v1084 = vpop.f32.mrb[0].mxu0
  %v1085 = vadd.f32 0.0, %v1084
  %v1086 = vpop.f32.mrb[0].mxu0
  %v1087 = vadd.f32 0.0, %v1086
  %1088 = vmatprep.mubr.f32.mxu0 0.0
  %1089 = vmatmul.mubr.f32.gmra.mrb[0].mxu0 %v694
  %v1090 = vpop.f32.mrb[0].mxu0
  %v1091 = vadd.f32 0.0, %v1090
  %v1092 = vpop.f32.mrb[0].mxu0
  %v1093 = vadd.f32 0.0, %v1092
  %1094 = vmatprep.mubr.f32.mxu0 0.0
  %1095 = vmatmul.mubr.f32.gmra.mrb[0].mxu0 %v697
  %v1096 = vpop.f32.mrb[0].mxu0
  %v1097 = vadd.f32 0.0, %v1096
  %v1098 = vpop.f32.mrb[0].mxu0
  %v1099 = vadd.f32 0.0, %v1098
  %1100 = vmatprep.mubr.f32.mxu0 0.0
  %1101 = vmatmul.mubr.f32.gmra.mrb[0].mxu0 %v700
  %v1102 = vpop.f32.mrb[0].mxu0
  %v1103 = vadd.f32 0.0, %v1102
  %v1104 = vpop.f32.mrb[0].mxu0
  %v1105 = vadd.f32 0.0, %v1104
  %1106 = vmatprep.mubr.f32.mxu0 0.0
  %1107 = vmatmul.mubr.f32.gmra.mrb[0].mxu0 %v703
  %v1108 = vpop.f32.mrb[0].mxu0
  %v1109 = vadd.f32 0.0, %v1108
  %v1110 = vpop.f32.mrb[0].mxu0
  %v1111 = vadd.f32 0.0, %v1110
  %1112 = vmatprep.mubr.f32.mxu0 0.0
  %1113 = vmatmul.mubr.f32.gmra.mrb[0].mxu0 %v706
  %v1114 = vpop.f32.mrb[0].mxu0
  %v1115 = vadd.f32 0.0, %v1114
  %v1116 = vpop.f32.mrb[0].mxu0
  %v1117 = vadd.f32 0.0, %v1116
  %1118 = vmatprep.mubr.f32.mxu0 0.0
  %1119 = vmatmul.mubr.f32.gmra.mrb[0].mxu0 %v709
  %v1120 = vpop.f32.mrb[0].mxu0
  %v1121 = vadd.f32 0.0, %v1120
  %v1122 = vpop.f32.mrb[0].mxu0
  %v1123 = vadd.f32 0.0, %v1122
  %1124 = vmatprep.mubr.f32.mxu0 0.0
  %1125 = vmatmul.mubr.f32.gmra.mrb[0].mxu0 %v712
  %v1126 = vpop.f32.mrb[0].mxu0
  %v1127 = vadd.f32 0.0, %v1126
  %v1128 = vpop.f32.mrb[0].mxu0
  %v1129 = vadd.f32 0.0, %v1128
  %1130 = vmatprep.mubr.f32.mxu0 0.0
  %1131 = vmatmul.mubr.f32.gmra.mrb[0].mxu0 %v715
  %v1132 = vpop.f32.mrb[0].mxu0
  %v1133 = vadd.f32 0.0, %v1132
  %v1134 = vpop.f32.mrb[0].mxu0
  %v1135 = vadd.f32 0.0, %v1134
  %1136 = vmatprep.mubr.f32.mxu0 0.0
  %1137 = vmatmul.mubr.f32.gmra.mrb[0].mxu0 %v718
  %v1138 = vpop.f32.mrb[0].mxu0
  %v1139 = vadd.f32 0.0, %v1138
  %v1140 = vpop.f32.mrb[0].mxu0
  %v1141 = vadd.f32 0.0, %v1140
  %1142 = vmatprep.mubr.f32.mxu0 0.0
  %1143 = vmatmul.mubr.f32.gmra.mrb[0].mxu0 %v721
  %v1144 = vpop.f32.mrb[0].mxu0
  %v1145 = vadd.f32 0.0, %v1144
  %v1146 = vpop.f32.mrb[0].mxu0
  %v1147 = vadd.f32 0.0, %v1146
  %1148 = vmatprep.mubr.f32.mxu0 0.0
  %1149 = vmatmul.mubr.f32.gmra.mrb[0].mxu0 %v724
  %v1150 = vpop.f32.mrb[0].mxu0
  %v1151 = vadd.f32 0.0, %v1150
  %v1152 = vpop.f32.mrb[0].mxu0
  %v1153 = vadd.f32 0.0, %v1152
  %1154 = vmatprep.mubr.f32.mxu0 0.0
  %1155 = vmatmul.mubr.f32.gmra.mrb[0].mxu0 %v727
  %v1156 = vpop.f32.mrb[0].mxu0
  %v1157 = vadd.f32 0.0, %v1156
  %v1158 = vpop.f32.mrb[0].mxu0
  %v1159 = vadd.f32 0.0, %v1158
  %1160 = vmatprep.mubr.f32.mxu0 0.0
  %1161 = vmatmul.mubr.f32.gmra.mrb[0].mxu0 %v730
  %v1162 = vpop.f32.mrb[0].mxu0
  %v1163 = vadd.f32 0.0, %v1162
  %v1164 = vpop.f32.mrb[0].mxu0
  %v1165 = vadd.f32 0.0, %v1164
  %1166 = vmatprep.mubr.f32.mxu0 0.0
  %1167 = vmatmul.mubr.f32.gmra.mrb[0].mxu0 %v733
  %v1168 = vpop.f32.mrb[0].mxu0
  %v1169 = vadd.f32 0.0, %v1168
  %v1170 = vpop.f32.mrb[0].mxu0
  %v1171 = vadd.f32 0.0, %v1170
  %1172 = vmatprep.mubr.f32.mxu0 0.0
  %1173 = vmatmul.mubr.f32.gmra.mrb[0].mxu0 %v736
  %v1174 = vpop.f32.mrb[0].mxu0
  %v1175 = vadd.f32 0.0, %v1174
  %v1176 = vpop.f32.mrb[0].mxu0
  %v1177 = vadd.f32 0.0, %v1176
  %1178 = vmatprep.mubr.f32.mxu0 0.0
  %1179 = vmatmul.mubr.f32.gmra.mrb[0].mxu0 %v739
  %v1180 = vpop.f32.mrb[0].mxu0
  %v1181 = vadd.f32 0.0, %v1180
  %v1182 = vpop.f32.mrb[0].mxu0
  %v1183 = vadd.f32 0.0, %v1182
  %1184 = vmatprep.mubr.f32.mxu0 0.0
  %1185 = vmatmul.mubr.f32.gmra.mrb[0].mxu0 %v742
  %v1186 = vpop.f32.mrb[0].mxu0
  %v1187 = vadd.f32 0.0, %v1186
  %v1188 = vpop.f32.mrb[0].mxu0
  %v1189 = vadd.f32 0.0, %v1188
  %1190 = vmatprep.mubr.f32.mxu0 0.0
  %1191 = vmatmul.mubr.f32.gmra.mrb[0].mxu0 %v745
  %v1192 = vpop.f32.mrb[0].mxu0
  %v1193 = vadd.f32 0.0, %v1192
  %v1194 = vpop.f32.mrb[0].mxu0
  %v1195 = vadd.f32 0.0, %v1194
  %1196 = vmatprep.mubr.f32.mxu0 0.0
  %1197 = vmatmul.mubr.f32.gmra.mrb[0].mxu0 %v748
  %v1198 = vpop.f32.mrb[0].mxu0
  %v1199 = vadd.f32 0.0, %v1198
  %v1200 = vpop.f32.mrb[0].mxu0
  %v1201 = vadd.f32 0.0, %v1200
  %1202 = vmatprep.mubr.f32.mxu0 0.0
  %1203 = vmatmul.mubr.f32.gmra.mrb[0].mxu0 %v751
  %v1204 = vpop.f32.mrb[0].mxu0
  %v1205 = vadd.f32 0.0, %v1204
  %v1206 = vpop.f32.mrb[0].mxu0
  %v1207 = vadd.f32 0.0, %v1206
  %1208 = vdwg.mxu0
  %vm1209 = vcmask 523264
  %v1211 = vsel %vm1209, %v26, 0
  %v1214 = vsel %vm1209, %v27, 0
  %v1217 = vsel %vm1209, %v28, 0
  %v1220 = vsel %vm1209, %v29, 0
  %v1223 = vsel %vm1209, %v30, 0
  %v1226 = vsel %vm1209, %v31, 0
  %v1229 = vsel %vm1209, %v32, 0
  %v1232 = vsel %vm1209, %v33, 0
  %v1235 = vsel %vm1209, %v34, 0
  %v1238 = vsel %vm1209, %v35, 0
  %v1241 = vsel %vm1209, %v36, 0
  %v1244 = vsel %vm1209, %v37, 0
  %v1247 = vsel %vm1209, %v38, 0
  %v1250 = vsel %vm1209, %v39, 0
  %v1253 = vsel %vm1209, %v40, 0
  %v1256 = vsel %vm1209, %v41, 0
  %v1259 = vsel %vm1209, %v42, 0
  %v1262 = vsel %vm1209, %v43, 0
  %v1265 = vsel %vm1209, %v44, 0
  %v1268 = vsel %vm1209, %v45, 0
  %v1271 = vsel %vm1209, %v46, 0
  %v1274 = vsel %vm1209, %v47, 0
  %v1277 = vsel %vm1209, %v48, 0
  %v1280 = vsel %vm1209, %v49, 0
  %v1283 = vsel %vm1209, %v50, 0
  %v1286 = vsel %vm1209, %v51, 0
  %v1289 = vsel %vm1209, %v52, 0
  %v1292 = vsel %vm1209, %v53, 0
  %v1295 = vsel %vm1209, %v54, 0
  %v1298 = vsel %vm1209, %v55, 0
  %v1301 = vsel %vm1209, %v56, 0
  %v1304 = vsel %vm1209, %v57, 0
  %v1307 = vsel %vm1209, %v58, 0
  %v1310 = vsel %vm1209, %v59, 0
  %v1313 = vsel %vm1209, %v60, 0
  %v1316 = vsel %vm1209, %v61, 0
  %v1319 = vsel %vm1209, %v62, 0
  %v1322 = vsel %vm1209, %v63, 0
  %v1325 = vsel %vm1209, %v64, 0
  %v1328 = vsel %vm1209, %v65, 0
  %v1331 = vsel %vm1209, %v66, 0
  %v1334 = vsel %vm1209, %v67, 0
  %v1337 = vsel %vm1209, %v68, 0
  %v1340 = vsel %vm1209, %v69, 0
  %v1343 = vsel %vm1209, %v70, 0
  %v1346 = vsel %vm1209, %v71, 0
  %v1349 = vsel %vm1209, %v72, 0
  %v1352 = vsel %vm1209, %v73, 0
  %v1355 = vsel %vm1209, %v74, 0
  %v1358 = vsel %vm1209, %v75, 0
  %v1361 = vsel %vm1209, %v76, 0
  %v1364 = vsel %vm1209, %v77, 0
  %v1367 = vsel %vm1209, %v78, 0
  %v1370 = vsel %vm1209, %v79, 0
  %v1373 = vsel %vm1209, %v80, 0
  %v1376 = vsel %vm1209, %v81, 0
  %v1379 = vsel %vm1209, %v82, 0
  %v1382 = vsel %vm1209, %v83, 0
  %v1385 = vsel %vm1209, %v84, 0
  %v1388 = vsel %vm1209, %v85, 0
  %v1391 = vsel %vm1209, %v86, 0
  %v1394 = vsel %vm1209, %v87, 0
  %v1397 = vsel %vm1209, %v88, 0
  %v1400 = vsel %vm1209, %v89, 0
  %1402 = vmatprep.subr.mxu0 %v541
  %1403 = vmatpush1.msra.mxu0 %v540
  %1404 = vmatprep.subr.mxu0 %v543
  %1405 = vmatpush1.msra.mxu0 %v542
  %1406 = vmatprep.subr.mxu0 %v545
  %1407 = vmatpush1.msra.mxu0 %v544
  %1408 = vmatprep.subr.mxu0 %v547
  %1409 = vmatpush1.msra.mxu0 %v546
  %1410 = vmatprep.subr.mxu0 %v549
  %1411 = vmatpush1.msra.mxu0 %v548
  %1412 = vmatprep.subr.mxu0 %v551
  %1413 = vmatpush1.msra.mxu0 %v550
  %1414 = vmatprep.subr.mxu0 %v553
  %1415 = vmatpush1.msra.mxu0 %v552
  %1416 = vmatprep.subr.mxu0 %v555
  %1417 = vmatpush1.msra.mxu0 %v554
  %1418 = vmatprep.subr.mxu0 0.0
  %1419 = vmatpush1.msra.mxu0 0.0
  %1420 = vmatprep.subr.mxu0 0.0
  %1421 = vmatpush1.msra.mxu0 0.0
  %1422 = vmatprep.subr.mxu0 0.0
  %1423 = vmatpush1.msra.mxu0 0.0
  %1424 = vmatprep.subr.mxu0 0.0
  %1425 = vmatpush1.msra.mxu0 0.0
  %1426 = vmatprep.subr.mxu0 0.0
  %1427 = vmatpush1.msra.mxu0 0.0
  %1428 = vmatprep.subr.mxu0 0.0
  %1429 = vmatpush1.msra.mxu0 0.0
  %1430 = vmatprep.subr.mxu0 0.0
  %1431 = vmatpush1.msra.mxu0 0.0
  %1432 = vmatprep.subr.mxu0 0.0
  %1433 = vmatpush1.msra.mxu0 0.0
  %1434 = vmatprep.subr.mxu0 0.0
  %1435 = vmatpush1.msra.mxu0 0.0
  %1436 = vmatprep.subr.mxu0 0.0
  %1437 = vmatpush1.msra.mxu0 0.0
  %1438 = vmatprep.subr.mxu0 0.0
  %1439 = vmatpush1.msra.mxu0 0.0
  %1440 = vmatprep.subr.mxu0 0.0
  %1441 = vmatpush1.msra.mxu0 0.0
  %1442 = vmatprep.subr.mxu0 0.0
  %1443 = vmatpush1.msra.mxu0 0.0
  %1444 = vmatprep.subr.mxu0 0.0
  %1445 = vmatpush1.msra.mxu0 0.0
  %1446 = vmatprep.subr.mxu0 0.0
  %1447 = vmatpush1.msra.mxu0 0.0
  %1448 = vmatprep.subr.mxu0 0.0
  %1449 = vmatpush1.msra.mxu0 0.0
  %1450 = vmatprep.subr.mxu0 0.0
  %1451 = vmatpush1.msra.mxu0 0.0
  %1452 = vmatprep.subr.mxu0 0.0
  %1453 = vmatpush1.msra.mxu0 0.0
  %1454 = vmatprep.subr.mxu0 0.0
  %1455 = vmatpush1.msra.mxu0 0.0
  %1456 = vmatprep.subr.mxu0 0.0
  %1457 = vmatpush1.msra.mxu0 0.0
  %1458 = vmatprep.subr.mxu0 0.0
  %1459 = vmatpush1.msra.mxu0 0.0
  %1460 = vmatprep.subr.mxu0 0.0
  %1461 = vmatpush1.msra.mxu0 0.0
  %1462 = vmatprep.subr.mxu0 0.0
  %1463 = vmatpush1.msra.mxu0 0.0
  %1464 = vmatprep.subr.mxu0 0.0
  %1465 = vmatpush1.msra.mxu0 0.0
  %1466 = vmatprep.mubr.f32.mxu0 0.0
  %1467 = vmatmul.mubr.f32.gmra.mrb[0].mxu0 %v1211
  %v1468 = vpop.f32.mrb[0].mxu0
  %v1469 = vadd.f32 %v827, %v1468
  %v1470 = vpop.f32.mrb[0].mxu0
  %v1471 = vadd.f32 %v829, %v1470
  %1472 = vmatprep.mubr.f32.mxu0 0.0
  %1473 = vmatmul.mubr.f32.gmra.mrb[0].mxu0 %v1214
  %v1474 = vpop.f32.mrb[0].mxu0
  %v1475 = vadd.f32 %v833, %v1474
  %v1476 = vpop.f32.mrb[0].mxu0
  %v1477 = vadd.f32 %v835, %v1476
  %1478 = vmatprep.mubr.f32.mxu0 0.0
  %1479 = vmatmul.mubr.f32.gmra.mrb[0].mxu0 %v1217
  %v1480 = vpop.f32.mrb[0].mxu0
  %v1481 = vadd.f32 %v839, %v1480
  %v1482 = vpop.f32.mrb[0].mxu0
  %v1483 = vadd.f32 %v841, %v1482
  %1484 = vmatprep.mubr.f32.mxu0 0.0
  %1485 = vmatmul.mubr.f32.gmra.mrb[0].mxu0 %v1220
  %v1486 = vpop.f32.mrb[0].mxu0
  %v1487 = vadd.f32 %v845, %v1486
  %v1488 = vpop.f32.mrb[0].mxu0
  %v1489 = vadd.f32 %v847, %v1488
  %1490 = vmatprep.mubr.f32.mxu0 0.0
  %1491 = vmatmul.mubr.f32.gmra.mrb[0].mxu0 %v1223
  %v1492 = vpop.f32.mrb[0].mxu0
  %v1493 = vadd.f32 %v851, %v1492
  %v1494 = vpop.f32.mrb[0].mxu0
  %v1495 = vadd.f32 %v853, %v1494
  %1496 = vmatprep.mubr.f32.mxu0 0.0
  %1497 = vmatmul.mubr.f32.gmra.mrb[0].mxu0 %v1226
  %v1498 = vpop.f32.mrb[0].mxu0
  %v1499 = vadd.f32 %v857, %v1498
  %v1500 = vpop.f32.mrb[0].mxu0
  %v1501 = vadd.f32 %v859, %v1500
  %1502 = vmatprep.mubr.f32.mxu0 0.0
  %1503 = vmatmul.mubr.f32.gmra.mrb[0].mxu0 %v1229
  %v1504 = vpop.f32.mrb[0].mxu0
  %v1505 = vadd.f32 %v863, %v1504
  %v1506 = vpop.f32.mrb[0].mxu0
  %v1507 = vadd.f32 %v865, %v1506
  %1508 = vmatprep.mubr.f32.mxu0 0.0
  %1509 = vmatmul.mubr.f32.gmra.mrb[0].mxu0 %v1232
  %v1510 = vpop.f32.mrb[0].mxu0
  %v1511 = vadd.f32 %v869, %v1510
  %v1512 = vpop.f32.mrb[0].mxu0
  %v1513 = vadd.f32 %v871, %v1512
  %1514 = vmatprep.mubr.f32.mxu0 0.0
  %1515 = vmatmul.mubr.f32.gmra.mrb[0].mxu0 %v1235
  %v1516 = vpop.f32.mrb[0].mxu0
  %v1517 = vadd.f32 %v875, %v1516
  %v1518 = vpop.f32.mrb[0].mxu0
  %v1519 = vadd.f32 %v877, %v1518
  %1520 = vmatprep.mubr.f32.mxu0 0.0
  %1521 = vmatmul.mubr.f32.gmra.mrb[0].mxu0 %v1238
  %v1522 = vpop.f32.mrb[0].mxu0
  %v1523 = vadd.f32 %v881, %v1522
  %v1524 = vpop.f32.mrb[0].mxu0
  %v1525 = vadd.f32 %v883, %v1524
  %1526 = vmatprep.mubr.f32.mxu0 0.0
  %1527 = vmatmul.mubr.f32.gmra.mrb[0].mxu0 %v1241
  %v1528 = vpop.f32.mrb[0].mxu0
  %v1529 = vadd.f32 %v887, %v1528
  %v1530 = vpop.f32.mrb[0].mxu0
  %v1531 = vadd.f32 %v889, %v1530
  %1532 = vmatprep.mubr.f32.mxu0 0.0
  %1533 = vmatmul.mubr.f32.gmra.mrb[0].mxu0 %v1244
  %v1534 = vpop.f32.mrb[0].mxu0
  %v1535 = vadd.f32 %v893, %v1534
  %v1536 = vpop.f32.mrb[0].mxu0
  %v1537 = vadd.f32 %v895, %v1536
  %1538 = vmatprep.mubr.f32.mxu0 0.0
  %1539 = vmatmul.mubr.f32.gmra.mrb[0].mxu0 %v1247
  %v1540 = vpop.f32.mrb[0].mxu0
  %v1541 = vadd.f32 %v899, %v1540
  %v1542 = vpop.f32.mrb[0].mxu0
  %v1543 = vadd.f32 %v901, %v1542
  %1544 = vmatprep.mubr.f32.mxu0 0.0
  %1545 = vmatmul.mubr.f32.gmra.mrb[0].mxu0 %v1250
  %v1546 = vpop.f32.mrb[0].mxu0
  %v1547 = vadd.f32 %v905, %v1546
  %v1548 = vpop.f32.mrb[0].mxu0
  %v1549 = vadd.f32 %v907, %v1548
  %1550 = vmatprep.mubr.f32.mxu0 0.0
  %1551 = vmatmul.mubr.f32.gmra.mrb[0].mxu0 %v1253
  %v1552 = vpop.f32.mrb[0].mxu0
  %v1553 = vadd.f32 %v911, %v1552
  %v1554 = vpop.f32.mrb[0].mxu0
  %v1555 = vadd.f32 %v913, %v1554
  %1556 = vmatprep.mubr.f32.mxu0 0.0
  %1557 = vmatmul.mubr.f32.gmra.mrb[0].mxu0 %v1256
  %v1558 = vpop.f32.mrb[0].mxu0
  %v1559 = vadd.f32 %v917, %v1558
  %v1560 = vpop.f32.mrb[0].mxu0
  %v1561 = vadd.f32 %v919, %v1560
  %1562 = vmatprep.mubr.f32.mxu0 0.0
  %1563 = vmatmul.mubr.f32.gmra.mrb[0].mxu0 %v1259
  %v1564 = vpop.f32.mrb[0].mxu0
  %v1565 = vadd.f32 %v923, %v1564
  %v1566 = vpop.f32.mrb[0].mxu0
  %v1567 = vadd.f32 %v925, %v1566
  %1568 = vmatprep.mubr.f32.mxu0 0.0
  %1569 = vmatmul.mubr.f32.gmra.mrb[0].mxu0 %v1262
  %v1570 = vpop.f32.mrb[0].mxu0
  %v1571 = vadd.f32 %v929, %v1570
  %v1572 = vpop.f32.mrb[0].mxu0
  %v1573 = vadd.f32 %v931, %v1572
  %1574 = vmatprep.mubr.f32.mxu0 0.0
  %1575 = vmatmul.mubr.f32.gmra.mrb[0].mxu0 %v1265
  %v1576 = vpop.f32.mrb[0].mxu0
  %v1577 = vadd.f32 %v935, %v1576
  %v1578 = vpop.f32.mrb[0].mxu0
  %v1579 = vadd.f32 %v937, %v1578
  %1580 = vmatprep.mubr.f32.mxu0 0.0
  %1581 = vmatmul.mubr.f32.gmra.mrb[0].mxu0 %v1268
  %v1582 = vpop.f32.mrb[0].mxu0
  %v1583 = vadd.f32 %v941, %v1582
  %v1584 = vpop.f32.mrb[0].mxu0
  %v1585 = vadd.f32 %v943, %v1584
  %1586 = vmatprep.mubr.f32.mxu0 0.0
  %1587 = vmatmul.mubr.f32.gmra.mrb[0].mxu0 %v1271
  %v1588 = vpop.f32.mrb[0].mxu0
  %v1589 = vadd.f32 %v947, %v1588
  %v1590 = vpop.f32.mrb[0].mxu0
  %v1591 = vadd.f32 %v949, %v1590
  %1592 = vmatprep.mubr.f32.mxu0 0.0
  %1593 = vmatmul.mubr.f32.gmra.mrb[0].mxu0 %v1274
  %v1594 = vpop.f32.mrb[0].mxu0
  %v1595 = vadd.f32 %v953, %v1594
  %v1596 = vpop.f32.mrb[0].mxu0
  %v1597 = vadd.f32 %v955, %v1596
  %1598 = vmatprep.mubr.f32.mxu0 0.0
  %1599 = vmatmul.mubr.f32.gmra.mrb[0].mxu0 %v1277
  %v1600 = vpop.f32.mrb[0].mxu0
  %v1601 = vadd.f32 %v959, %v1600
  %v1602 = vpop.f32.mrb[0].mxu0
  %v1603 = vadd.f32 %v961, %v1602
  %1604 = vmatprep.mubr.f32.mxu0 0.0
  %1605 = vmatmul.mubr.f32.gmra.mrb[0].mxu0 %v1280
  %v1606 = vpop.f32.mrb[0].mxu0
  %v1607 = vadd.f32 %v965, %v1606
  %v1608 = vpop.f32.mrb[0].mxu0
  %v1609 = vadd.f32 %v967, %v1608
  %1610 = vmatprep.mubr.f32.mxu0 0.0
  %1611 = vmatmul.mubr.f32.gmra.mrb[0].mxu0 %v1283
  %v1612 = vpop.f32.mrb[0].mxu0
  %v1613 = vadd.f32 %v971, %v1612
  %v1614 = vpop.f32.mrb[0].mxu0
  %v1615 = vadd.f32 %v973, %v1614
  %1616 = vmatprep.mubr.f32.mxu0 0.0
  %1617 = vmatmul.mubr.f32.gmra.mrb[0].mxu0 %v1286
  %v1618 = vpop.f32.mrb[0].mxu0
  %v1619 = vadd.f32 %v977, %v1618
  %v1620 = vpop.f32.mrb[0].mxu0
  %v1621 = vadd.f32 %v979, %v1620
  %1622 = vmatprep.mubr.f32.mxu0 0.0
  %1623 = vmatmul.mubr.f32.gmra.mrb[0].mxu0 %v1289
  %v1624 = vpop.f32.mrb[0].mxu0
  %v1625 = vadd.f32 %v983, %v1624
  %v1626 = vpop.f32.mrb[0].mxu0
  %v1627 = vadd.f32 %v985, %v1626
  %1628 = vmatprep.mubr.f32.mxu0 0.0
  %1629 = vmatmul.mubr.f32.gmra.mrb[0].mxu0 %v1292
  %v1630 = vpop.f32.mrb[0].mxu0
  %v1631 = vadd.f32 %v989, %v1630
  %v1632 = vpop.f32.mrb[0].mxu0
  %v1633 = vadd.f32 %v991, %v1632
  %1634 = vmatprep.mubr.f32.mxu0 0.0
  %1635 = vmatmul.mubr.f32.gmra.mrb[0].mxu0 %v1295
  %v1636 = vpop.f32.mrb[0].mxu0
  %v1637 = vadd.f32 %v995, %v1636
  %v1638 = vpop.f32.mrb[0].mxu0
  %v1639 = vadd.f32 %v997, %v1638
  %1640 = vmatprep.mubr.f32.mxu0 0.0
  %1641 = vmatmul.mubr.f32.gmra.mrb[0].mxu0 %v1298
  %v1642 = vpop.f32.mrb[0].mxu0
  %v1643 = vadd.f32 %v1001, %v1642
  %v1644 = vpop.f32.mrb[0].mxu0
  %v1645 = vadd.f32 %v1003, %v1644
  %1646 = vmatprep.mubr.f32.mxu0 0.0
  %1647 = vmatmul.mubr.f32.gmra.mrb[0].mxu0 %v1301
  %v1648 = vpop.f32.mrb[0].mxu0
  %v1649 = vadd.f32 %v1007, %v1648
  %v1650 = vpop.f32.mrb[0].mxu0
  %v1651 = vadd.f32 %v1009, %v1650
  %1652 = vmatprep.mubr.f32.mxu0 0.0
  %1653 = vmatmul.mubr.f32.gmra.mrb[0].mxu0 %v1304
  %v1654 = vpop.f32.mrb[0].mxu0
  %v1655 = vadd.f32 %v1013, %v1654
  %v1656 = vpop.f32.mrb[0].mxu0
  %v1657 = vadd.f32 %v1015, %v1656
  %1658 = vmatprep.mubr.f32.mxu0 0.0
  %1659 = vmatmul.mubr.f32.gmra.mrb[0].mxu0 %v1307
  %v1660 = vpop.f32.mrb[0].mxu0
  %v1661 = vadd.f32 %v1019, %v1660
  %v1662 = vpop.f32.mrb[0].mxu0
  %v1663 = vadd.f32 %v1021, %v1662
  %1664 = vmatprep.mubr.f32.mxu0 0.0
  %1665 = vmatmul.mubr.f32.gmra.mrb[0].mxu0 %v1310
  %v1666 = vpop.f32.mrb[0].mxu0
  %v1667 = vadd.f32 %v1025, %v1666
  %v1668 = vpop.f32.mrb[0].mxu0
  %v1669 = vadd.f32 %v1027, %v1668
  %1670 = vmatprep.mubr.f32.mxu0 0.0
  %1671 = vmatmul.mubr.f32.gmra.mrb[0].mxu0 %v1313
  %v1672 = vpop.f32.mrb[0].mxu0
  %v1673 = vadd.f32 %v1031, %v1672
  %v1674 = vpop.f32.mrb[0].mxu0
  %v1675 = vadd.f32 %v1033, %v1674
  %1676 = vmatprep.mubr.f32.mxu0 0.0
  %1677 = vmatmul.mubr.f32.gmra.mrb[0].mxu0 %v1316
  %v1678 = vpop.f32.mrb[0].mxu0
  %v1679 = vadd.f32 %v1037, %v1678
  %v1680 = vpop.f32.mrb[0].mxu0
  %v1681 = vadd.f32 %v1039, %v1680
  %1682 = vmatprep.mubr.f32.mxu0 0.0
  %1683 = vmatmul.mubr.f32.gmra.mrb[0].mxu0 %v1319
  %v1684 = vpop.f32.mrb[0].mxu0
  %v1685 = vadd.f32 %v1043, %v1684
  %v1686 = vpop.f32.mrb[0].mxu0
  %v1687 = vadd.f32 %v1045, %v1686
  %1688 = vmatprep.mubr.f32.mxu0 0.0
  %1689 = vmatmul.mubr.f32.gmra.mrb[0].mxu0 %v1322
  %v1690 = vpop.f32.mrb[0].mxu0
  %v1691 = vadd.f32 %v1049, %v1690
  %v1692 = vpop.f32.mrb[0].mxu0
  %v1693 = vadd.f32 %v1051, %v1692
  %1694 = vmatprep.mubr.f32.mxu0 0.0
  %1695 = vmatmul.mubr.f32.gmra.mrb[0].mxu0 %v1325
  %v1696 = vpop.f32.mrb[0].mxu0
  %v1697 = vadd.f32 %v1055, %v1696
  %v1698 = vpop.f32.mrb[0].mxu0
  %v1699 = vadd.f32 %v1057, %v1698
  %1700 = vmatprep.mubr.f32.mxu0 0.0
  %1701 = vmatmul.mubr.f32.gmra.mrb[0].mxu0 %v1328
  %v1702 = vpop.f32.mrb[0].mxu0
  %v1703 = vadd.f32 %v1061, %v1702
  %v1704 = vpop.f32.mrb[0].mxu0
  %v1705 = vadd.f32 %v1063, %v1704
  %1706 = vmatprep.mubr.f32.mxu0 0.0
  %1707 = vmatmul.mubr.f32.gmra.mrb[0].mxu0 %v1331
  %v1708 = vpop.f32.mrb[0].mxu0
  %v1709 = vadd.f32 %v1067, %v1708
  %v1710 = vpop.f32.mrb[0].mxu0
  %v1711 = vadd.f32 %v1069, %v1710
  %1712 = vmatprep.mubr.f32.mxu0 0.0
  %1713 = vmatmul.mubr.f32.gmra.mrb[0].mxu0 %v1334
  %v1714 = vpop.f32.mrb[0].mxu0
  %v1715 = vadd.f32 %v1073, %v1714
  %v1716 = vpop.f32.mrb[0].mxu0
  %v1717 = vadd.f32 %v1075, %v1716
  %1718 = vmatprep.mubr.f32.mxu0 0.0
  %1719 = vmatmul.mubr.f32.gmra.mrb[0].mxu0 %v1337
  %v1720 = vpop.f32.mrb[0].mxu0
  %v1721 = vadd.f32 %v1079, %v1720
  %v1722 = vpop.f32.mrb[0].mxu0
  %v1723 = vadd.f32 %v1081, %v1722
  %1724 = vmatprep.mubr.f32.mxu0 0.0
  %1725 = vmatmul.mubr.f32.gmra.mrb[0].mxu0 %v1340
  %v1726 = vpop.f32.mrb[0].mxu0
  %v1727 = vadd.f32 %v1085, %v1726
  %v1728 = vpop.f32.mrb[0].mxu0
  %v1729 = vadd.f32 %v1087, %v1728
  %1730 = vmatprep.mubr.f32.mxu0 0.0
  %1731 = vmatmul.mubr.f32.gmra.mrb[0].mxu0 %v1343
  %v1732 = vpop.f32.mrb[0].mxu0
  %v1733 = vadd.f32 %v1091, %v1732
  %v1734 = vpop.f32.mrb[0].mxu0
  %v1735 = vadd.f32 %v1093, %v1734
  %1736 = vmatprep.mubr.f32.mxu0 0.0
  %1737 = vmatmul.mubr.f32.gmra.mrb[0].mxu0 %v1346
  %v1738 = vpop.f32.mrb[0].mxu0
  %v1739 = vadd.f32 %v1097, %v1738
  %v1740 = vpop.f32.mrb[0].mxu0
  %v1741 = vadd.f32 %v1099, %v1740
  %1742 = vmatprep.mubr.f32.mxu0 0.0
  %1743 = vmatmul.mubr.f32.gmra.mrb[0].mxu0 %v1349
  %v1744 = vpop.f32.mrb[0].mxu0
  %v1745 = vadd.f32 %v1103, %v1744
  %v1746 = vpop.f32.mrb[0].mxu0
  %v1747 = vadd.f32 %v1105, %v1746
  %1748 = vmatprep.mubr.f32.mxu0 0.0
  %1749 = vmatmul.mubr.f32.gmra.mrb[0].mxu0 %v1352
  %v1750 = vpop.f32.mrb[0].mxu0
  %v1751 = vadd.f32 %v1109, %v1750
  %v1752 = vpop.f32.mrb[0].mxu0
  %v1753 = vadd.f32 %v1111, %v1752
  %1754 = vmatprep.mubr.f32.mxu0 0.0
  %1755 = vmatmul.mubr.f32.gmra.mrb[0].mxu0 %v1355
  %v1756 = vpop.f32.mrb[0].mxu0
  %v1757 = vadd.f32 %v1115, %v1756
  %v1758 = vpop.f32.mrb[0].mxu0
  %v1759 = vadd.f32 %v1117, %v1758
  %1760 = vmatprep.mubr.f32.mxu0 0.0
  %1761 = vmatmul.mubr.f32.gmra.mrb[0].mxu0 %v1358
  %v1762 = vpop.f32.mrb[0].mxu0
  %v1763 = vadd.f32 %v1121, %v1762
  %v1764 = vpop.f32.mrb[0].mxu0
  %v1765 = vadd.f32 %v1123, %v1764
  %1766 = vmatprep.mubr.f32.mxu0 0.0
  %1767 = vmatmul.mubr.f32.gmra.mrb[0].mxu0 %v1361
  %v1768 = vpop.f32.mrb[0].mxu0
  %v1769 = vadd.f32 %v1127, %v1768
  %v1770 = vpop.f32.mrb[0].mxu0
  %v1771 = vadd.f32 %v1129, %v1770
  %1772 = vmatprep.mubr.f32.mxu0 0.0
  %1773 = vmatmul.mubr.f32.gmra.mrb[0].mxu0 %v1364
  %v1774 = vpop.f32.mrb[0].mxu0
  %v1775 = vadd.f32 %v1133, %v1774
  %v1776 = vpop.f32.mrb[0].mxu0
  %v1777 = vadd.f32 %v1135, %v1776
  %1778 = vmatprep.mubr.f32.mxu0 0.0
  %1779 = vmatmul.mubr.f32.gmra.mrb[0].mxu0 %v1367
  %v1780 = vpop.f32.mrb[0].mxu0
  %v1781 = vadd.f32 %v1139, %v1780
  %v1782 = vpop.f32.mrb[0].mxu0
  %v1783 = vadd.f32 %v1141, %v1782
  %1784 = vmatprep.mubr.f32.mxu0 0.0
  %1785 = vmatmul.mubr.f32.gmra.mrb[0].mxu0 %v1370
  %v1786 = vpop.f32.mrb[0].mxu0
  %v1787 = vadd.f32 %v1145, %v1786
  %v1788 = vpop.f32.mrb[0].mxu0
  %v1789 = vadd.f32 %v1147, %v1788
  %1790 = vmatprep.mubr.f32.mxu0 0.0
  %1791 = vmatmul.mubr.f32.gmra.mrb[0].mxu0 %v1373
  %v1792 = vpop.f32.mrb[0].mxu0
  %v1793 = vadd.f32 %v1151, %v1792
  %v1794 = vpop.f32.mrb[0].mxu0
  %v1795 = vadd.f32 %v1153, %v1794
  %1796 = vmatprep.mubr.f32.mxu0 0.0
  %1797 = vmatmul.mubr.f32.gmra.mrb[0].mxu0 %v1376
  %v1798 = vpop.f32.mrb[0].mxu0
  %v1799 = vadd.f32 %v1157, %v1798
  %v1800 = vpop.f32.mrb[0].mxu0
  %v1801 = vadd.f32 %v1159, %v1800
  %1802 = vmatprep.mubr.f32.mxu0 0.0
  %1803 = vmatmul.mubr.f32.gmra.mrb[0].mxu0 %v1379
  %v1804 = vpop.f32.mrb[0].mxu0
  %v1805 = vadd.f32 %v1163, %v1804
  %v1806 = vpop.f32.mrb[0].mxu0
  %v1807 = vadd.f32 %v1165, %v1806
  %1808 = vmatprep.mubr.f32.mxu0 0.0
  %1809 = vmatmul.mubr.f32.gmra.mrb[0].mxu0 %v1382
  %v1810 = vpop.f32.mrb[0].mxu0
  %v1811 = vadd.f32 %v1169, %v1810
  %v1812 = vpop.f32.mrb[0].mxu0
  %v1813 = vadd.f32 %v1171, %v1812
  %1814 = vmatprep.mubr.f32.mxu0 0.0
  %1815 = vmatmul.mubr.f32.gmra.mrb[0].mxu0 %v1385
  %v1816 = vpop.f32.mrb[0].mxu0
  %v1817 = vadd.f32 %v1175, %v1816
  %v1818 = vpop.f32.mrb[0].mxu0
  %v1819 = vadd.f32 %v1177, %v1818
  %1820 = vmatprep.mubr.f32.mxu0 0.0
  %1821 = vmatmul.mubr.f32.gmra.mrb[0].mxu0 %v1388
  %v1822 = vpop.f32.mrb[0].mxu0
  %v1823 = vadd.f32 %v1181, %v1822
  %v1824 = vpop.f32.mrb[0].mxu0
  %v1825 = vadd.f32 %v1183, %v1824
  %1826 = vmatprep.mubr.f32.mxu0 0.0
  %1827 = vmatmul.mubr.f32.gmra.mrb[0].mxu0 %v1391
  %v1828 = vpop.f32.mrb[0].mxu0
  %v1829 = vadd.f32 %v1187, %v1828
  %v1830 = vpop.f32.mrb[0].mxu0
  %v1831 = vadd.f32 %v1189, %v1830
  %1832 = vmatprep.mubr.f32.mxu0 0.0
  %1833 = vmatmul.mubr.f32.gmra.mrb[0].mxu0 %v1394
  %v1834 = vpop.f32.mrb[0].mxu0
  %v1835 = vadd.f32 %v1193, %v1834
  %v1836 = vpop.f32.mrb[0].mxu0
  %v1837 = vadd.f32 %v1195, %v1836
  %1838 = vmatprep.mubr.f32.mxu0 0.0
  %1839 = vmatmul.mubr.f32.gmra.mrb[0].mxu0 %v1397
  %v1840 = vpop.f32.mrb[0].mxu0
  %v1841 = vadd.f32 %v1199, %v1840
  %v1842 = vpop.f32.mrb[0].mxu0
  %v1843 = vadd.f32 %v1201, %v1842
  %1844 = vmatprep.mubr.f32.mxu0 0.0
  %1845 = vmatmul.mubr.f32.gmra.mrb[0].mxu0 %v1400
  %v1846 = vpop.f32.mrb[0].mxu0
  %v1847 = vadd.f32 %v1205, %v1846
  %v1848 = vpop.f32.mrb[0].mxu0
  %v1849 = vadd.f32 %v1207, %v1848
  %1850 = vdwg.mxu0
  %v1851 = vld [vmem:[%s4] sm:$0x3]
  %v1853 = vlaneseq
  %v1854 = vshrl.u32 %v1853, 7
  %v1855 = vsub.s32 0, %v1854
  %v1856 = vrot.slane %v1851, %v1855
  %v1857 = vlaneseq
  %v1858 = vshrl.u32 %v1857, 7
  %v1859 = vsub.s32 1, %v1858
  %v1860 = vrot.slane %v1851, %v1859
  %v1863 = vadd.f32 %v1469, %v1856
  %v1864 = vadd.f32 %v1471, %v1860
  %v1865 = vadd.f32 %v1475, %v1856
  %v1866 = vadd.f32 %v1477, %v1860
  %v1867 = vadd.f32 %v1481, %v1856
  %v1868 = vadd.f32 %v1483, %v1860
  %v1869 = vadd.f32 %v1487, %v1856
  %v1870 = vadd.f32 %v1489, %v1860
  %v1871 = vadd.f32 %v1493, %v1856
  %v1872 = vadd.f32 %v1495, %v1860
  %v1873 = vadd.f32 %v1499, %v1856
  %v1874 = vadd.f32 %v1501, %v1860
  %v1875 = vadd.f32 %v1505, %v1856
  %v1876 = vadd.f32 %v1507, %v1860
  %v1877 = vadd.f32 %v1511, %v1856
  %v1878 = vadd.f32 %v1513, %v1860
  %v1879 = vadd.f32 %v1517, %v1856
  %v1880 = vadd.f32 %v1519, %v1860
  %v1881 = vadd.f32 %v1523, %v1856
  %v1882 = vadd.f32 %v1525, %v1860
  %v1883 = vadd.f32 %v1529, %v1856
  %v1884 = vadd.f32 %v1531, %v1860
  %v1885 = vadd.f32 %v1535, %v1856
  %v1886 = vadd.f32 %v1537, %v1860
  %v1887 = vadd.f32 %v1541, %v1856
  %v1888 = vadd.f32 %v1543, %v1860
  %v1889 = vadd.f32 %v1547, %v1856
  %v1890 = vadd.f32 %v1549, %v1860
  %v1891 = vadd.f32 %v1553, %v1856
  %v1892 = vadd.f32 %v1555, %v1860
  %v1893 = vadd.f32 %v1559, %v1856
  %v1894 = vadd.f32 %v1561, %v1860
  %v1895 = vadd.f32 %v1565, %v1856
  %v1896 = vadd.f32 %v1567, %v1860
  %v1897 = vadd.f32 %v1571, %v1856
  %v1898 = vadd.f32 %v1573, %v1860
  %v1899 = vadd.f32 %v1577, %v1856
  %v1900 = vadd.f32 %v1579, %v1860
  %v1901 = vadd.f32 %v1583, %v1856
  %v1902 = vadd.f32 %v1585, %v1860
  %v1903 = vadd.f32 %v1589, %v1856
  %v1904 = vadd.f32 %v1591, %v1860
  %v1905 = vadd.f32 %v1595, %v1856
  %v1906 = vadd.f32 %v1597, %v1860
  %v1907 = vadd.f32 %v1601, %v1856
  %v1908 = vadd.f32 %v1603, %v1860
  %v1909 = vadd.f32 %v1607, %v1856
  %v1910 = vadd.f32 %v1609, %v1860
  %v1911 = vadd.f32 %v1613, %v1856
  %v1912 = vadd.f32 %v1615, %v1860
  %v1913 = vadd.f32 %v1619, %v1856
  %v1914 = vadd.f32 %v1621, %v1860
  %v1915 = vadd.f32 %v1625, %v1856
  %v1916 = vadd.f32 %v1627, %v1860
  %v1917 = vadd.f32 %v1631, %v1856
  %v1918 = vadd.f32 %v1633, %v1860
  %v1919 = vadd.f32 %v1637, %v1856
  %v1920 = vadd.f32 %v1639, %v1860
  %v1921 = vadd.f32 %v1643, %v1856
  %v1922 = vadd.f32 %v1645, %v1860
  %v1923 = vadd.f32 %v1649, %v1856
  %v1924 = vadd.f32 %v1651, %v1860
  %v1925 = vadd.f32 %v1655, %v1856
  %v1926 = vadd.f32 %v1657, %v1860
  %v1927 = vadd.f32 %v1661, %v1856
  %v1928 = vadd.f32 %v1663, %v1860
  %v1929 = vadd.f32 %v1667, %v1856
  %v1930 = vadd.f32 %v1669, %v1860
  %v1931 = vadd.f32 %v1673, %v1856
  %v1932 = vadd.f32 %v1675, %v1860
  %v1933 = vadd.f32 %v1679, %v1856
  %v1934 = vadd.f32 %v1681, %v1860
  %v1935 = vadd.f32 %v1685, %v1856
  %v1936 = vadd.f32 %v1687, %v1860
  %v1937 = vadd.f32 %v1691, %v1856
  %v1938 = vadd.f32 %v1693, %v1860
  %v1939 = vadd.f32 %v1697, %v1856
  %v1940 = vadd.f32 %v1699, %v1860
  %v1941 = vadd.f32 %v1703, %v1856
  %v1942 = vadd.f32 %v1705, %v1860
  %v1943 = vadd.f32 %v1709, %v1856
  %v1944 = vadd.f32 %v1711, %v1860
  %v1945 = vadd.f32 %v1715, %v1856
  %v1946 = vadd.f32 %v1717, %v1860
  %v1947 = vadd.f32 %v1721, %v1856
  %v1948 = vadd.f32 %v1723, %v1860
  %v1949 = vadd.f32 %v1727, %v1856
  %v1950 = vadd.f32 %v1729, %v1860
  %v1951 = vadd.f32 %v1733, %v1856
  %v1952 = vadd.f32 %v1735, %v1860
  %v1953 = vadd.f32 %v1739, %v1856
  %v1954 = vadd.f32 %v1741, %v1860
  %v1955 = vadd.f32 %v1745, %v1856
  %v1956 = vadd.f32 %v1747, %v1860
  %v1957 = vadd.f32 %v1751, %v1856
  %v1958 = vadd.f32 %v1753, %v1860
  %v1959 = vadd.f32 %v1757, %v1856
  %v1960 = vadd.f32 %v1759, %v1860
  %v1961 = vadd.f32 %v1763, %v1856
  %v1962 = vadd.f32 %v1765, %v1860
  %v1963 = vadd.f32 %v1769, %v1856
  %v1964 = vadd.f32 %v1771, %v1860
  %v1965 = vadd.f32 %v1775, %v1856
  %v1966 = vadd.f32 %v1777, %v1860
  %v1967 = vadd.f32 %v1781, %v1856
  %v1968 = vadd.f32 %v1783, %v1860
  %v1969 = vadd.f32 %v1787, %v1856
  %v1970 = vadd.f32 %v1789, %v1860
  %v1971 = vadd.f32 %v1793, %v1856
  %v1972 = vadd.f32 %v1795, %v1860
  %v1973 = vadd.f32 %v1799, %v1856
  %v1974 = vadd.f32 %v1801, %v1860
  %v1975 = vadd.f32 %v1805, %v1856
  %v1976 = vadd.f32 %v1807, %v1860
  %v1977 = vadd.f32 %v1811, %v1856
  %v1978 = vadd.f32 %v1813, %v1860
  %v1979 = vadd.f32 %v1817, %v1856
  %v1980 = vadd.f32 %v1819, %v1860
  %v1981 = vadd.f32 %v1823, %v1856
  %v1982 = vadd.f32 %v1825, %v1860
  %v1983 = vadd.f32 %v1829, %v1856
  %v1984 = vadd.f32 %v1831, %v1860
  %v1985 = vadd.f32 %v1835, %v1856
  %v1986 = vadd.f32 %v1837, %v1860
  %v1987 = vadd.f32 %v1841, %v1856
  %v1988 = vadd.f32 %v1843, %v1860
  %v1989 = vadd.f32 %v1847, %v1856
  %v1990 = vadd.f32 %v1849, %v1860
  %v1991 = vmax.f32 %v1863, 0.0
  %v1992 = vmax.f32 %v1864, 0.0
  %v1993 = vmax.f32 %v1865, 0.0
  %v1994 = vmax.f32 %v1866, 0.0
  %v1995 = vmax.f32 %v1867, 0.0
  %v1996 = vmax.f32 %v1868, 0.0
  %v1997 = vmax.f32 %v1869, 0.0
  %v1998 = vmax.f32 %v1870, 0.0
  %v1999 = vmax.f32 %v1871, 0.0
  %v2000 = vmax.f32 %v1872, 0.0
  %v2001 = vmax.f32 %v1873, 0.0
  %v2002 = vmax.f32 %v1874, 0.0
  %v2003 = vmax.f32 %v1875, 0.0
  %v2004 = vmax.f32 %v1876, 0.0
  %v2005 = vmax.f32 %v1877, 0.0
  %v2006 = vmax.f32 %v1878, 0.0
  %v2007 = vmax.f32 %v1879, 0.0
  %v2008 = vmax.f32 %v1880, 0.0
  %v2009 = vmax.f32 %v1881, 0.0
  %v2010 = vmax.f32 %v1882, 0.0
  %v2011 = vmax.f32 %v1883, 0.0
  %v2012 = vmax.f32 %v1884, 0.0
  %v2013 = vmax.f32 %v1885, 0.0
  %v2014 = vmax.f32 %v1886, 0.0
  %v2015 = vmax.f32 %v1887, 0.0
  %v2016 = vmax.f32 %v1888, 0.0
  %v2017 = vmax.f32 %v1889, 0.0
  %v2018 = vmax.f32 %v1890, 0.0
  %v2019 = vmax.f32 %v1891, 0.0
  %v2020 = vmax.f32 %v1892, 0.0
  %v2021 = vmax.f32 %v1893, 0.0
  %v2022 = vmax.f32 %v1894, 0.0
  %v2023 = vmax.f32 %v1895, 0.0
  %v2024 = vmax.f32 %v1896, 0.0
  %v2025 = vmax.f32 %v1897, 0.0
  %v2026 = vmax.f32 %v1898, 0.0
  %v2027 = vmax.f32 %v1899, 0.0
  %v2028 = vmax.f32 %v1900, 0.0
  %v2029 = vmax.f32 %v1901, 0.0
  %v2030 = vmax.f32 %v1902, 0.0
  %v2031 = vmax.f32 %v1903, 0.0
  %v2032 = vmax.f32 %v1904, 0.0
  %v2033 = vmax.f32 %v1905, 0.0
  %v2034 = vmax.f32 %v1906, 0.0
  %v2035 = vmax.f32 %v1907, 0.0
  %v2036 = vmax.f32 %v1908, 0.0
  %v2037 = vmax.f32 %v1909, 0.0
  %v2038 = vmax.f32 %v1910, 0.0
  %v2039 = vmax.f32 %v1911, 0.0
  %v2040 = vmax.f32 %v1912, 0.0
  %v2041 = vmax.f32 %v1913, 0.0
  %v2042 = vmax.f32 %v1914, 0.0
  %v2043 = vmax.f32 %v1915, 0.0
  %v2044 = vmax.f32 %v1916, 0.0
  %v2045 = vmax.f32 %v1917, 0.0
  %v2046 = vmax.f32 %v1918, 0.0
  %v2047 = vmax.f32 %v1919, 0.0
  %v2048 = vmax.f32 %v1920, 0.0
  %v2049 = vmax.f32 %v1921, 0.0
  %v2050 = vmax.f32 %v1922, 0.0
  %v2051 = vmax.f32 %v1923, 0.0
  %v2052 = vmax.f32 %v1924, 0.0
  %v2053 = vmax.f32 %v1925, 0.0
  %v2054 = vmax.f32 %v1926, 0.0
  %v2055 = vmax.f32 %v1927, 0.0
  %v2056 = vmax.f32 %v1928, 0.0
  %v2057 = vmax.f32 %v1929, 0.0
  %v2058 = vmax.f32 %v1930, 0.0
  %v2059 = vmax.f32 %v1931, 0.0
  %v2060 = vmax.f32 %v1932, 0.0
  %v2061 = vmax.f32 %v1933, 0.0
  %v2062 = vmax.f32 %v1934, 0.0
  %v2063 = vmax.f32 %v1935, 0.0
  %v2064 = vmax.f32 %v1936, 0.0
  %v2065 = vmax.f32 %v1937, 0.0
  %v2066 = vmax.f32 %v1938, 0.0
  %v2067 = vmax.f32 %v1939, 0.0
  %v2068 = vmax.f32 %v1940, 0.0
  %v2069 = vmax.f32 %v1941, 0.0
  %v2070 = vmax.f32 %v1942, 0.0
  %v2071 = vmax.f32 %v1943, 0.0
  %v2072 = vmax.f32 %v1944, 0.0
  %v2073 = vmax.f32 %v1945, 0.0
  %v2074 = vmax.f32 %v1946, 0.0
  %v2075 = vmax.f32 %v1947, 0.0
  %v2076 = vmax.f32 %v1948, 0.0
  %v2077 = vmax.f32 %v1949, 0.0
  %v2078 = vmax.f32 %v1950, 0.0
  %v2079 = vmax.f32 %v1951, 0.0
  %v2080 = vmax.f32 %v1952, 0.0
  %v2081 = vmax.f32 %v1953, 0.0
  %v2082 = vmax.f32 %v1954, 0.0
  %v2083 = vmax.f32 %v1955, 0.0
  %v2084 = vmax.f32 %v1956, 0.0
  %v2085 = vmax.f32 %v1957, 0.0
  %v2086 = vmax.f32 %v1958, 0.0
  %v2087 = vmax.f32 %v1959, 0.0
  %v2088 = vmax.f32 %v1960, 0.0
  %v2089 = vmax.f32 %v1961, 0.0
  %v2090 = vmax.f32 %v1962, 0.0
  %v2091 = vmax.f32 %v1963, 0.0
  %v2092 = vmax.f32 %v1964, 0.0
  %v2093 = vmax.f32 %v1965, 0.0
  %v2094 = vmax.f32 %v1966, 0.0
  %v2095 = vmax.f32 %v1967, 0.0
  %v2096 = vmax.f32 %v1968, 0.0
  %v2097 = vmax.f32 %v1969, 0.0
  %v2098 = vmax.f32 %v1970, 0.0
  %v2099 = vmax.f32 %v1971, 0.0
  %v2100 = vmax.f32 %v1972, 0.0
  %v2101 = vmax.f32 %v1973, 0.0
  %v2102 = vmax.f32 %v1974, 0.0
  %v2103 = vmax.f32 %v1975, 0.0
  %v2104 = vmax.f32 %v1976, 0.0
  %v2105 = vmax.f32 %v1977, 0.0
  %v2106 = vmax.f32 %v1978, 0.0
  %v2107 = vmax.f32 %v1979, 0.0
  %v2108 = vmax.f32 %v1980, 0.0
  %v2109 = vmax.f32 %v1981, 0.0
  %v2110 = vmax.f32 %v1982, 0.0
  %v2111 = vmax.f32 %v1983, 0.0
  %v2112 = vmax.f32 %v1984, 0.0
  %v2113 = vmax.f32 %v1985, 0.0
  %v2114 = vmax.f32 %v1986, 0.0
  %v2115 = vmax.f32 %v1987, 0.0
  %v2116 = vmax.f32 %v1988, 0.0
  %v2117 = vmax.f32 %v1989, 0.0
  %v2118 = vmax.f32 %v1990, 0.0
  %v2119 = vld [vmem:[%s5] sm:$0xff]
  %v2120 = vld [vmem:[%s5 + $0x8] sm:$0xff]
  %v2121 = vld [vmem:[%s5 + $0x10] sm:$0xff]
  %v2122 = vld [vmem:[%s5 + $0x18] sm:$0xff]
  %v2123 = vld [vmem:[%s5 + $0x20] sm:$0xff]
  %v2124 = vld [vmem:[%s5 + $0x28] sm:$0xff]
  %v2125 = vld [vmem:[%s5 + $0x30] sm:$0xff]
  %v2126 = vld [vmem:[%s5 + $0x38] sm:$0xff]
  %v2127 = vld [vmem:[%s5 + $0x40] sm:$0xff]
  %v2128 = vld [vmem:[%s5 + $0x48] sm:$0xff]
  %v2129 = vld [vmem:[%s5 + $0x50] sm:$0xff]
  %v2130 = vld [vmem:[%s5 + $0x58] sm:$0xff]
  %v2131 = vld [vmem:[%s5 + $0x60] sm:$0xff]
  %v2132 = vld [vmem:[%s5 + $0x68] sm:$0xff]
  %v2133 = vld [vmem:[%s5 + $0x70] sm:$0xff]
  %v2134 = vld [vmem:[%s5 + $0x78] sm:$0xff]
  %v2135 = vld [vmem:[%s5 + $0x80] sm:$0xff]
  %v2136 = vld [vmem:[%s5 + $0x88] sm:$0xff]
  %v2137 = vld [vmem:[%s5 + $0x90] sm:$0xff]
  %v2138 = vld [vmem:[%s5 + $0x98] sm:$0xff]
  %v2139 = vld [vmem:[%s5 + $0xa0] sm:$0xff]
  %v2140 = vld [vmem:[%s5 + $0xa8] sm:$0xff]
  %v2141 = vld [vmem:[%s5 + $0xb0] sm:$0xff]
  %v2142 = vld [vmem:[%s5 + $0xb8] sm:$0xff]
  %v2143 = vld [vmem:[%s5 + $0xc0] sm:$0xff]
  %v2144 = vld [vmem:[%s5 + $0xc8] sm:$0xff]
  %v2145 = vld [vmem:[%s5 + $0xd0] sm:$0xff]
  %v2146 = vld [vmem:[%s5 + $0xd8] sm:$0xff]
  %v2147 = vld [vmem:[%s5 + $0xe0] sm:$0xff]
  %v2148 = vld [vmem:[%s5 + $0xe8] sm:$0xff]
  %v2149 = vld [vmem:[%s5 + $0xf0] sm:$0xff]
  %v2150 = vld [vmem:[%s5 + $0xf8] sm:$0xff]
  %v2151 = vld [vmem:[%s5 + $0x100] sm:$0xff]
  %v2152 = vld [vmem:[%s5 + $0x108] sm:$0xff]
  %v2153 = vld [vmem:[%s5 + $0x110] sm:$0xff]
  %v2154 = vld [vmem:[%s5 + $0x118] sm:$0xff]
  %v2155 = vld [vmem:[%s5 + $0x120] sm:$0xff]
  %v2156 = vld [vmem:[%s5 + $0x128] sm:$0xff]
  %v2157 = vld [vmem:[%s5 + $0x130] sm:$0xff]
  %v2158 = vld [vmem:[%s5 + $0x138] sm:$0xff]
  %v2159 = vld [vmem:[%s5 + $0x140] sm:$0xff]
  %v2160 = vld [vmem:[%s5 + $0x148] sm:$0xff]
  %v2161 = vld [vmem:[%s5 + $0x150] sm:$0xff]
  %v2162 = vld [vmem:[%s5 + $0x158] sm:$0xff]
  %v2163 = vld [vmem:[%s5 + $0x160] sm:$0xff]
  %v2164 = vld [vmem:[%s5 + $0x168] sm:$0xff]
  %v2165 = vld [vmem:[%s5 + $0x170] sm:$0xff]
  %v2166 = vld [vmem:[%s5 + $0x178] sm:$0xff]
  %v2167 = vld [vmem:[%s5 + $0x180] sm:$0xff]
  %v2168 = vld [vmem:[%s5 + $0x188] sm:$0xff]
  %v2169 = vld [vmem:[%s5 + $0x190] sm:$0xff]
  %v2170 = vld [vmem:[%s5 + $0x198] sm:$0xff]
  %v2171 = vld [vmem:[%s5 + $0x1a0] sm:$0xff]
  %v2172 = vld [vmem:[%s5 + $0x1a8] sm:$0xff]
  %v2173 = vld [vmem:[%s5 + $0x1b0] sm:$0xff]
  %v2174 = vld [vmem:[%s5 + $0x1b8] sm:$0xff]
  %v2175 = vld [vmem:[%s5 + $0x1c0] sm:$0xff]
  %v2176 = vld [vmem:[%s5 + $0x1c8] sm:$0xff]
  %v2177 = vld [vmem:[%s5 + $0x1d0] sm:$0xff]
  %v2178 = vld [vmem:[%s5 + $0x1d8] sm:$0xff]
  %v2179 = vld [vmem:[%s5 + $0x1e0] sm:$0xff]
  %v2180 = vld [vmem:[%s5 + $0x1e8] sm:$0xff]
  %v2181 = vld [vmem:[%s5 + $0x1f0] sm:$0xff]
  %v2182 = vld [vmem:[%s5 + $0x1f8] sm:$0xff]
  %v2183 = vld [vmem:[%s5 + $0x200] sm:$0xff]
  %v2184 = vld [vmem:[%s5 + $0x208] sm:$0xff]
  %v2185 = vld [vmem:[%s5 + $0x210] sm:$0xff]
  %v2186 = vld [vmem:[%s5 + $0x218] sm:$0xff]
  %v2187 = vld [vmem:[%s5 + $0x220] sm:$0xff]
  %v2188 = vld [vmem:[%s5 + $0x228] sm:$0xff]
  %v2189 = vld [vmem:[%s5 + $0x230] sm:$0xff]
  %v2190 = vld [vmem:[%s5 + $0x238] sm:$0xff]
  %v2191 = vld [vmem:[%s5 + $0x240] sm:$0xff]
  %v2192 = vld [vmem:[%s5 + $0x248] sm:$0xff]
  %v2193 = vld [vmem:[%s5 + $0x250] sm:$0xff]
  %v2194 = vld [vmem:[%s5 + $0x258] sm:$0xff]
  %v2195 = vld [vmem:[%s5 + $0x260] sm:$0xff]
  %v2196 = vld [vmem:[%s5 + $0x268] sm:$0xff]
  %v2197 = vld [vmem:[%s5 + $0x270] sm:$0xff]
  %v2198 = vld [vmem:[%s5 + $0x278] sm:$0xff]
  %v2199 = vld [vmem:[%s5 + $0x280] sm:$0xff]
  %v2200 = vld [vmem:[%s5 + $0x288] sm:$0xff]
  %v2201 = vld [vmem:[%s5 + $0x290] sm:$0xff]
  %v2202 = vld [vmem:[%s5 + $0x298] sm:$0xff]
  %v2203 = vld [vmem:[%s5 + $0x2a0] sm:$0xff]
  %v2204 = vld [vmem:[%s5 + $0x2a8] sm:$0xff]
  %v2205 = vld [vmem:[%s5 + $0x2b0] sm:$0xff]
  %v2206 = vld [vmem:[%s5 + $0x2b8] sm:$0xff]
  %v2207 = vld [vmem:[%s5 + $0x2c0] sm:$0xff]
  %v2208 = vld [vmem:[%s5 + $0x2c8] sm:$0xff]
  %v2209 = vld [vmem:[%s5 + $0x2d0] sm:$0xff]
  %v2210 = vld [vmem:[%s5 + $0x2d8] sm:$0xff]
  %v2211 = vld [vmem:[%s5 + $0x2e0] sm:$0xff]
  %v2212 = vld [vmem:[%s5 + $0x2e8] sm:$0xff]
  %v2213 = vld [vmem:[%s5 + $0x2f0] sm:$0xff]
  %v2214 = vld [vmem:[%s5 + $0x2f8] sm:$0xff]
  %v2215 = vld [vmem:[%s5 + $0x300] sm:$0xff]
  %v2216 = vld [vmem:[%s5 + $0x308] sm:$0xff]
  %v2217 = vld [vmem:[%s5 + $0x310] sm:$0xff]
  %v2218 = vld [vmem:[%s5 + $0x318] sm:$0xff]
  %v2219 = vld [vmem:[%s5 + $0x320] sm:$0xff]
  %v2220 = vld [vmem:[%s5 + $0x328] sm:$0xff]
  %v2221 = vld [vmem:[%s5 + $0x330] sm:$0xff]
  %v2222 = vld [vmem:[%s5 + $0x338] sm:$0xff]
  %v2223 = vld [vmem:[%s5 + $0x340] sm:$0xff]
  %v2224 = vld [vmem:[%s5 + $0x348] sm:$0xff]
  %v2225 = vld [vmem:[%s5 + $0x350] sm:$0xff]
  %v2226 = vld [vmem:[%s5 + $0x358] sm:$0xff]
  %v2227 = vld [vmem:[%s5 + $0x360] sm:$0xff]
  %v2228 = vld [vmem:[%s5 + $0x368] sm:$0xff]
  %v2229 = vld [vmem:[%s5 + $0x370] sm:$0xff]
  %v2230 = vld [vmem:[%s5 + $0x378] sm:$0xff]
  %v2231 = vld [vmem:[%s5 + $0x380] sm:$0xff]
  %v2232 = vld [vmem:[%s5 + $0x388] sm:$0xff]
  %v2233 = vld [vmem:[%s5 + $0x390] sm:$0xff]
  %v2234 = vld [vmem:[%s5 + $0x398] sm:$0xff]
  %v2235 = vld [vmem:[%s5 + $0x3a0] sm:$0xff]
  %v2236 = vld [vmem:[%s5 + $0x3a8] sm:$0xff]
  %v2237 = vld [vmem:[%s5 + $0x3b0] sm:$0xff]
  %v2238 = vld [vmem:[%s5 + $0x3b8] sm:$0xff]
  %v2239 = vld [vmem:[%s5 + $0x3c0] sm:$0xff]
  %v2240 = vld [vmem:[%s5 + $0x3c8] sm:$0xff]
  %v2241 = vld [vmem:[%s5 + $0x3d0] sm:$0xff]
  %v2242 = vld [vmem:[%s5 + $0x3d8] sm:$0xff]
  %v2243 = vld [vmem:[%s5 + $0x3e0] sm:$0xff]
  %v2244 = vld [vmem:[%s5 + $0x3e8] sm:$0xff]
  %v2245 = vld [vmem:[%s5 + $0x3f0] sm:$0xff]
  %v2246 = vld [vmem:[%s5 + $0x3f8] sm:$0xff]
  %v2247 = vld [vmem:[%s5 + $0x400] sm:$0xff]
  %v2248 = vld [vmem:[%s5 + $0x408] sm:$0xff]
  %v2249 = vld [vmem:[%s5 + $0x410] sm:$0xff]
  %v2250 = vld [vmem:[%s5 + $0x418] sm:$0xff]
  %v2251 = vld [vmem:[%s5 + $0x420] sm:$0xff]
  %v2252 = vld [vmem:[%s5 + $0x428] sm:$0xff]
  %v2253 = vld [vmem:[%s5 + $0x430] sm:$0xff]
  %v2254 = vld [vmem:[%s5 + $0x438] sm:$0xff]
  %v2255 = vld [vmem:[%s5 + $0x440] sm:$0xff]
  %v2256 = vld [vmem:[%s5 + $0x448] sm:$0xff]
  %v2257 = vld [vmem:[%s5 + $0x450] sm:$0xff]
  %v2258 = vld [vmem:[%s5 + $0x458] sm:$0xff]
  %v2259 = vld [vmem:[%s5 + $0x460] sm:$0xff]
  %v2260 = vld [vmem:[%s5 + $0x468] sm:$0xff]
  %v2261 = vld [vmem:[%s5 + $0x470] sm:$0xff]
  %v2262 = vld [vmem:[%s5 + $0x478] sm:$0xff]
  %v2263 = vld [vmem:[%s5 + $0x480] sm:$0xff]
  %v2264 = vld [vmem:[%s5 + $0x488] sm:$0xff]
  %v2265 = vld [vmem:[%s5 + $0x490] sm:$0xff]
  %v2266 = vld [vmem:[%s5 + $0x498] sm:$0xff]
  %v2267 = vld [vmem:[%s5 + $0x4a0] sm:$0xff]
  %v2268 = vld [vmem:[%s5 + $0x4a8] sm:$0xff]
  %v2269 = vld [vmem:[%s5 + $0x4b0] sm:$0xff]
  %v2270 = vld [vmem:[%s5 + $0x4b8] sm:$0xff]
  %v2271 = vld [vmem:[%s5 + $0x4c0] sm:$0xff]
  %v2272 = vld [vmem:[%s5 + $0x4c8] sm:$0xff]
  %v2273 = vld [vmem:[%s5 + $0x4d0] sm:$0xff]
  %v2274 = vld [vmem:[%s5 + $0x4d8] sm:$0xff]
  %v2275 = vld [vmem:[%s5 + $0x4e0] sm:$0xff]
  %v2276 = vld [vmem:[%s5 + $0x4e8] sm:$0xff]
  %v2277 = vld [vmem:[%s5 + $0x4f0] sm:$0xff]
  %v2278 = vld [vmem:[%s5 + $0x4f8] sm:$0xff]
  %v2279 = vld [vmem:[%s5 + $0x500] sm:$0xff]
  %v2280 = vld [vmem:[%s5 + $0x508] sm:$0xff]
  %v2281 = vld [vmem:[%s5 + $0x510] sm:$0xff]
  %v2282 = vld [vmem:[%s5 + $0x518] sm:$0xff]
  %v2283 = vld [vmem:[%s5 + $0x520] sm:$0xff]
  %v2284 = vld [vmem:[%s5 + $0x528] sm:$0xff]
  %v2285 = vld [vmem:[%s5 + $0x530] sm:$0xff]
  %v2286 = vld [vmem:[%s5 + $0x538] sm:$0xff]
  %v2287 = vld [vmem:[%s5 + $0x540] sm:$0xff]
  %v2288 = vld [vmem:[%s5 + $0x548] sm:$0xff]
  %v2289 = vld [vmem:[%s5 + $0x550] sm:$0xff]
  %v2290 = vld [vmem:[%s5 + $0x558] sm:$0xff]
  %v2291 = vld [vmem:[%s5 + $0x560] sm:$0xff]
  %v2292 = vld [vmem:[%s5 + $0x568] sm:$0xff]
  %v2293 = vld [vmem:[%s5 + $0x570] sm:$0xff]
  %v2294 = vld [vmem:[%s5 + $0x578] sm:$0xff]
  %v2295 = vld [vmem:[%s5 + $0x580] sm:$0xff]
  %v2296 = vld [vmem:[%s5 + $0x588] sm:$0xff]
  %v2297 = vld [vmem:[%s5 + $0x590] sm:$0xff]
  %v2298 = vld [vmem:[%s5 + $0x598] sm:$0xff]
  %v2299 = vld [vmem:[%s5 + $0x5a0] sm:$0xff]
  %v2300 = vld [vmem:[%s5 + $0x5a8] sm:$0xff]
  %v2301 = vld [vmem:[%s5 + $0x5b0] sm:$0xff]
  %v2302 = vld [vmem:[%s5 + $0x5b8] sm:$0xff]
  %v2303 = vld [vmem:[%s5 + $0x5c0] sm:$0xff]
  %v2304 = vld [vmem:[%s5 + $0x5c8] sm:$0xff]
  %v2305 = vld [vmem:[%s5 + $0x5d0] sm:$0xff]
  %v2306 = vld [vmem:[%s5 + $0x5d8] sm:$0xff]
  %v2307 = vld [vmem:[%s5 + $0x5e0] sm:$0xff]
  %v2308 = vld [vmem:[%s5 + $0x5e8] sm:$0xff]
  %v2309 = vld [vmem:[%s5 + $0x5f0] sm:$0xff]
  %v2310 = vld [vmem:[%s5 + $0x5f8] sm:$0xff]
  %v2311 = vld [vmem:[%s5 + $0x600] sm:$0xff]
  %v2312 = vld [vmem:[%s5 + $0x608] sm:$0xff]
  %v2313 = vld [vmem:[%s5 + $0x610] sm:$0xff]
  %v2314 = vld [vmem:[%s5 + $0x618] sm:$0xff]
  %v2315 = vld [vmem:[%s5 + $0x620] sm:$0xff]
  %v2316 = vld [vmem:[%s5 + $0x628] sm:$0xff]
  %v2317 = vld [vmem:[%s5 + $0x630] sm:$0xff]
  %v2318 = vld [vmem:[%s5 + $0x638] sm:$0xff]
  %v2319 = vld [vmem:[%s5 + $0x640] sm:$0xff]
  %v2320 = vld [vmem:[%s5 + $0x648] sm:$0xff]
  %v2321 = vld [vmem:[%s5 + $0x650] sm:$0xff]
  %v2322 = vld [vmem:[%s5 + $0x658] sm:$0xff]
  %v2323 = vld [vmem:[%s5 + $0x660] sm:$0xff]
  %v2324 = vld [vmem:[%s5 + $0x668] sm:$0xff]
  %v2325 = vld [vmem:[%s5 + $0x670] sm:$0xff]
  %v2326 = vld [vmem:[%s5 + $0x678] sm:$0xff]
  %v2327 = vld [vmem:[%s5 + $0x680] sm:$0xff]
  %v2328 = vld [vmem:[%s5 + $0x688] sm:$0xff]
  %v2329 = vld [vmem:[%s5 + $0x690] sm:$0xff]
  %v2330 = vld [vmem:[%s5 + $0x698] sm:$0xff]
  %v2331 = vld [vmem:[%s5 + $0x6a0] sm:$0xff]
  %v2332 = vld [vmem:[%s5 + $0x6a8] sm:$0xff]
  %v2333 = vld [vmem:[%s5 + $0x6b0] sm:$0xff]
  %v2334 = vld [vmem:[%s5 + $0x6b8] sm:$0xff]
  %v2335 = vld [vmem:[%s5 + $0x6c0] sm:$0xff]
  %v2336 = vld [vmem:[%s5 + $0x6c8] sm:$0xff]
  %v2337 = vld [vmem:[%s5 + $0x6d0] sm:$0xff]
  %v2338 = vld [vmem:[%s5 + $0x6d8] sm:$0xff]
  %v2339 = vld [vmem:[%s5 + $0x6e0] sm:$0xff]
  %v2340 = vld [vmem:[%s5 + $0x6e8] sm:$0xff]
  %v2341 = vld [vmem:[%s5 + $0x6f0] sm:$0xff]
  %v2342 = vld [vmem:[%s5 + $0x6f8] sm:$0xff]
  %v2343 = vld [vmem:[%s6] sm:$0x7f]
  %v2345 = vlaneseq
  %v2346 = vshrl.u32 %v2345, 7
  %v2347 = vsub.s32 0, %v2346
  %v2348 = vrot.slane %v2343, %v2347
  %v2349 = vlaneseq
  %v2350 = vshrl.u32 %v2349, 7
  %v2351 = vsub.s32 1, %v2350
  %v2352 = vrot.slane %v2343, %v2351
  %v2353 = vlaneseq
  %v2354 = vshrl.u32 %v2353, 7
  %v2355 = vsub.s32 2, %v2354
  %v2356 = vrot.slane %v2343, %v2355
  %v2357 = vlaneseq
  %v2358 = vshrl.u32 %v2357, 7
  %v2359 = vsub.s32 3, %v2358
  %v2360 = vrot.slane %v2343, %v2359
  %v2361 = vlaneseq
  %v2362 = vshrl.u32 %v2361, 7
  %v2363 = vsub.s32 4, %v2362
  %v2364 = vrot.slane %v2343, %v2363
  %v2365 = vlaneseq
  %v2366 = vshrl.u32 %v2365, 7
  %v2367 = vsub.s32 5, %v2366
  %v2368 = vrot.slane %v2343, %v2367
  %v2369 = vlaneseq
  %v2370 = vshrl.u32 %v2369, 7
  %v2371 = vsub.s32 6, %v2370
  %v2372 = vrot.slane %v2343, %v2371
  %2380 = vmatprep.subr.mxu0 %v2120
  %2381 = vmatpush1.msra.mxu0 %v2119
  %2382 = vmatprep.subr.mxu0 %v2127
  %2383 = vmatpush1.msra.mxu0 %v2126
  %2384 = vmatprep.subr.mxu0 %v2134
  %2385 = vmatpush1.msra.mxu0 %v2133
  %2386 = vmatprep.subr.mxu0 %v2141
  %2387 = vmatpush1.msra.mxu0 %v2140
  %2388 = vmatprep.subr.mxu0 %v2148
  %2389 = vmatpush1.msra.mxu0 %v2147
  %2390 = vmatprep.subr.mxu0 %v2155
  %2391 = vmatpush1.msra.mxu0 %v2154
  %2392 = vmatprep.subr.mxu0 %v2162
  %2393 = vmatpush1.msra.mxu0 %v2161
  %2394 = vmatprep.subr.mxu0 %v2169
  %2395 = vmatpush1.msra.mxu0 %v2168
  %2396 = vmatprep.subr.mxu0 %v2176
  %2397 = vmatpush1.msra.mxu0 %v2175
  %2398 = vmatprep.subr.mxu0 %v2183
  %2399 = vmatpush1.msra.mxu0 %v2182
  %2400 = vmatprep.subr.mxu0 %v2190
  %2401 = vmatpush1.msra.mxu0 %v2189
  %2402 = vmatprep.subr.mxu0 %v2197
  %2403 = vmatpush1.msra.mxu0 %v2196
  %2404 = vmatprep.subr.mxu0 %v2204
  %2405 = vmatpush1.msra.mxu0 %v2203
  %2406 = vmatprep.subr.mxu0 %v2211
  %2407 = vmatpush1.msra.mxu0 %v2210
  %2408 = vmatprep.subr.mxu0 %v2218
  %2409 = vmatpush1.msra.mxu0 %v2217
  %2410 = vmatprep.subr.mxu0 %v2225
  %2411 = vmatpush1.msra.mxu0 %v2224
  %2412 = vmatprep.subr.mxu0 %v2232
  %2413 = vmatpush1.msra.mxu0 %v2231
  %2414 = vmatprep.subr.mxu0 %v2239
  %2415 = vmatpush1.msra.mxu0 %v2238
  %2416 = vmatprep.subr.mxu0 %v2246
  %2417 = vmatpush1.msra.mxu0 %v2245
  %2418 = vmatprep.subr.mxu0 %v2253
  %2419 = vmatpush1.msra.mxu0 %v2252
  %2420 = vmatprep.subr.mxu0 %v2260
  %2421 = vmatpush1.msra.mxu0 %v2259
  %2422 = vmatprep.subr.mxu0 %v2267
  %2423 = vmatpush1.msra.mxu0 %v2266
  %2424 = vmatprep.subr.mxu0 %v2274
  %2425 = vmatpush1.msra.mxu0 %v2273
  %2426 = vmatprep.subr.mxu0 %v2281
  %2427 = vmatpush1.msra.mxu0 %v2280
  %2428 = vmatprep.subr.mxu0 %v2288
  %2429 = vmatpush1.msra.mxu0 %v2287
  %2430 = vmatprep.subr.mxu0 %v2295
  %2431 = vmatpush1.msra.mxu0 %v2294
  %2432 = vmatprep.subr.mxu0 %v2302
  %2433 = vmatpush1.msra.mxu0 %v2301
  %2434 = vmatprep.subr.mxu0 %v2309
  %2435 = vmatpush1.msra.mxu0 %v2308
  %2436 = vmatprep.subr.mxu0 %v2316
  %2437 = vmatpush1.msra.mxu0 %v2315
  %2438 = vmatprep.subr.mxu0 %v2323
  %2439 = vmatpush1.msra.mxu0 %v2322
  %2440 = vmatprep.subr.mxu0 %v2330
  %2441 = vmatpush1.msra.mxu0 %v2329
  %2442 = vmatprep.subr.mxu0 %v2337
  %2443 = vmatpush1.msra.mxu0 %v2336
  %2444 = vmatprep.mubr.f32.mxu0 %v1992
  %2445 = vmatmul.mubr.f32.gmra.mrb[0].mxu0 %v1991
  %v2446 = vpop.f32.mrb[0].mxu0
  %v2447 = vadd.f32 %v2348, %v2446
  %v2448 = vpop.f32.mrb[0].mxu0
  %v2449 = vadd.f32 %v2352, %v2448
  %2450 = vmatprep.mubr.f32.mxu0 %v1994
  %2451 = vmatmul.mubr.f32.gmra.mrb[0].mxu0 %v1993
  %v2452 = vpop.f32.mrb[0].mxu0
  %v2453 = vadd.f32 %v2348, %v2452
  %v2454 = vpop.f32.mrb[0].mxu0
  %v2455 = vadd.f32 %v2352, %v2454
  %2456 = vmatprep.mubr.f32.mxu0 %v1996
  %2457 = vmatmul.mubr.f32.gmra.mrb[0].mxu0 %v1995
  %v2458 = vpop.f32.mrb[0].mxu0
  %v2459 = vadd.f32 %v2348, %v2458
  %v2460 = vpop.f32.mrb[0].mxu0
  %v2461 = vadd.f32 %v2352, %v2460
  %2462 = vmatprep.mubr.f32.mxu0 %v1998
  %2463 = vmatmul.mubr.f32.gmra.mrb[0].mxu0 %v1997
  %v2464 = vpop.f32.mrb[0].mxu0
  %v2465 = vadd.f32 %v2348, %v2464
  %v2466 = vpop.f32.mrb[0].mxu0
  %v2467 = vadd.f32 %v2352, %v2466
  %2468 = vmatprep.mubr.f32.mxu0 %v2000
  %2469 = vmatmul.mubr.f32.gmra.mrb[0].mxu0 %v1999
  %v2470 = vpop.f32.mrb[0].mxu0
  %v2471 = vadd.f32 %v2348, %v2470
  %v2472 = vpop.f32.mrb[0].mxu0
  %v2473 = vadd.f32 %v2352, %v2472
  %2474 = vmatprep.mubr.f32.mxu0 %v2002
  %2475 = vmatmul.mubr.f32.gmra.mrb[0].mxu0 %v2001
  %v2476 = vpop.f32.mrb[0].mxu0
  %v2477 = vadd.f32 %v2348, %v2476
  %v2478 = vpop.f32.mrb[0].mxu0
  %v2479 = vadd.f32 %v2352, %v2478
  %2480 = vmatprep.mubr.f32.mxu0 %v2004
  %2481 = vmatmul.mubr.f32.gmra.mrb[0].mxu0 %v2003
  %v2482 = vpop.f32.mrb[0].mxu0
  %v2483 = vadd.f32 %v2348, %v2482
  %v2484 = vpop.f32.mrb[0].mxu0
  %v2485 = vadd.f32 %v2352, %v2484
  %2486 = vmatprep.mubr.f32.mxu0 %v2006
  %2487 = vmatmul.mubr.f32.gmra.mrb[0].mxu0 %v2005
  %v2488 = vpop.f32.mrb[0].mxu0
  %v2489 = vadd.f32 %v2348, %v2488
  %v2490 = vpop.f32.mrb[0].mxu0
  %v2491 = vadd.f32 %v2352, %v2490
  %2492 = vmatprep.mubr.f32.mxu0 %v2008
  %2493 = vmatmul.mubr.f32.gmra.mrb[0].mxu0 %v2007
  %v2494 = vpop.f32.mrb[0].mxu0
  %v2495 = vadd.f32 %v2348, %v2494
  %v2496 = vpop.f32.mrb[0].mxu0
  %v2497 = vadd.f32 %v2352, %v2496
  %2498 = vmatprep.mubr.f32.mxu0 %v2010
  %2499 = vmatmul.mubr.f32.gmra.mrb[0].mxu0 %v2009
  %v2500 = vpop.f32.mrb[0].mxu0
  %v2501 = vadd.f32 %v2348, %v2500
  %v2502 = vpop.f32.mrb[0].mxu0
  %v2503 = vadd.f32 %v2352, %v2502
  %2504 = vmatprep.mubr.f32.mxu0 %v2012
  %2505 = vmatmul.mubr.f32.gmra.mrb[0].mxu0 %v2011
  %v2506 = vpop.f32.mrb[0].mxu0
  %v2507 = vadd.f32 %v2348, %v2506
  %v2508 = vpop.f32.mrb[0].mxu0
  %v2509 = vadd.f32 %v2352, %v2508
  %2510 = vmatprep.mubr.f32.mxu0 %v2014
  %2511 = vmatmul.mubr.f32.gmra.mrb[0].mxu0 %v2013
  %v2512 = vpop.f32.mrb[0].mxu0
  %v2513 = vadd.f32 %v2348, %v2512
  %v2514 = vpop.f32.mrb[0].mxu0
  %v2515 = vadd.f32 %v2352, %v2514
  %2516 = vmatprep.mubr.f32.mxu0 %v2016
  %2517 = vmatmul.mubr.f32.gmra.mrb[0].mxu0 %v2015
  %v2518 = vpop.f32.mrb[0].mxu0
  %v2519 = vadd.f32 %v2348, %v2518
  %v2520 = vpop.f32.mrb[0].mxu0
  %v2521 = vadd.f32 %v2352, %v2520
  %2522 = vmatprep.mubr.f32.mxu0 %v2018
  %2523 = vmatmul.mubr.f32.gmra.mrb[0].mxu0 %v2017
  %v2524 = vpop.f32.mrb[0].mxu0
  %v2525 = vadd.f32 %v2348, %v2524
  %v2526 = vpop.f32.mrb[0].mxu0
  %v2527 = vadd.f32 %v2352, %v2526
  %2528 = vmatprep.mubr.f32.mxu0 %v2020
  %2529 = vmatmul.mubr.f32.gmra.mrb[0].mxu0 %v2019
  %v2530 = vpop.f32.mrb[0].mxu0
  %v2531 = vadd.f32 %v2348, %v2530
  %v2532 = vpop.f32.mrb[0].mxu0
  %v2533 = vadd.f32 %v2352, %v2532
  %2534 = vmatprep.mubr.f32.mxu0 %v2022
  %2535 = vmatmul.mubr.f32.gmra.mrb[0].mxu0 %v2021
  %v2536 = vpop.f32.mrb[0].mxu0
  %v2537 = vadd.f32 %v2348, %v2536
  %v2538 = vpop.f32.mrb[0].mxu0
  %v2539 = vadd.f32 %v2352, %v2538
  %2540 = vmatprep.mubr.f32.mxu0 %v2024
  %2541 = vmatmul.mubr.f32.gmra.mrb[0].mxu0 %v2023
  %v2542 = vpop.f32.mrb[0].mxu0
  %v2543 = vadd.f32 %v2348, %v2542
  %v2544 = vpop.f32.mrb[0].mxu0
  %v2545 = vadd.f32 %v2352, %v2544
  %2546 = vmatprep.mubr.f32.mxu0 %v2026
  %2547 = vmatmul.mubr.f32.gmra.mrb[0].mxu0 %v2025
  %v2548 = vpop.f32.mrb[0].mxu0
  %v2549 = vadd.f32 %v2348, %v2548
  %v2550 = vpop.f32.mrb[0].mxu0
  %v2551 = vadd.f32 %v2352, %v2550
  %2552 = vmatprep.mubr.f32.mxu0 %v2028
  %2553 = vmatmul.mubr.f32.gmra.mrb[0].mxu0 %v2027
  %v2554 = vpop.f32.mrb[0].mxu0
  %v2555 = vadd.f32 %v2348, %v2554
  %v2556 = vpop.f32.mrb[0].mxu0
  %v2557 = vadd.f32 %v2352, %v2556
  %2558 = vmatprep.mubr.f32.mxu0 %v2030
  %2559 = vmatmul.mubr.f32.gmra.mrb[0].mxu0 %v2029
  %v2560 = vpop.f32.mrb[0].mxu0
  %v2561 = vadd.f32 %v2348, %v2560
  %v2562 = vpop.f32.mrb[0].mxu0
  %v2563 = vadd.f32 %v2352, %v2562
  %2564 = vmatprep.mubr.f32.mxu0 %v2032
  %2565 = vmatmul.mubr.f32.gmra.mrb[0].mxu0 %v2031
  %v2566 = vpop.f32.mrb[0].mxu0
  %v2567 = vadd.f32 %v2348, %v2566
  %v2568 = vpop.f32.mrb[0].mxu0
  %v2569 = vadd.f32 %v2352, %v2568
  %2570 = vmatprep.mubr.f32.mxu0 %v2034
  %2571 = vmatmul.mubr.f32.gmra.mrb[0].mxu0 %v2033
  %v2572 = vpop.f32.mrb[0].mxu0
  %v2573 = vadd.f32 %v2348, %v2572
  %v2574 = vpop.f32.mrb[0].mxu0
  %v2575 = vadd.f32 %v2352, %v2574
  %2576 = vmatprep.mubr.f32.mxu0 %v2036
  %2577 = vmatmul.mubr.f32.gmra.mrb[0].mxu0 %v2035
  %v2578 = vpop.f32.mrb[0].mxu0
  %v2579 = vadd.f32 %v2348, %v2578
  %v2580 = vpop.f32.mrb[0].mxu0
  %v2581 = vadd.f32 %v2352, %v2580
  %2582 = vmatprep.mubr.f32.mxu0 %v2038
  %2583 = vmatmul.mubr.f32.gmra.mrb[0].mxu0 %v2037
  %v2584 = vpop.f32.mrb[0].mxu0
  %v2585 = vadd.f32 %v2348, %v2584
  %v2586 = vpop.f32.mrb[0].mxu0
  %v2587 = vadd.f32 %v2352, %v2586
  %2588 = vmatprep.mubr.f32.mxu0 %v2040
  %2589 = vmatmul.mubr.f32.gmra.mrb[0].mxu0 %v2039
  %v2590 = vpop.f32.mrb[0].mxu0
  %v2591 = vadd.f32 %v2348, %v2590
  %v2592 = vpop.f32.mrb[0].mxu0
  %v2593 = vadd.f32 %v2352, %v2592
  %2594 = vmatprep.mubr.f32.mxu0 %v2042
  %2595 = vmatmul.mubr.f32.gmra.mrb[0].mxu0 %v2041
  %v2596 = vpop.f32.mrb[0].mxu0
  %v2597 = vadd.f32 %v2348, %v2596
  %v2598 = vpop.f32.mrb[0].mxu0
  %v2599 = vadd.f32 %v2352, %v2598
  %2600 = vmatprep.mubr.f32.mxu0 %v2044
  %2601 = vmatmul.mubr.f32.gmra.mrb[0].mxu0 %v2043
  %v2602 = vpop.f32.mrb[0].mxu0
  %v2603 = vadd.f32 %v2348, %v2602
  %v2604 = vpop.f32.mrb[0].mxu0
  %v2605 = vadd.f32 %v2352, %v2604
  %2606 = vmatprep.mubr.f32.mxu0 %v2046
  %2607 = vmatmul.mubr.f32.gmra.mrb[0].mxu0 %v2045
  %v2608 = vpop.f32.mrb[0].mxu0
  %v2609 = vadd.f32 %v2348, %v2608
  %v2610 = vpop.f32.mrb[0].mxu0
  %v2611 = vadd.f32 %v2352, %v2610
  %2612 = vmatprep.mubr.f32.mxu0 %v2048
  %2613 = vmatmul.mubr.f32.gmra.mrb[0].mxu0 %v2047
  %v2614 = vpop.f32.mrb[0].mxu0
  %v2615 = vadd.f32 %v2348, %v2614
  %v2616 = vpop.f32.mrb[0].mxu0
  %v2617 = vadd.f32 %v2352, %v2616
  %2618 = vmatprep.mubr.f32.mxu0 %v2050
  %2619 = vmatmul.mubr.f32.gmra.mrb[0].mxu0 %v2049
  %v2620 = vpop.f32.mrb[0].mxu0
  %v2621 = vadd.f32 %v2348, %v2620
  %v2622 = vpop.f32.mrb[0].mxu0
  %v2623 = vadd.f32 %v2352, %v2622
  %2624 = vmatprep.mubr.f32.mxu0 %v2052
  %2625 = vmatmul.mubr.f32.gmra.mrb[0].mxu0 %v2051
  %v2626 = vpop.f32.mrb[0].mxu0
  %v2627 = vadd.f32 %v2348, %v2626
  %v2628 = vpop.f32.mrb[0].mxu0
  %v2629 = vadd.f32 %v2352, %v2628
  %2630 = vmatprep.mubr.f32.mxu0 %v2054
  %2631 = vmatmul.mubr.f32.gmra.mrb[0].mxu0 %v2053
  %v2632 = vpop.f32.mrb[0].mxu0
  %v2633 = vadd.f32 %v2348, %v2632
  %v2634 = vpop.f32.mrb[0].mxu0
  %v2635 = vadd.f32 %v2352, %v2634
  %2636 = vmatprep.mubr.f32.mxu0 %v2056
  %2637 = vmatmul.mubr.f32.gmra.mrb[0].mxu0 %v2055
  %v2638 = vpop.f32.mrb[0].mxu0
  %v2639 = vadd.f32 %v2348, %v2638
  %v2640 = vpop.f32.mrb[0].mxu0
  %v2641 = vadd.f32 %v2352, %v2640
  %2642 = vmatprep.mubr.f32.mxu0 %v2058
  %2643 = vmatmul.mubr.f32.gmra.mrb[0].mxu0 %v2057
  %v2644 = vpop.f32.mrb[0].mxu0
  %v2645 = vadd.f32 %v2348, %v2644
  %v2646 = vpop.f32.mrb[0].mxu0
  %v2647 = vadd.f32 %v2352, %v2646
  %2648 = vmatprep.mubr.f32.mxu0 %v2060
  %2649 = vmatmul.mubr.f32.gmra.mrb[0].mxu0 %v2059
  %v2650 = vpop.f32.mrb[0].mxu0
  %v2651 = vadd.f32 %v2348, %v2650
  %v2652 = vpop.f32.mrb[0].mxu0
  %v2653 = vadd.f32 %v2352, %v2652
  %2654 = vmatprep.mubr.f32.mxu0 %v2062
  %2655 = vmatmul.mubr.f32.gmra.mrb[0].mxu0 %v2061
  %v2656 = vpop.f32.mrb[0].mxu0
  %v2657 = vadd.f32 %v2348, %v2656
  %v2658 = vpop.f32.mrb[0].mxu0
  %v2659 = vadd.f32 %v2352, %v2658
  %2660 = vmatprep.mubr.f32.mxu0 %v2064
  %2661 = vmatmul.mubr.f32.gmra.mrb[0].mxu0 %v2063
  %v2662 = vpop.f32.mrb[0].mxu0
  %v2663 = vadd.f32 %v2348, %v2662
  %v2664 = vpop.f32.mrb[0].mxu0
  %v2665 = vadd.f32 %v2352, %v2664
  %2666 = vmatprep.mubr.f32.mxu0 %v2066
  %2667 = vmatmul.mubr.f32.gmra.mrb[0].mxu0 %v2065
  %v2668 = vpop.f32.mrb[0].mxu0
  %v2669 = vadd.f32 %v2348, %v2668
  %v2670 = vpop.f32.mrb[0].mxu0
  %v2671 = vadd.f32 %v2352, %v2670
  %2672 = vmatprep.mubr.f32.mxu0 %v2068
  %2673 = vmatmul.mubr.f32.gmra.mrb[0].mxu0 %v2067
  %v2674 = vpop.f32.mrb[0].mxu0
  %v2675 = vadd.f32 %v2348, %v2674
  %v2676 = vpop.f32.mrb[0].mxu0
  %v2677 = vadd.f32 %v2352, %v2676
  %2678 = vmatprep.mubr.f32.mxu0 %v2070
  %2679 = vmatmul.mubr.f32.gmra.mrb[0].mxu0 %v2069
  %v2680 = vpop.f32.mrb[0].mxu0
  %v2681 = vadd.f32 %v2348, %v2680
  %v2682 = vpop.f32.mrb[0].mxu0
  %v2683 = vadd.f32 %v2352, %v2682
  %2684 = vmatprep.mubr.f32.mxu0 %v2072
  %2685 = vmatmul.mubr.f32.gmra.mrb[0].mxu0 %v2071
  %v2686 = vpop.f32.mrb[0].mxu0
  %v2687 = vadd.f32 %v2348, %v2686
  %v2688 = vpop.f32.mrb[0].mxu0
  %v2689 = vadd.f32 %v2352, %v2688
  %2690 = vmatprep.mubr.f32.mxu0 %v2074
  %2691 = vmatmul.mubr.f32.gmra.mrb[0].mxu0 %v2073
  %v2692 = vpop.f32.mrb[0].mxu0
  %v2693 = vadd.f32 %v2348, %v2692
  %v2694 = vpop.f32.mrb[0].mxu0
  %v2695 = vadd.f32 %v2352, %v2694
  %2696 = vmatprep.mubr.f32.mxu0 %v2076
  %2697 = vmatmul.mubr.f32.gmra.mrb[0].mxu0 %v2075
  %v2698 = vpop.f32.mrb[0].mxu0
  %v2699 = vadd.f32 %v2348, %v2698
  %v2700 = vpop.f32.mrb[0].mxu0
  %v2701 = vadd.f32 %v2352, %v2700
  %2702 = vmatprep.mubr.f32.mxu0 %v2078
  %2703 = vmatmul.mubr.f32.gmra.mrb[0].mxu0 %v2077
  %v2704 = vpop.f32.mrb[0].mxu0
  %v2705 = vadd.f32 %v2348, %v2704
  %v2706 = vpop.f32.mrb[0].mxu0
  %v2707 = vadd.f32 %v2352, %v2706
  %2708 = vmatprep.mubr.f32.mxu0 %v2080
  %2709 = vmatmul.mubr.f32.gmra.mrb[0].mxu0 %v2079
  %v2710 = vpop.f32.mrb[0].mxu0
  %v2711 = vadd.f32 %v2348, %v2710
  %v2712 = vpop.f32.mrb[0].mxu0
  %v2713 = vadd.f32 %v2352, %v2712
  %2714 = vmatprep.mubr.f32.mxu0 %v2082
  %2715 = vmatmul.mubr.f32.gmra.mrb[0].mxu0 %v2081
  %v2716 = vpop.f32.mrb[0].mxu0
  %v2717 = vadd.f32 %v2348, %v2716
  %v2718 = vpop.f32.mrb[0].mxu0
  %v2719 = vadd.f32 %v2352, %v2718
  %2720 = vmatprep.mubr.f32.mxu0 %v2084
  %2721 = vmatmul.mubr.f32.gmra.mrb[0].mxu0 %v2083
  %v2722 = vpop.f32.mrb[0].mxu0
  %v2723 = vadd.f32 %v2348, %v2722
  %v2724 = vpop.f32.mrb[0].mxu0
  %v2725 = vadd.f32 %v2352, %v2724
  %2726 = vmatprep.mubr.f32.mxu0 %v2086
  %2727 = vmatmul.mubr.f32.gmra.mrb[0].mxu0 %v2085
  %v2728 = vpop.f32.mrb[0].mxu0
  %v2729 = vadd.f32 %v2348, %v2728
  %v2730 = vpop.f32.mrb[0].mxu0
  %v2731 = vadd.f32 %v2352, %v2730
  %2732 = vmatprep.mubr.f32.mxu0 %v2088
  %2733 = vmatmul.mubr.f32.gmra.mrb[0].mxu0 %v2087
  %v2734 = vpop.f32.mrb[0].mxu0
  %v2735 = vadd.f32 %v2348, %v2734
  %v2736 = vpop.f32.mrb[0].mxu0
  %v2737 = vadd.f32 %v2352, %v2736
  %2738 = vmatprep.mubr.f32.mxu0 %v2090
  %2739 = vmatmul.mubr.f32.gmra.mrb[0].mxu0 %v2089
  %v2740 = vpop.f32.mrb[0].mxu0
  %v2741 = vadd.f32 %v2348, %v2740
  %v2742 = vpop.f32.mrb[0].mxu0
  %v2743 = vadd.f32 %v2352, %v2742
  %2744 = vmatprep.mubr.f32.mxu0 %v2092
  %2745 = vmatmul.mubr.f32.gmra.mrb[0].mxu0 %v2091
  %v2746 = vpop.f32.mrb[0].mxu0
  %v2747 = vadd.f32 %v2348, %v2746
  %v2748 = vpop.f32.mrb[0].mxu0
  %v2749 = vadd.f32 %v2352, %v2748
  %2750 = vmatprep.mubr.f32.mxu0 %v2094
  %2751 = vmatmul.mubr.f32.gmra.mrb[0].mxu0 %v2093
  %v2752 = vpop.f32.mrb[0].mxu0
  %v2753 = vadd.f32 %v2348, %v2752
  %v2754 = vpop.f32.mrb[0].mxu0
  %v2755 = vadd.f32 %v2352, %v2754
  %2756 = vmatprep.mubr.f32.mxu0 %v2096
  %2757 = vmatmul.mubr.f32.gmra.mrb[0].mxu0 %v2095
  %v2758 = vpop.f32.mrb[0].mxu0
  %v2759 = vadd.f32 %v2348, %v2758
  %v2760 = vpop.f32.mrb[0].mxu0
  %v2761 = vadd.f32 %v2352, %v2760
  %2762 = vmatprep.mubr.f32.mxu0 %v2098
  %2763 = vmatmul.mubr.f32.gmra.mrb[0].mxu0 %v2097
  %v2764 = vpop.f32.mrb[0].mxu0
  %v2765 = vadd.f32 %v2348, %v2764
  %v2766 = vpop.f32.mrb[0].mxu0
  %v2767 = vadd.f32 %v2352, %v2766
  %2768 = vmatprep.mubr.f32.mxu0 %v2100
  %2769 = vmatmul.mubr.f32.gmra.mrb[0].mxu0 %v2099
  %v2770 = vpop.f32.mrb[0].mxu0
  %v2771 = vadd.f32 %v2348, %v2770
  %v2772 = vpop.f32.mrb[0].mxu0
  %v2773 = vadd.f32 %v2352, %v2772
  %2774 = vmatprep.mubr.f32.mxu0 %v2102
  %2775 = vmatmul.mubr.f32.gmra.mrb[0].mxu0 %v2101
  %v2776 = vpop.f32.mrb[0].mxu0
  %v2777 = vadd.f32 %v2348, %v2776
  %v2778 = vpop.f32.mrb[0].mxu0
  %v2779 = vadd.f32 %v2352, %v2778
  %2780 = vmatprep.mubr.f32.mxu0 %v2104
  %2781 = vmatmul.mubr.f32.gmra.mrb[0].mxu0 %v2103
  %v2782 = vpop.f32.mrb[0].mxu0
  %v2783 = vadd.f32 %v2348, %v2782
  %v2784 = vpop.f32.mrb[0].mxu0
  %v2785 = vadd.f32 %v2352, %v2784
  %2786 = vmatprep.mubr.f32.mxu0 %v2106
  %2787 = vmatmul.mubr.f32.gmra.mrb[0].mxu0 %v2105
  %v2788 = vpop.f32.mrb[0].mxu0
  %v2789 = vadd.f32 %v2348, %v2788
  %v2790 = vpop.f32.mrb[0].mxu0
  %v2791 = vadd.f32 %v2352, %v2790
  %2792 = vmatprep.mubr.f32.mxu0 %v2108
  %2793 = vmatmul.mubr.f32.gmra.mrb[0].mxu0 %v2107
  %v2794 = vpop.f32.mrb[0].mxu0
  %v2795 = vadd.f32 %v2348, %v2794
  %v2796 = vpop.f32.mrb[0].mxu0
  %v2797 = vadd.f32 %v2352, %v2796
  %2798 = vmatprep.mubr.f32.mxu0 %v2110
  %2799 = vmatmul.mubr.f32.gmra.mrb[0].mxu0 %v2109
  %v2800 = vpop.f32.mrb[0].mxu0
  %v2801 = vadd.f32 %v2348, %v2800
  %v2802 = vpop.f32.mrb[0].mxu0
  %v2803 = vadd.f32 %v2352, %v2802
  %2804 = vmatprep.mubr.f32.mxu0 %v2112
  %2805 = vmatmul.mubr.f32.gmra.mrb[0].mxu0 %v2111
  %v2806 = vpop.f32.mrb[0].mxu0
  %v2807 = vadd.f32 %v2348, %v2806
  %v2808 = vpop.f32.mrb[0].mxu0
  %v2809 = vadd.f32 %v2352, %v2808
  %2810 = vmatprep.mubr.f32.mxu0 %v2114
  %2811 = vmatmul.mubr.f32.gmra.mrb[0].mxu0 %v2113
  %v2812 = vpop.f32.mrb[0].mxu0
  %v2813 = vadd.f32 %v2348, %v2812
  %v2814 = vpop.f32.mrb[0].mxu0
  %v2815 = vadd.f32 %v2352, %v2814
  %2816 = vmatprep.mubr.f32.mxu0 %v2116
  %2817 = vmatmul.mubr.f32.gmra.mrb[0].mxu0 %v2115
  %v2818 = vpop.f32.mrb[0].mxu0
  %v2819 = vadd.f32 %v2348, %v2818
  %v2820 = vpop.f32.mrb[0].mxu0
  %v2821 = vadd.f32 %v2352, %v2820
  %2822 = vmatprep.mubr.f32.mxu0 %v2118
  %2823 = vmatmul.mubr.f32.gmra.mrb[0].mxu0 %v2117
  %v2824 = vpop.f32.mrb[0].mxu0
  %v2825 = vadd.f32 %v2348, %v2824
  %v2826 = vpop.f32.mrb[0].mxu0
  %v2827 = vadd.f32 %v2352, %v2826
  %2828 = vdwg.mxu0
  %2829 = vmatprep.subr.mxu0 %v2122
  %2830 = vmatpush1.msra.mxu0 %v2121
  %2831 = vmatprep.subr.mxu0 %v2129
  %2832 = vmatpush1.msra.mxu0 %v2128
  %2833 = vmatprep.subr.mxu0 %v2136
  %2834 = vmatpush1.msra.mxu0 %v2135
  %2835 = vmatprep.subr.mxu0 %v2143
  %2836 = vmatpush1.msra.mxu0 %v2142
  %2837 = vmatprep.subr.mxu0 %v2150
  %2838 = vmatpush1.msra.mxu0 %v2149
  %2839 = vmatprep.subr.mxu0 %v2157
  %2840 = vmatpush1.msra.mxu0 %v2156
  %2841 = vmatprep.subr.mxu0 %v2164
  %2842 = vmatpush1.msra.mxu0 %v2163
  %2843 = vmatprep.subr.mxu0 %v2171
  %2844 = vmatpush1.msra.mxu0 %v2170
  %2845 = vmatprep.subr.mxu0 %v2178
  %2846 = vmatpush1.msra.mxu0 %v2177
  %2847 = vmatprep.subr.mxu0 %v2185
  %2848 = vmatpush1.msra.mxu0 %v2184
  %2849 = vmatprep.subr.mxu0 %v2192
  %2850 = vmatpush1.msra.mxu0 %v2191
  %2851 = vmatprep.subr.mxu0 %v2199
  %2852 = vmatpush1.msra.mxu0 %v2198
  %2853 = vmatprep.subr.mxu0 %v2206
  %2854 = vmatpush1.msra.mxu0 %v2205
  %2855 = vmatprep.subr.mxu0 %v2213
  %2856 = vmatpush1.msra.mxu0 %v2212
  %2857 = vmatprep.subr.mxu0 %v2220
  %2858 = vmatpush1.msra.mxu0 %v2219
  %2859 = vmatprep.subr.mxu0 %v2227
  %2860 = vmatpush1.msra.mxu0 %v2226
  %2861 = vmatprep.subr.mxu0 %v2234
  %2862 = vmatpush1.msra.mxu0 %v2233
  %2863 = vmatprep.subr.mxu0 %v2241
  %2864 = vmatpush1.msra.mxu0 %v2240
  %2865 = vmatprep.subr.mxu0 %v2248
  %2866 = vmatpush1.msra.mxu0 %v2247
  %2867 = vmatprep.subr.mxu0 %v2255
  %2868 = vmatpush1.msra.mxu0 %v2254
  %2869 = vmatprep.subr.mxu0 %v2262
  %2870 = vmatpush1.msra.mxu0 %v2261
  %2871 = vmatprep.subr.mxu0 %v2269
  %2872 = vmatpush1.msra.mxu0 %v2268
  %2873 = vmatprep.subr.mxu0 %v2276
  %2874 = vmatpush1.msra.mxu0 %v2275
  %2875 = vmatprep.subr.mxu0 %v2283
  %2876 = vmatpush1.msra.mxu0 %v2282
  %2877 = vmatprep.subr.mxu0 %v2290
  %2878 = vmatpush1.msra.mxu0 %v2289
  %2879 = vmatprep.subr.mxu0 %v2297
  %2880 = vmatpush1.msra.mxu0 %v2296
  %2881 = vmatprep.subr.mxu0 %v2304
  %2882 = vmatpush1.msra.mxu0 %v2303
  %2883 = vmatprep.subr.mxu0 %v2311
  %2884 = vmatpush1.msra.mxu0 %v2310
  %2885 = vmatprep.subr.mxu0 %v2318
  %2886 = vmatpush1.msra.mxu0 %v2317
  %2887 = vmatprep.subr.mxu0 %v2325
  %2888 = vmatpush1.msra.mxu0 %v2324
  %2889 = vmatprep.subr.mxu0 %v2332
  %2890 = vmatpush1.msra.mxu0 %v2331
  %2891 = vmatprep.subr.mxu0 %v2339
  %2892 = vmatpush1.msra.mxu0 %v2338
  %2893 = vmatprep.mubr.f32.mxu0 %v1992
  %2894 = vmatmul.mubr.f32.gmra.mrb[0].mxu0 %v1991
  %v2895 = vpop.f32.mrb[0].mxu0
  %v2896 = vadd.f32 %v2356, %v2895
  %v2897 = vpop.f32.mrb[0].mxu0
  %v2898 = vadd.f32 %v2360, %v2897
  %2899 = vmatprep.mubr.f32.mxu0 %v1994
  %2900 = vmatmul.mubr.f32.gmra.mrb[0].mxu0 %v1993
  %v2901 = vpop.f32.mrb[0].mxu0
  %v2902 = vadd.f32 %v2356, %v2901
  %v2903 = vpop.f32.mrb[0].mxu0
  %v2904 = vadd.f32 %v2360, %v2903
  %2905 = vmatprep.mubr.f32.mxu0 %v1996
  %2906 = vmatmul.mubr.f32.gmra.mrb[0].mxu0 %v1995
  %v2907 = vpop.f32.mrb[0].mxu0
  %v2908 = vadd.f32 %v2356, %v2907
  %v2909 = vpop.f32.mrb[0].mxu0
  %v2910 = vadd.f32 %v2360, %v2909
  %2911 = vmatprep.mubr.f32.mxu0 %v1998
  %2912 = vmatmul.mubr.f32.gmra.mrb[0].mxu0 %v1997
  %v2913 = vpop.f32.mrb[0].mxu0
  %v2914 = vadd.f32 %v2356, %v2913
  %v2915 = vpop.f32.mrb[0].mxu0
  %v2916 = vadd.f32 %v2360, %v2915
  %2917 = vmatprep.mubr.f32.mxu0 %v2000
  %2918 = vmatmul.mubr.f32.gmra.mrb[0].mxu0 %v1999
  %v2919 = vpop.f32.mrb[0].mxu0
  %v2920 = vadd.f32 %v2356, %v2919
  %v2921 = vpop.f32.mrb[0].mxu0
  %v2922 = vadd.f32 %v2360, %v2921
  %2923 = vmatprep.mubr.f32.mxu0 %v2002
  %2924 = vmatmul.mubr.f32.gmra.mrb[0].mxu0 %v2001
  %v2925 = vpop.f32.mrb[0].mxu0
  %v2926 = vadd.f32 %v2356, %v2925
  %v2927 = vpop.f32.mrb[0].mxu0
  %v2928 = vadd.f32 %v2360, %v2927
  %2929 = vmatprep.mubr.f32.mxu0 %v2004
  %2930 = vmatmul.mubr.f32.gmra.mrb[0].mxu0 %v2003
  %v2931 = vpop.f32.mrb[0].mxu0
  %v2932 = vadd.f32 %v2356, %v2931
  %v2933 = vpop.f32.mrb[0].mxu0
  %v2934 = vadd.f32 %v2360, %v2933
  %2935 = vmatprep.mubr.f32.mxu0 %v2006
  %2936 = vmatmul.mubr.f32.gmra.mrb[0].mxu0 %v2005
  %v2937 = vpop.f32.mrb[0].mxu0
  %v2938 = vadd.f32 %v2356, %v2937
  %v2939 = vpop.f32.mrb[0].mxu0
  %v2940 = vadd.f32 %v2360, %v2939
  %2941 = vmatprep.mubr.f32.mxu0 %v2008
  %2942 = vmatmul.mubr.f32.gmra.mrb[0].mxu0 %v2007
  %v2943 = vpop.f32.mrb[0].mxu0
  %v2944 = vadd.f32 %v2356, %v2943
  %v2945 = vpop.f32.mrb[0].mxu0
  %v2946 = vadd.f32 %v2360, %v2945
  %2947 = vmatprep.mubr.f32.mxu0 %v2010
  %2948 = vmatmul.mubr.f32.gmra.mrb[0].mxu0 %v2009
  %v2949 = vpop.f32.mrb[0].mxu0
  %v2950 = vadd.f32 %v2356, %v2949
  %v2951 = vpop.f32.mrb[0].mxu0
  %v2952 = vadd.f32 %v2360, %v2951
  %2953 = vmatprep.mubr.f32.mxu0 %v2012
  %2954 = vmatmul.mubr.f32.gmra.mrb[0].mxu0 %v2011
  %v2955 = vpop.f32.mrb[0].mxu0
  %v2956 = vadd.f32 %v2356, %v2955
  %v2957 = vpop.f32.mrb[0].mxu0
  %v2958 = vadd.f32 %v2360, %v2957
  %2959 = vmatprep.mubr.f32.mxu0 %v2014
  %2960 = vmatmul.mubr.f32.gmra.mrb[0].mxu0 %v2013
  %v2961 = vpop.f32.mrb[0].mxu0
  %v2962 = vadd.f32 %v2356, %v2961
  %v2963 = vpop.f32.mrb[0].mxu0
  %v2964 = vadd.f32 %v2360, %v2963
  %2965 = vmatprep.mubr.f32.mxu0 %v2016
  %2966 = vmatmul.mubr.f32.gmra.mrb[0].mxu0 %v2015
  %v2967 = vpop.f32.mrb[0].mxu0
  %v2968 = vadd.f32 %v2356, %v2967
  %v2969 = vpop.f32.mrb[0].mxu0
  %v2970 = vadd.f32 %v2360, %v2969
  %2971 = vmatprep.mubr.f32.mxu0 %v2018
  %2972 = vmatmul.mubr.f32.gmra.mrb[0].mxu0 %v2017
  %v2973 = vpop.f32.mrb[0].mxu0
  %v2974 = vadd.f32 %v2356, %v2973
  %v2975 = vpop.f32.mrb[0].mxu0
  %v2976 = vadd.f32 %v2360, %v2975
  %2977 = vmatprep.mubr.f32.mxu0 %v2020
  %2978 = vmatmul.mubr.f32.gmra.mrb[0].mxu0 %v2019
  %v2979 = vpop.f32.mrb[0].mxu0
  %v2980 = vadd.f32 %v2356, %v2979
  %v2981 = vpop.f32.mrb[0].mxu0
  %v2982 = vadd.f32 %v2360, %v2981
  %2983 = vmatprep.mubr.f32.mxu0 %v2022
  %2984 = vmatmul.mubr.f32.gmra.mrb[0].mxu0 %v2021
  %v2985 = vpop.f32.mrb[0].mxu0
  %v2986 = vadd.f32 %v2356, %v2985
  %v2987 = vpop.f32.mrb[0].mxu0
  %v2988 = vadd.f32 %v2360, %v2987
  %2989 = vmatprep.mubr.f32.mxu0 %v2024
  %2990 = vmatmul.mubr.f32.gmra.mrb[0].mxu0 %v2023
  %v2991 = vpop.f32.mrb[0].mxu0
  %v2992 = vadd.f32 %v2356, %v2991
  %v2993 = vpop.f32.mrb[0].mxu0
  %v2994 = vadd.f32 %v2360, %v2993
  %2995 = vmatprep.mubr.f32.mxu0 %v2026
  %2996 = vmatmul.mubr.f32.gmra.mrb[0].mxu0 %v2025
  %v2997 = vpop.f32.mrb[0].mxu0
  %v2998 = vadd.f32 %v2356, %v2997
  %v2999 = vpop.f32.mrb[0].mxu0
  %v3000 = vadd.f32 %v2360, %v2999
  %3001 = vmatprep.mubr.f32.mxu0 %v2028
  %3002 = vmatmul.mubr.f32.gmra.mrb[0].mxu0 %v2027
  %v3003 = vpop.f32.mrb[0].mxu0
  %v3004 = vadd.f32 %v2356, %v3003
  %v3005 = vpop.f32.mrb[0].mxu0
  %v3006 = vadd.f32 %v2360, %v3005
  %3007 = vmatprep.mubr.f32.mxu0 %v2030
  %3008 = vmatmul.mubr.f32.gmra.mrb[0].mxu0 %v2029
  %v3009 = vpop.f32.mrb[0].mxu0
  %v3010 = vadd.f32 %v2356, %v3009
  %v3011 = vpop.f32.mrb[0].mxu0
  %v3012 = vadd.f32 %v2360, %v3011
  %3013 = vmatprep.mubr.f32.mxu0 %v2032
  %3014 = vmatmul.mubr.f32.gmra.mrb[0].mxu0 %v2031
  %v3015 = vpop.f32.mrb[0].mxu0
  %v3016 = vadd.f32 %v2356, %v3015
  %v3017 = vpop.f32.mrb[0].mxu0
  %v3018 = vadd.f32 %v2360, %v3017
  %3019 = vmatprep.mubr.f32.mxu0 %v2034
  %3020 = vmatmul.mubr.f32.gmra.mrb[0].mxu0 %v2033
  %v3021 = vpop.f32.mrb[0].mxu0
  %v3022 = vadd.f32 %v2356, %v3021
  %v3023 = vpop.f32.mrb[0].mxu0
  %v3024 = vadd.f32 %v2360, %v3023
  %3025 = vmatprep.mubr.f32.mxu0 %v2036
  %3026 = vmatmul.mubr.f32.gmra.mrb[0].mxu0 %v2035
  %v3027 = vpop.f32.mrb[0].mxu0
  %v3028 = vadd.f32 %v2356, %v3027
  %v3029 = vpop.f32.mrb[0].mxu0
  %v3030 = vadd.f32 %v2360, %v3029
  %3031 = vmatprep.mubr.f32.mxu0 %v2038
  %3032 = vmatmul.mubr.f32.gmra.mrb[0].mxu0 %v2037
  %v3033 = vpop.f32.mrb[0].mxu0
  %v3034 = vadd.f32 %v2356, %v3033
  %v3035 = vpop.f32.mrb[0].mxu0
  %v3036 = vadd.f32 %v2360, %v3035
  %3037 = vmatprep.mubr.f32.mxu0 %v2040
  %3038 = vmatmul.mubr.f32.gmra.mrb[0].mxu0 %v2039
  %v3039 = vpop.f32.mrb[0].mxu0
  %v3040 = vadd.f32 %v2356, %v3039
  %v3041 = vpop.f32.mrb[0].mxu0
  %v3042 = vadd.f32 %v2360, %v3041
  %3043 = vmatprep.mubr.f32.mxu0 %v2042
  %3044 = vmatmul.mubr.f32.gmra.mrb[0].mxu0 %v2041
  %v3045 = vpop.f32.mrb[0].mxu0
  %v3046 = vadd.f32 %v2356, %v3045
  %v3047 = vpop.f32.mrb[0].mxu0
  %v3048 = vadd.f32 %v2360, %v3047
  %3049 = vmatprep.mubr.f32.mxu0 %v2044
  %3050 = vmatmul.mubr.f32.gmra.mrb[0].mxu0 %v2043
  %v3051 = vpop.f32.mrb[0].mxu0
  %v3052 = vadd.f32 %v2356, %v3051
  %v3053 = vpop.f32.mrb[0].mxu0
  %v3054 = vadd.f32 %v2360, %v3053
  %3055 = vmatprep.mubr.f32.mxu0 %v2046
  %3056 = vmatmul.mubr.f32.gmra.mrb[0].mxu0 %v2045
  %v3057 = vpop.f32.mrb[0].mxu0
  %v3058 = vadd.f32 %v2356, %v3057
  %v3059 = vpop.f32.mrb[0].mxu0
  %v3060 = vadd.f32 %v2360, %v3059
  %3061 = vmatprep.mubr.f32.mxu0 %v2048
  %3062 = vmatmul.mubr.f32.gmra.mrb[0].mxu0 %v2047
  %v3063 = vpop.f32.mrb[0].mxu0
  %v3064 = vadd.f32 %v2356, %v3063
  %v3065 = vpop.f32.mrb[0].mxu0
  %v3066 = vadd.f32 %v2360, %v3065
  %3067 = vmatprep.mubr.f32.mxu0 %v2050
  %3068 = vmatmul.mubr.f32.gmra.mrb[0].mxu0 %v2049
  %v3069 = vpop.f32.mrb[0].mxu0
  %v3070 = vadd.f32 %v2356, %v3069
  %v3071 = vpop.f32.mrb[0].mxu0
  %v3072 = vadd.f32 %v2360, %v3071
  %3073 = vmatprep.mubr.f32.mxu0 %v2052
  %3074 = vmatmul.mubr.f32.gmra.mrb[0].mxu0 %v2051
  %v3075 = vpop.f32.mrb[0].mxu0
  %v3076 = vadd.f32 %v2356, %v3075
  %v3077 = vpop.f32.mrb[0].mxu0
  %v3078 = vadd.f32 %v2360, %v3077
  %3079 = vmatprep.mubr.f32.mxu0 %v2054
  %3080 = vmatmul.mubr.f32.gmra.mrb[0].mxu0 %v2053
  %v3081 = vpop.f32.mrb[0].mxu0
  %v3082 = vadd.f32 %v2356, %v3081
  %v3083 = vpop.f32.mrb[0].mxu0
  %v3084 = vadd.f32 %v2360, %v3083
  %3085 = vmatprep.mubr.f32.mxu0 %v2056
  %3086 = vmatmul.mubr.f32.gmra.mrb[0].mxu0 %v2055
  %v3087 = vpop.f32.mrb[0].mxu0
  %v3088 = vadd.f32 %v2356, %v3087
  %v3089 = vpop.f32.mrb[0].mxu0
  %v3090 = vadd.f32 %v2360, %v3089
  %3091 = vmatprep.mubr.f32.mxu0 %v2058
  %3092 = vmatmul.mubr.f32.gmra.mrb[0].mxu0 %v2057
  %v3093 = vpop.f32.mrb[0].mxu0
  %v3094 = vadd.f32 %v2356, %v3093
  %v3095 = vpop.f32.mrb[0].mxu0
  %v3096 = vadd.f32 %v2360, %v3095
  %3097 = vmatprep.mubr.f32.mxu0 %v2060
  %3098 = vmatmul.mubr.f32.gmra.mrb[0].mxu0 %v2059
  %v3099 = vpop.f32.mrb[0].mxu0
  %v3100 = vadd.f32 %v2356, %v3099
  %v3101 = vpop.f32.mrb[0].mxu0
  %v3102 = vadd.f32 %v2360, %v3101
  %3103 = vmatprep.mubr.f32.mxu0 %v2062
  %3104 = vmatmul.mubr.f32.gmra.mrb[0].mxu0 %v2061
  %v3105 = vpop.f32.mrb[0].mxu0
  %v3106 = vadd.f32 %v2356, %v3105
  %v3107 = vpop.f32.mrb[0].mxu0
  %v3108 = vadd.f32 %v2360, %v3107
  %3109 = vmatprep.mubr.f32.mxu0 %v2064
  %3110 = vmatmul.mubr.f32.gmra.mrb[0].mxu0 %v2063
  %v3111 = vpop.f32.mrb[0].mxu0
  %v3112 = vadd.f32 %v2356, %v3111
  %v3113 = vpop.f32.mrb[0].mxu0
  %v3114 = vadd.f32 %v2360, %v3113
  %3115 = vmatprep.mubr.f32.mxu0 %v2066
  %3116 = vmatmul.mubr.f32.gmra.mrb[0].mxu0 %v2065
  %v3117 = vpop.f32.mrb[0].mxu0
  %v3118 = vadd.f32 %v2356, %v3117
  %v3119 = vpop.f32.mrb[0].mxu0
  %v3120 = vadd.f32 %v2360, %v3119
  %3121 = vmatprep.mubr.f32.mxu0 %v2068
  %3122 = vmatmul.mubr.f32.gmra.mrb[0].mxu0 %v2067
  %v3123 = vpop.f32.mrb[0].mxu0
  %v3124 = vadd.f32 %v2356, %v3123
  %v3125 = vpop.f32.mrb[0].mxu0
  %v3126 = vadd.f32 %v2360, %v3125
  %3127 = vmatprep.mubr.f32.mxu0 %v2070
  %3128 = vmatmul.mubr.f32.gmra.mrb[0].mxu0 %v2069
  %v3129 = vpop.f32.mrb[0].mxu0
  %v3130 = vadd.f32 %v2356, %v3129
  %v3131 = vpop.f32.mrb[0].mxu0
  %v3132 = vadd.f32 %v2360, %v3131
  %3133 = vmatprep.mubr.f32.mxu0 %v2072
  %3134 = vmatmul.mubr.f32.gmra.mrb[0].mxu0 %v2071
  %v3135 = vpop.f32.mrb[0].mxu0
  %v3136 = vadd.f32 %v2356, %v3135
  %v3137 = vpop.f32.mrb[0].mxu0
  %v3138 = vadd.f32 %v2360, %v3137
  %3139 = vmatprep.mubr.f32.mxu0 %v2074
  %3140 = vmatmul.mubr.f32.gmra.mrb[0].mxu0 %v2073
  %v3141 = vpop.f32.mrb[0].mxu0
  %v3142 = vadd.f32 %v2356, %v3141
  %v3143 = vpop.f32.mrb[0].mxu0
  %v3144 = vadd.f32 %v2360, %v3143
  %3145 = vmatprep.mubr.f32.mxu0 %v2076
  %3146 = vmatmul.mubr.f32.gmra.mrb[0].mxu0 %v2075
  %v3147 = vpop.f32.mrb[0].mxu0
  %v3148 = vadd.f32 %v2356, %v3147
  %v3149 = vpop.f32.mrb[0].mxu0
  %v3150 = vadd.f32 %v2360, %v3149
  %3151 = vmatprep.mubr.f32.mxu0 %v2078
  %3152 = vmatmul.mubr.f32.gmra.mrb[0].mxu0 %v2077
  %v3153 = vpop.f32.mrb[0].mxu0
  %v3154 = vadd.f32 %v2356, %v3153
  %v3155 = vpop.f32.mrb[0].mxu0
  %v3156 = vadd.f32 %v2360, %v3155
  %3157 = vmatprep.mubr.f32.mxu0 %v2080
  %3158 = vmatmul.mubr.f32.gmra.mrb[0].mxu0 %v2079
  %v3159 = vpop.f32.mrb[0].mxu0
  %v3160 = vadd.f32 %v2356, %v3159
  %v3161 = vpop.f32.mrb[0].mxu0
  %v3162 = vadd.f32 %v2360, %v3161
  %3163 = vmatprep.mubr.f32.mxu0 %v2082
  %3164 = vmatmul.mubr.f32.gmra.mrb[0].mxu0 %v2081
  %v3165 = vpop.f32.mrb[0].mxu0
  %v3166 = vadd.f32 %v2356, %v3165
  %v3167 = vpop.f32.mrb[0].mxu0
  %v3168 = vadd.f32 %v2360, %v3167
  %3169 = vmatprep.mubr.f32.mxu0 %v2084
  %3170 = vmatmul.mubr.f32.gmra.mrb[0].mxu0 %v2083
  %v3171 = vpop.f32.mrb[0].mxu0
  %v3172 = vadd.f32 %v2356, %v3171
  %v3173 = vpop.f32.mrb[0].mxu0
  %v3174 = vadd.f32 %v2360, %v3173
  %3175 = vmatprep.mubr.f32.mxu0 %v2086
  %3176 = vmatmul.mubr.f32.gmra.mrb[0].mxu0 %v2085
  %v3177 = vpop.f32.mrb[0].mxu0
  %v3178 = vadd.f32 %v2356, %v3177
  %v3179 = vpop.f32.mrb[0].mxu0
  %v3180 = vadd.f32 %v2360, %v3179
  %3181 = vmatprep.mubr.f32.mxu0 %v2088
  %3182 = vmatmul.mubr.f32.gmra.mrb[0].mxu0 %v2087
  %v3183 = vpop.f32.mrb[0].mxu0
  %v3184 = vadd.f32 %v2356, %v3183
  %v3185 = vpop.f32.mrb[0].mxu0
  %v3186 = vadd.f32 %v2360, %v3185
  %3187 = vmatprep.mubr.f32.mxu0 %v2090
  %3188 = vmatmul.mubr.f32.gmra.mrb[0].mxu0 %v2089
  %v3189 = vpop.f32.mrb[0].mxu0
  %v3190 = vadd.f32 %v2356, %v3189
  %v3191 = vpop.f32.mrb[0].mxu0
  %v3192 = vadd.f32 %v2360, %v3191
  %3193 = vmatprep.mubr.f32.mxu0 %v2092
  %3194 = vmatmul.mubr.f32.gmra.mrb[0].mxu0 %v2091
  %v3195 = vpop.f32.mrb[0].mxu0
  %v3196 = vadd.f32 %v2356, %v3195
  %v3197 = vpop.f32.mrb[0].mxu0
  %v3198 = vadd.f32 %v2360, %v3197
  %3199 = vmatprep.mubr.f32.mxu0 %v2094
  %3200 = vmatmul.mubr.f32.gmra.mrb[0].mxu0 %v2093
  %v3201 = vpop.f32.mrb[0].mxu0
  %v3202 = vadd.f32 %v2356, %v3201
  %v3203 = vpop.f32.mrb[0].mxu0
  %v3204 = vadd.f32 %v2360, %v3203
  %3205 = vmatprep.mubr.f32.mxu0 %v2096
  %3206 = vmatmul.mubr.f32.gmra.mrb[0].mxu0 %v2095
  %v3207 = vpop.f32.mrb[0].mxu0
  %v3208 = vadd.f32 %v2356, %v3207
  %v3209 = vpop.f32.mrb[0].mxu0
  %v3210 = vadd.f32 %v2360, %v3209
  %3211 = vmatprep.mubr.f32.mxu0 %v2098
  %3212 = vmatmul.mubr.f32.gmra.mrb[0].mxu0 %v2097
  %v3213 = vpop.f32.mrb[0].mxu0
  %v3214 = vadd.f32 %v2356, %v3213
  %v3215 = vpop.f32.mrb[0].mxu0
  %v3216 = vadd.f32 %v2360, %v3215
  %3217 = vmatprep.mubr.f32.mxu0 %v2100
  %3218 = vmatmul.mubr.f32.gmra.mrb[0].mxu0 %v2099
  %v3219 = vpop.f32.mrb[0].mxu0
  %v3220 = vadd.f32 %v2356, %v3219
  %v3221 = vpop.f32.mrb[0].mxu0
  %v3222 = vadd.f32 %v2360, %v3221
  %3223 = vmatprep.mubr.f32.mxu0 %v2102
  %3224 = vmatmul.mubr.f32.gmra.mrb[0].mxu0 %v2101
  %v3225 = vpop.f32.mrb[0].mxu0
  %v3226 = vadd.f32 %v2356, %v3225
  %v3227 = vpop.f32.mrb[0].mxu0
  %v3228 = vadd.f32 %v2360, %v3227
  %3229 = vmatprep.mubr.f32.mxu0 %v2104
  %3230 = vmatmul.mubr.f32.gmra.mrb[0].mxu0 %v2103
  %v3231 = vpop.f32.mrb[0].mxu0
  %v3232 = vadd.f32 %v2356, %v3231
  %v3233 = vpop.f32.mrb[0].mxu0
  %v3234 = vadd.f32 %v2360, %v3233
  %3235 = vmatprep.mubr.f32.mxu0 %v2106
  %3236 = vmatmul.mubr.f32.gmra.mrb[0].mxu0 %v2105
  %v3237 = vpop.f32.mrb[0].mxu0
  %v3238 = vadd.f32 %v2356, %v3237
  %v3239 = vpop.f32.mrb[0].mxu0
  %v3240 = vadd.f32 %v2360, %v3239
  %3241 = vmatprep.mubr.f32.mxu0 %v2108
  %3242 = vmatmul.mubr.f32.gmra.mrb[0].mxu0 %v2107
  %v3243 = vpop.f32.mrb[0].mxu0
  %v3244 = vadd.f32 %v2356, %v3243
  %v3245 = vpop.f32.mrb[0].mxu0
  %v3246 = vadd.f32 %v2360, %v3245
  %3247 = vmatprep.mubr.f32.mxu0 %v2110
  %3248 = vmatmul.mubr.f32.gmra.mrb[0].mxu0 %v2109
  %v3249 = vpop.f32.mrb[0].mxu0
  %v3250 = vadd.f32 %v2356, %v3249
  %v3251 = vpop.f32.mrb[0].mxu0
  %v3252 = vadd.f32 %v2360, %v3251
  %3253 = vmatprep.mubr.f32.mxu0 %v2112
  %3254 = vmatmul.mubr.f32.gmra.mrb[0].mxu0 %v2111
  %v3255 = vpop.f32.mrb[0].mxu0
  %v3256 = vadd.f32 %v2356, %v3255
  %v3257 = vpop.f32.mrb[0].mxu0
  %v3258 = vadd.f32 %v2360, %v3257
  %3259 = vmatprep.mubr.f32.mxu0 %v2114
  %3260 = vmatmul.mubr.f32.gmra.mrb[0].mxu0 %v2113
  %v3261 = vpop.f32.mrb[0].mxu0
  %v3262 = vadd.f32 %v2356, %v3261
  %v3263 = vpop.f32.mrb[0].mxu0
  %v3264 = vadd.f32 %v2360, %v3263
  %3265 = vmatprep.mubr.f32.mxu0 %v2116
  %3266 = vmatmul.mubr.f32.gmra.mrb[0].mxu0 %v2115
  %v3267 = vpop.f32.mrb[0].mxu0
  %v3268 = vadd.f32 %v2356, %v3267
  %v3269 = vpop.f32.mrb[0].mxu0
  %v3270 = vadd.f32 %v2360, %v3269
  %3271 = vmatprep.mubr.f32.mxu0 %v2118
  %3272 = vmatmul.mubr.f32.gmra.mrb[0].mxu0 %v2117
  %v3273 = vpop.f32.mrb[0].mxu0
  %v3274 = vadd.f32 %v2356, %v3273
  %v3275 = vpop.f32.mrb[0].mxu0
  %v3276 = vadd.f32 %v2360, %v3275
  %3277 = vdwg.mxu0
  %3278 = vmatprep.subr.mxu0 %v2124
  %3279 = vmatpush1.msra.mxu0 %v2123
  %3280 = vmatprep.subr.mxu0 %v2131
  %3281 = vmatpush1.msra.mxu0 %v2130
  %3282 = vmatprep.subr.mxu0 %v2138
  %3283 = vmatpush1.msra.mxu0 %v2137
  %3284 = vmatprep.subr.mxu0 %v2145
  %3285 = vmatpush1.msra.mxu0 %v2144
  %3286 = vmatprep.subr.mxu0 %v2152
  %3287 = vmatpush1.msra.mxu0 %v2151
  %3288 = vmatprep.subr.mxu0 %v2159
  %3289 = vmatpush1.msra.mxu0 %v2158
  %3290 = vmatprep.subr.mxu0 %v2166
  %3291 = vmatpush1.msra.mxu0 %v2165
  %3292 = vmatprep.subr.mxu0 %v2173
  %3293 = vmatpush1.msra.mxu0 %v2172
  %3294 = vmatprep.subr.mxu0 %v2180
  %3295 = vmatpush1.msra.mxu0 %v2179
  %3296 = vmatprep.subr.mxu0 %v2187
  %3297 = vmatpush1.msra.mxu0 %v2186
  %3298 = vmatprep.subr.mxu0 %v2194
  %3299 = vmatpush1.msra.mxu0 %v2193
  %3300 = vmatprep.subr.mxu0 %v2201
  %3301 = vmatpush1.msra.mxu0 %v2200
  %3302 = vmatprep.subr.mxu0 %v2208
  %3303 = vmatpush1.msra.mxu0 %v2207
  %3304 = vmatprep.subr.mxu0 %v2215
  %3305 = vmatpush1.msra.mxu0 %v2214
  %3306 = vmatprep.subr.mxu0 %v2222
  %3307 = vmatpush1.msra.mxu0 %v2221
  %3308 = vmatprep.subr.mxu0 %v2229
  %3309 = vmatpush1.msra.mxu0 %v2228
  %3310 = vmatprep.subr.mxu0 %v2236
  %3311 = vmatpush1.msra.mxu0 %v2235
  %3312 = vmatprep.subr.mxu0 %v2243
  %3313 = vmatpush1.msra.mxu0 %v2242
  %3314 = vmatprep.subr.mxu0 %v2250
  %3315 = vmatpush1.msra.mxu0 %v2249
  %3316 = vmatprep.subr.mxu0 %v2257
  %3317 = vmatpush1.msra.mxu0 %v2256
  %3318 = vmatprep.subr.mxu0 %v2264
  %3319 = vmatpush1.msra.mxu0 %v2263
  %3320 = vmatprep.subr.mxu0 %v2271
  %3321 = vmatpush1.msra.mxu0 %v2270
  %3322 = vmatprep.subr.mxu0 %v2278
  %3323 = vmatpush1.msra.mxu0 %v2277
  %3324 = vmatprep.subr.mxu0 %v2285
  %3325 = vmatpush1.msra.mxu0 %v2284
  %3326 = vmatprep.subr.mxu0 %v2292
  %3327 = vmatpush1.msra.mxu0 %v2291
  %3328 = vmatprep.subr.mxu0 %v2299
  %3329 = vmatpush1.msra.mxu0 %v2298
  %3330 = vmatprep.subr.mxu0 %v2306
  %3331 = vmatpush1.msra.mxu0 %v2305
  %3332 = vmatprep.subr.mxu0 %v2313
  %3333 = vmatpush1.msra.mxu0 %v2312
  %3334 = vmatprep.subr.mxu0 %v2320
  %3335 = vmatpush1.msra.mxu0 %v2319
  %3336 = vmatprep.subr.mxu0 %v2327
  %3337 = vmatpush1.msra.mxu0 %v2326
  %3338 = vmatprep.subr.mxu0 %v2334
  %3339 = vmatpush1.msra.mxu0 %v2333
  %3340 = vmatprep.subr.mxu0 %v2341
  %3341 = vmatpush1.msra.mxu0 %v2340
  %3342 = vmatprep.mubr.f32.mxu0 %v1992
  %3343 = vmatmul.mubr.f32.gmra.mrb[0].mxu0 %v1991
  %v3344 = vpop.f32.mrb[0].mxu0
  %v3345 = vadd.f32 %v2364, %v3344
  %v3346 = vpop.f32.mrb[0].mxu0
  %v3347 = vadd.f32 %v2368, %v3346
  %3348 = vmatprep.mubr.f32.mxu0 %v1994
  %3349 = vmatmul.mubr.f32.gmra.mrb[0].mxu0 %v1993
  %v3350 = vpop.f32.mrb[0].mxu0
  %v3351 = vadd.f32 %v2364, %v3350
  %v3352 = vpop.f32.mrb[0].mxu0
  %v3353 = vadd.f32 %v2368, %v3352
  %3354 = vmatprep.mubr.f32.mxu0 %v1996
  %3355 = vmatmul.mubr.f32.gmra.mrb[0].mxu0 %v1995
  %v3356 = vpop.f32.mrb[0].mxu0
  %v3357 = vadd.f32 %v2364, %v3356
  %v3358 = vpop.f32.mrb[0].mxu0
  %v3359 = vadd.f32 %v2368, %v3358
  %3360 = vmatprep.mubr.f32.mxu0 %v1998
  %3361 = vmatmul.mubr.f32.gmra.mrb[0].mxu0 %v1997
  %v3362 = vpop.f32.mrb[0].mxu0
  %v3363 = vadd.f32 %v2364, %v3362
  %v3364 = vpop.f32.mrb[0].mxu0
  %v3365 = vadd.f32 %v2368, %v3364
  %3366 = vmatprep.mubr.f32.mxu0 %v2000
  %3367 = vmatmul.mubr.f32.gmra.mrb[0].mxu0 %v1999
  %v3368 = vpop.f32.mrb[0].mxu0
  %v3369 = vadd.f32 %v2364, %v3368
  %v3370 = vpop.f32.mrb[0].mxu0
  %v3371 = vadd.f32 %v2368, %v3370
  %3372 = vmatprep.mubr.f32.mxu0 %v2002
  %3373 = vmatmul.mubr.f32.gmra.mrb[0].mxu0 %v2001
  %v3374 = vpop.f32.mrb[0].mxu0
  %v3375 = vadd.f32 %v2364, %v3374
  %v3376 = vpop.f32.mrb[0].mxu0
  %v3377 = vadd.f32 %v2368, %v3376
  %3378 = vmatprep.mubr.f32.mxu0 %v2004
  %3379 = vmatmul.mubr.f32.gmra.mrb[0].mxu0 %v2003
  %v3380 = vpop.f32.mrb[0].mxu0
  %v3381 = vadd.f32 %v2364, %v3380
  %v3382 = vpop.f32.mrb[0].mxu0
  %v3383 = vadd.f32 %v2368, %v3382
  %3384 = vmatprep.mubr.f32.mxu0 %v2006
  %3385 = vmatmul.mubr.f32.gmra.mrb[0].mxu0 %v2005
  %v3386 = vpop.f32.mrb[0].mxu0
  %v3387 = vadd.f32 %v2364, %v3386
  %v3388 = vpop.f32.mrb[0].mxu0
  %v3389 = vadd.f32 %v2368, %v3388
  %3390 = vmatprep.mubr.f32.mxu0 %v2008
  %3391 = vmatmul.mubr.f32.gmra.mrb[0].mxu0 %v2007
  %v3392 = vpop.f32.mrb[0].mxu0
  %v3393 = vadd.f32 %v2364, %v3392
  %v3394 = vpop.f32.mrb[0].mxu0
  %v3395 = vadd.f32 %v2368, %v3394
  %3396 = vmatprep.mubr.f32.mxu0 %v2010
  %3397 = vmatmul.mubr.f32.gmra.mrb[0].mxu0 %v2009
  %v3398 = vpop.f32.mrb[0].mxu0
  %v3399 = vadd.f32 %v2364, %v3398
  %v3400 = vpop.f32.mrb[0].mxu0
  %v3401 = vadd.f32 %v2368, %v3400
  %3402 = vmatprep.mubr.f32.mxu0 %v2012
  %3403 = vmatmul.mubr.f32.gmra.mrb[0].mxu0 %v2011
  %v3404 = vpop.f32.mrb[0].mxu0
  %v3405 = vadd.f32 %v2364, %v3404
  %v3406 = vpop.f32.mrb[0].mxu0
  %v3407 = vadd.f32 %v2368, %v3406
  %3408 = vmatprep.mubr.f32.mxu0 %v2014
  %3409 = vmatmul.mubr.f32.gmra.mrb[0].mxu0 %v2013
  %v3410 = vpop.f32.mrb[0].mxu0
  %v3411 = vadd.f32 %v2364, %v3410
  %v3412 = vpop.f32.mrb[0].mxu0
  %v3413 = vadd.f32 %v2368, %v3412
  %3414 = vmatprep.mubr.f32.mxu0 %v2016
  %3415 = vmatmul.mubr.f32.gmra.mrb[0].mxu0 %v2015
  %v3416 = vpop.f32.mrb[0].mxu0
  %v3417 = vadd.f32 %v2364, %v3416
  %v3418 = vpop.f32.mrb[0].mxu0
  %v3419 = vadd.f32 %v2368, %v3418
  %3420 = vmatprep.mubr.f32.mxu0 %v2018
  %3421 = vmatmul.mubr.f32.gmra.mrb[0].mxu0 %v2017
  %v3422 = vpop.f32.mrb[0].mxu0
  %v3423 = vadd.f32 %v2364, %v3422
  %v3424 = vpop.f32.mrb[0].mxu0
  %v3425 = vadd.f32 %v2368, %v3424
  %3426 = vmatprep.mubr.f32.mxu0 %v2020
  %3427 = vmatmul.mubr.f32.gmra.mrb[0].mxu0 %v2019
  %v3428 = vpop.f32.mrb[0].mxu0
  %v3429 = vadd.f32 %v2364, %v3428
  %v3430 = vpop.f32.mrb[0].mxu0
  %v3431 = vadd.f32 %v2368, %v3430
  %3432 = vmatprep.mubr.f32.mxu0 %v2022
  %3433 = vmatmul.mubr.f32.gmra.mrb[0].mxu0 %v2021
  %v3434 = vpop.f32.mrb[0].mxu0
  %v3435 = vadd.f32 %v2364, %v3434
  %v3436 = vpop.f32.mrb[0].mxu0
  %v3437 = vadd.f32 %v2368, %v3436
  %3438 = vmatprep.mubr.f32.mxu0 %v2024
  %3439 = vmatmul.mubr.f32.gmra.mrb[0].mxu0 %v2023
  %v3440 = vpop.f32.mrb[0].mxu0
  %v3441 = vadd.f32 %v2364, %v3440
  %v3442 = vpop.f32.mrb[0].mxu0
  %v3443 = vadd.f32 %v2368, %v3442
  %3444 = vmatprep.mubr.f32.mxu0 %v2026
  %3445 = vmatmul.mubr.f32.gmra.mrb[0].mxu0 %v2025
  %v3446 = vpop.f32.mrb[0].mxu0
  %v3447 = vadd.f32 %v2364, %v3446
  %v3448 = vpop.f32.mrb[0].mxu0
  %v3449 = vadd.f32 %v2368, %v3448
  %3450 = vmatprep.mubr.f32.mxu0 %v2028
  %3451 = vmatmul.mubr.f32.gmra.mrb[0].mxu0 %v2027
  %v3452 = vpop.f32.mrb[0].mxu0
  %v3453 = vadd.f32 %v2364, %v3452
  %v3454 = vpop.f32.mrb[0].mxu0
  %v3455 = vadd.f32 %v2368, %v3454
  %3456 = vmatprep.mubr.f32.mxu0 %v2030
  %3457 = vmatmul.mubr.f32.gmra.mrb[0].mxu0 %v2029
  %v3458 = vpop.f32.mrb[0].mxu0
  %v3459 = vadd.f32 %v2364, %v3458
  %v3460 = vpop.f32.mrb[0].mxu0
  %v3461 = vadd.f32 %v2368, %v3460
  %3462 = vmatprep.mubr.f32.mxu0 %v2032
  %3463 = vmatmul.mubr.f32.gmra.mrb[0].mxu0 %v2031
  %v3464 = vpop.f32.mrb[0].mxu0
  %v3465 = vadd.f32 %v2364, %v3464
  %v3466 = vpop.f32.mrb[0].mxu0
  %v3467 = vadd.f32 %v2368, %v3466
  %3468 = vmatprep.mubr.f32.mxu0 %v2034
  %3469 = vmatmul.mubr.f32.gmra.mrb[0].mxu0 %v2033
  %v3470 = vpop.f32.mrb[0].mxu0
  %v3471 = vadd.f32 %v2364, %v3470
  %v3472 = vpop.f32.mrb[0].mxu0
  %v3473 = vadd.f32 %v2368, %v3472
  %3474 = vmatprep.mubr.f32.mxu0 %v2036
  %3475 = vmatmul.mubr.f32.gmra.mrb[0].mxu0 %v2035
  %v3476 = vpop.f32.mrb[0].mxu0
  %v3477 = vadd.f32 %v2364, %v3476
  %v3478 = vpop.f32.mrb[0].mxu0
  %v3479 = vadd.f32 %v2368, %v3478
  %3480 = vmatprep.mubr.f32.mxu0 %v2038
  %3481 = vmatmul.mubr.f32.gmra.mrb[0].mxu0 %v2037
  %v3482 = vpop.f32.mrb[0].mxu0
  %v3483 = vadd.f32 %v2364, %v3482
  %v3484 = vpop.f32.mrb[0].mxu0
  %v3485 = vadd.f32 %v2368, %v3484
  %3486 = vmatprep.mubr.f32.mxu0 %v2040
  %3487 = vmatmul.mubr.f32.gmra.mrb[0].mxu0 %v2039
  %v3488 = vpop.f32.mrb[0].mxu0
  %v3489 = vadd.f32 %v2364, %v3488
  %v3490 = vpop.f32.mrb[0].mxu0
  %v3491 = vadd.f32 %v2368, %v3490
  %3492 = vmatprep.mubr.f32.mxu0 %v2042
  %3493 = vmatmul.mubr.f32.gmra.mrb[0].mxu0 %v2041
  %v3494 = vpop.f32.mrb[0].mxu0
  %v3495 = vadd.f32 %v2364, %v3494
  %v3496 = vpop.f32.mrb[0].mxu0
  %v3497 = vadd.f32 %v2368, %v3496
  %3498 = vmatprep.mubr.f32.mxu0 %v2044
  %3499 = vmatmul.mubr.f32.gmra.mrb[0].mxu0 %v2043
  %v3500 = vpop.f32.mrb[0].mxu0
  %v3501 = vadd.f32 %v2364, %v3500
  %v3502 = vpop.f32.mrb[0].mxu0
  %v3503 = vadd.f32 %v2368, %v3502
  %3504 = vmatprep.mubr.f32.mxu0 %v2046
  %3505 = vmatmul.mubr.f32.gmra.mrb[0].mxu0 %v2045
  %v3506 = vpop.f32.mrb[0].mxu0
  %v3507 = vadd.f32 %v2364, %v3506
  %v3508 = vpop.f32.mrb[0].mxu0
  %v3509 = vadd.f32 %v2368, %v3508
  %3510 = vmatprep.mubr.f32.mxu0 %v2048
  %3511 = vmatmul.mubr.f32.gmra.mrb[0].mxu0 %v2047
  %v3512 = vpop.f32.mrb[0].mxu0
  %v3513 = vadd.f32 %v2364, %v3512
  %v3514 = vpop.f32.mrb[0].mxu0
  %v3515 = vadd.f32 %v2368, %v3514
  %3516 = vmatprep.mubr.f32.mxu0 %v2050
  %3517 = vmatmul.mubr.f32.gmra.mrb[0].mxu0 %v2049
  %v3518 = vpop.f32.mrb[0].mxu0
  %v3519 = vadd.f32 %v2364, %v3518
  %v3520 = vpop.f32.mrb[0].mxu0
  %v3521 = vadd.f32 %v2368, %v3520
  %3522 = vmatprep.mubr.f32.mxu0 %v2052
  %3523 = vmatmul.mubr.f32.gmra.mrb[0].mxu0 %v2051
  %v3524 = vpop.f32.mrb[0].mxu0
  %v3525 = vadd.f32 %v2364, %v3524
  %v3526 = vpop.f32.mrb[0].mxu0
  %v3527 = vadd.f32 %v2368, %v3526
  %3528 = vmatprep.mubr.f32.mxu0 %v2054
  %3529 = vmatmul.mubr.f32.gmra.mrb[0].mxu0 %v2053
  %v3530 = vpop.f32.mrb[0].mxu0
  %v3531 = vadd.f32 %v2364, %v3530
  %v3532 = vpop.f32.mrb[0].mxu0
  %v3533 = vadd.f32 %v2368, %v3532
  %3534 = vmatprep.mubr.f32.mxu0 %v2056
  %3535 = vmatmul.mubr.f32.gmra.mrb[0].mxu0 %v2055
  %v3536 = vpop.f32.mrb[0].mxu0
  %v3537 = vadd.f32 %v2364, %v3536
  %v3538 = vpop.f32.mrb[0].mxu0
  %v3539 = vadd.f32 %v2368, %v3538
  %3540 = vmatprep.mubr.f32.mxu0 %v2058
  %3541 = vmatmul.mubr.f32.gmra.mrb[0].mxu0 %v2057
  %v3542 = vpop.f32.mrb[0].mxu0
  %v3543 = vadd.f32 %v2364, %v3542
  %v3544 = vpop.f32.mrb[0].mxu0
  %v3545 = vadd.f32 %v2368, %v3544
  %3546 = vmatprep.mubr.f32.mxu0 %v2060
  %3547 = vmatmul.mubr.f32.gmra.mrb[0].mxu0 %v2059
  %v3548 = vpop.f32.mrb[0].mxu0
  %v3549 = vadd.f32 %v2364, %v3548
  %v3550 = vpop.f32.mrb[0].mxu0
  %v3551 = vadd.f32 %v2368, %v3550
  %3552 = vmatprep.mubr.f32.mxu0 %v2062
  %3553 = vmatmul.mubr.f32.gmra.mrb[0].mxu0 %v2061
  %v3554 = vpop.f32.mrb[0].mxu0
  %v3555 = vadd.f32 %v2364, %v3554
  %v3556 = vpop.f32.mrb[0].mxu0
  %v3557 = vadd.f32 %v2368, %v3556
  %3558 = vmatprep.mubr.f32.mxu0 %v2064
  %3559 = vmatmul.mubr.f32.gmra.mrb[0].mxu0 %v2063
  %v3560 = vpop.f32.mrb[0].mxu0
  %v3561 = vadd.f32 %v2364, %v3560
  %v3562 = vpop.f32.mrb[0].mxu0
  %v3563 = vadd.f32 %v2368, %v3562
  %3564 = vmatprep.mubr.f32.mxu0 %v2066
  %3565 = vmatmul.mubr.f32.gmra.mrb[0].mxu0 %v2065
  %v3566 = vpop.f32.mrb[0].mxu0
  %v3567 = vadd.f32 %v2364, %v3566
  %v3568 = vpop.f32.mrb[0].mxu0
  %v3569 = vadd.f32 %v2368, %v3568
  %3570 = vmatprep.mubr.f32.mxu0 %v2068
  %3571 = vmatmul.mubr.f32.gmra.mrb[0].mxu0 %v2067
  %v3572 = vpop.f32.mrb[0].mxu0
  %v3573 = vadd.f32 %v2364, %v3572
  %v3574 = vpop.f32.mrb[0].mxu0
  %v3575 = vadd.f32 %v2368, %v3574
  %3576 = vmatprep.mubr.f32.mxu0 %v2070
  %3577 = vmatmul.mubr.f32.gmra.mrb[0].mxu0 %v2069
  %v3578 = vpop.f32.mrb[0].mxu0
  %v3579 = vadd.f32 %v2364, %v3578
  %v3580 = vpop.f32.mrb[0].mxu0
  %v3581 = vadd.f32 %v2368, %v3580
  %3582 = vmatprep.mubr.f32.mxu0 %v2072
  %3583 = vmatmul.mubr.f32.gmra.mrb[0].mxu0 %v2071
  %v3584 = vpop.f32.mrb[0].mxu0
  %v3585 = vadd.f32 %v2364, %v3584
  %v3586 = vpop.f32.mrb[0].mxu0
  %v3587 = vadd.f32 %v2368, %v3586
  %3588 = vmatprep.mubr.f32.mxu0 %v2074
  %3589 = vmatmul.mubr.f32.gmra.mrb[0].mxu0 %v2073
  %v3590 = vpop.f32.mrb[0].mxu0
  %v3591 = vadd.f32 %v2364, %v3590
  %v3592 = vpop.f32.mrb[0].mxu0
  %v3593 = vadd.f32 %v2368, %v3592
  %3594 = vmatprep.mubr.f32.mxu0 %v2076
  %3595 = vmatmul.mubr.f32.gmra.mrb[0].mxu0 %v2075
  %v3596 = vpop.f32.mrb[0].mxu0
  %v3597 = vadd.f32 %v2364, %v3596
  %v3598 = vpop.f32.mrb[0].mxu0
  %v3599 = vadd.f32 %v2368, %v3598
  %3600 = vmatprep.mubr.f32.mxu0 %v2078
  %3601 = vmatmul.mubr.f32.gmra.mrb[0].mxu0 %v2077
  %v3602 = vpop.f32.mrb[0].mxu0
  %v3603 = vadd.f32 %v2364, %v3602
  %v3604 = vpop.f32.mrb[0].mxu0
  %v3605 = vadd.f32 %v2368, %v3604
  %3606 = vmatprep.mubr.f32.mxu0 %v2080
  %3607 = vmatmul.mubr.f32.gmra.mrb[0].mxu0 %v2079
  %v3608 = vpop.f32.mrb[0].mxu0
  %v3609 = vadd.f32 %v2364, %v3608
  %v3610 = vpop.f32.mrb[0].mxu0
  %v3611 = vadd.f32 %v2368, %v3610
  %3612 = vmatprep.mubr.f32.mxu0 %v2082
  %3613 = vmatmul.mubr.f32.gmra.mrb[0].mxu0 %v2081
  %v3614 = vpop.f32.mrb[0].mxu0
  %v3615 = vadd.f32 %v2364, %v3614
  %v3616 = vpop.f32.mrb[0].mxu0
  %v3617 = vadd.f32 %v2368, %v3616
  %3618 = vmatprep.mubr.f32.mxu0 %v2084
  %3619 = vmatmul.mubr.f32.gmra.mrb[0].mxu0 %v2083
  %v3620 = vpop.f32.mrb[0].mxu0
  %v3621 = vadd.f32 %v2364, %v3620
  %v3622 = vpop.f32.mrb[0].mxu0
  %v3623 = vadd.f32 %v2368, %v3622
  %3624 = vmatprep.mubr.f32.mxu0 %v2086
  %3625 = vmatmul.mubr.f32.gmra.mrb[0].mxu0 %v2085
  %v3626 = vpop.f32.mrb[0].mxu0
  %v3627 = vadd.f32 %v2364, %v3626
  %v3628 = vpop.f32.mrb[0].mxu0
  %v3629 = vadd.f32 %v2368, %v3628
  %3630 = vmatprep.mubr.f32.mxu0 %v2088
  %3631 = vmatmul.mubr.f32.gmra.mrb[0].mxu0 %v2087
  %v3632 = vpop.f32.mrb[0].mxu0
  %v3633 = vadd.f32 %v2364, %v3632
  %v3634 = vpop.f32.mrb[0].mxu0
  %v3635 = vadd.f32 %v2368, %v3634
  %3636 = vmatprep.mubr.f32.mxu0 %v2090
  %3637 = vmatmul.mubr.f32.gmra.mrb[0].mxu0 %v2089
  %v3638 = vpop.f32.mrb[0].mxu0
  %v3639 = vadd.f32 %v2364, %v3638
  %v3640 = vpop.f32.mrb[0].mxu0
  %v3641 = vadd.f32 %v2368, %v3640
  %3642 = vmatprep.mubr.f32.mxu0 %v2092
  %3643 = vmatmul.mubr.f32.gmra.mrb[0].mxu0 %v2091
  %v3644 = vpop.f32.mrb[0].mxu0
  %v3645 = vadd.f32 %v2364, %v3644
  %v3646 = vpop.f32.mrb[0].mxu0
  %v3647 = vadd.f32 %v2368, %v3646
  %3648 = vmatprep.mubr.f32.mxu0 %v2094
  %3649 = vmatmul.mubr.f32.gmra.mrb[0].mxu0 %v2093
  %v3650 = vpop.f32.mrb[0].mxu0
  %v3651 = vadd.f32 %v2364, %v3650
  %v3652 = vpop.f32.mrb[0].mxu0
  %v3653 = vadd.f32 %v2368, %v3652
  %3654 = vmatprep.mubr.f32.mxu0 %v2096
  %3655 = vmatmul.mubr.f32.gmra.mrb[0].mxu0 %v2095
  %v3656 = vpop.f32.mrb[0].mxu0
  %v3657 = vadd.f32 %v2364, %v3656
  %v3658 = vpop.f32.mrb[0].mxu0
  %v3659 = vadd.f32 %v2368, %v3658
  %3660 = vmatprep.mubr.f32.mxu0 %v2098
  %3661 = vmatmul.mubr.f32.gmra.mrb[0].mxu0 %v2097
  %v3662 = vpop.f32.mrb[0].mxu0
  %v3663 = vadd.f32 %v2364, %v3662
  %v3664 = vpop.f32.mrb[0].mxu0
  %v3665 = vadd.f32 %v2368, %v3664
  %3666 = vmatprep.mubr.f32.mxu0 %v2100
  %3667 = vmatmul.mubr.f32.gmra.mrb[0].mxu0 %v2099
  %v3668 = vpop.f32.mrb[0].mxu0
  %v3669 = vadd.f32 %v2364, %v3668
  %v3670 = vpop.f32.mrb[0].mxu0
  %v3671 = vadd.f32 %v2368, %v3670
  %3672 = vmatprep.mubr.f32.mxu0 %v2102
  %3673 = vmatmul.mubr.f32.gmra.mrb[0].mxu0 %v2101
  %v3674 = vpop.f32.mrb[0].mxu0
  %v3675 = vadd.f32 %v2364, %v3674
  %v3676 = vpop.f32.mrb[0].mxu0
  %v3677 = vadd.f32 %v2368, %v3676
  %3678 = vmatprep.mubr.f32.mxu0 %v2104
  %3679 = vmatmul.mubr.f32.gmra.mrb[0].mxu0 %v2103
  %v3680 = vpop.f32.mrb[0].mxu0
  %v3681 = vadd.f32 %v2364, %v3680
  %v3682 = vpop.f32.mrb[0].mxu0
  %v3683 = vadd.f32 %v2368, %v3682
  %3684 = vmatprep.mubr.f32.mxu0 %v2106
  %3685 = vmatmul.mubr.f32.gmra.mrb[0].mxu0 %v2105
  %v3686 = vpop.f32.mrb[0].mxu0
  %v3687 = vadd.f32 %v2364, %v3686
  %v3688 = vpop.f32.mrb[0].mxu0
  %v3689 = vadd.f32 %v2368, %v3688
  %3690 = vmatprep.mubr.f32.mxu0 %v2108
  %3691 = vmatmul.mubr.f32.gmra.mrb[0].mxu0 %v2107
  %v3692 = vpop.f32.mrb[0].mxu0
  %v3693 = vadd.f32 %v2364, %v3692
  %v3694 = vpop.f32.mrb[0].mxu0
  %v3695 = vadd.f32 %v2368, %v3694
  %3696 = vmatprep.mubr.f32.mxu0 %v2110
  %3697 = vmatmul.mubr.f32.gmra.mrb[0].mxu0 %v2109
  %v3698 = vpop.f32.mrb[0].mxu0
  %v3699 = vadd.f32 %v2364, %v3698
  %v3700 = vpop.f32.mrb[0].mxu0
  %v3701 = vadd.f32 %v2368, %v3700
  %3702 = vmatprep.mubr.f32.mxu0 %v2112
  %3703 = vmatmul.mubr.f32.gmra.mrb[0].mxu0 %v2111
  %v3704 = vpop.f32.mrb[0].mxu0
  %v3705 = vadd.f32 %v2364, %v3704
  %v3706 = vpop.f32.mrb[0].mxu0
  %v3707 = vadd.f32 %v2368, %v3706
  %3708 = vmatprep.mubr.f32.mxu0 %v2114
  %3709 = vmatmul.mubr.f32.gmra.mrb[0].mxu0 %v2113
  %v3710 = vpop.f32.mrb[0].mxu0
  %v3711 = vadd.f32 %v2364, %v3710
  %v3712 = vpop.f32.mrb[0].mxu0
  %v3713 = vadd.f32 %v2368, %v3712
  %3714 = vmatprep.mubr.f32.mxu0 %v2116
  %3715 = vmatmul.mubr.f32.gmra.mrb[0].mxu0 %v2115
  %v3716 = vpop.f32.mrb[0].mxu0
  %v3717 = vadd.f32 %v2364, %v3716
  %v3718 = vpop.f32.mrb[0].mxu0
  %v3719 = vadd.f32 %v2368, %v3718
  %3720 = vmatprep.mubr.f32.mxu0 %v2118
  %3721 = vmatmul.mubr.f32.gmra.mrb[0].mxu0 %v2117
  %v3722 = vpop.f32.mrb[0].mxu0
  %v3723 = vadd.f32 %v2364, %v3722
  %v3724 = vpop.f32.mrb[0].mxu0
  %v3725 = vadd.f32 %v2368, %v3724
  %3726 = vdwg.mxu0
  %3727 = vmatprep.subr.mxu0 0.0
  %3728 = vmatpush1.msra.mxu0 %v2125
  %3729 = vmatprep.subr.mxu0 0.0
  %3730 = vmatpush1.msra.mxu0 %v2132
  %3731 = vmatprep.subr.mxu0 0.0
  %3732 = vmatpush1.msra.mxu0 %v2139
  %3733 = vmatprep.subr.mxu0 0.0
  %3734 = vmatpush1.msra.mxu0 %v2146
  %3735 = vmatprep.subr.mxu0 0.0
  %3736 = vmatpush1.msra.mxu0 %v2153
  %3737 = vmatprep.subr.mxu0 0.0
  %3738 = vmatpush1.msra.mxu0 %v2160
  %3739 = vmatprep.subr.mxu0 0.0
  %3740 = vmatpush1.msra.mxu0 %v2167
  %3741 = vmatprep.subr.mxu0 0.0
  %3742 = vmatpush1.msra.mxu0 %v2174
  %3743 = vmatprep.subr.mxu0 0.0
  %3744 = vmatpush1.msra.mxu0 %v2181
  %3745 = vmatprep.subr.mxu0 0.0
  %3746 = vmatpush1.msra.mxu0 %v2188
  %3747 = vmatprep.subr.mxu0 0.0
  %3748 = vmatpush1.msra.mxu0 %v2195
  %3749 = vmatprep.subr.mxu0 0.0
  %3750 = vmatpush1.msra.mxu0 %v2202
  %3751 = vmatprep.subr.mxu0 0.0
  %3752 = vmatpush1.msra.mxu0 %v2209
  %3753 = vmatprep.subr.mxu0 0.0
  %3754 = vmatpush1.msra.mxu0 %v2216
  %3755 = vmatprep.subr.mxu0 0.0
  %3756 = vmatpush1.msra.mxu0 %v2223
  %3757 = vmatprep.subr.mxu0 0.0
  %3758 = vmatpush1.msra.mxu0 %v2230
  %3759 = vmatprep.subr.mxu0 0.0
  %3760 = vmatpush1.msra.mxu0 %v2237
  %3761 = vmatprep.subr.mxu0 0.0
  %3762 = vmatpush1.msra.mxu0 %v2244
  %3763 = vmatprep.subr.mxu0 0.0
  %3764 = vmatpush1.msra.mxu0 %v2251
  %3765 = vmatprep.subr.mxu0 0.0
  %3766 = vmatpush1.msra.mxu0 %v2258
  %3767 = vmatprep.subr.mxu0 0.0
  %3768 = vmatpush1.msra.mxu0 %v2265
  %3769 = vmatprep.subr.mxu0 0.0
  %3770 = vmatpush1.msra.mxu0 %v2272
  %3771 = vmatprep.subr.mxu0 0.0
  %3772 = vmatpush1.msra.mxu0 %v2279
  %3773 = vmatprep.subr.mxu0 0.0
  %3774 = vmatpush1.msra.mxu0 %v2286
  %3775 = vmatprep.subr.mxu0 0.0
  %3776 = vmatpush1.msra.mxu0 %v2293
  %3777 = vmatprep.subr.mxu0 0.0
  %3778 = vmatpush1.msra.mxu0 %v2300
  %3779 = vmatprep.subr.mxu0 0.0
  %3780 = vmatpush1.msra.mxu0 %v2307
  %3781 = vmatprep.subr.mxu0 0.0
  %3782 = vmatpush1.msra.mxu0 %v2314
  %3783 = vmatprep.subr.mxu0 0.0
  %3784 = vmatpush1.msra.mxu0 %v2321
  %3785 = vmatprep.subr.mxu0 0.0
  %3786 = vmatpush1.msra.mxu0 %v2328
  %3787 = vmatprep.subr.mxu0 0.0
  %3788 = vmatpush1.msra.mxu0 %v2335
  %3789 = vmatprep.subr.mxu0 0.0
  %3790 = vmatpush1.msra.mxu0 %v2342
  %3791 = vmatprep.mubr.f32.mxu0 %v1992
  %3792 = vmatmul.mubr.f32.gmra.mrb[0].mxu0 %v1991
  %v3793 = vpop.f32.mrb[0].mxu0
  %v3794 = vadd.f32 %v2372, %v3793
  %v3795 = vpop.f32.mrb[0].mxu0
  %3796 = vmatprep.mubr.f32.mxu0 %v1994
  %3797 = vmatmul.mubr.f32.gmra.mrb[0].mxu0 %v1993
  %v3798 = vpop.f32.mrb[0].mxu0
  %v3799 = vadd.f32 %v2372, %v3798
  %v3800 = vpop.f32.mrb[0].mxu0
  %3801 = vmatprep.mubr.f32.mxu0 %v1996
  %3802 = vmatmul.mubr.f32.gmra.mrb[0].mxu0 %v1995
  %v3803 = vpop.f32.mrb[0].mxu0
  %v3804 = vadd.f32 %v2372, %v3803
  %v3805 = vpop.f32.mrb[0].mxu0
  %3806 = vmatprep.mubr.f32.mxu0 %v1998
  %3807 = vmatmul.mubr.f32.gmra.mrb[0].mxu0 %v1997
  %v3808 = vpop.f32.mrb[0].mxu0
  %v3809 = vadd.f32 %v2372, %v3808
  %v3810 = vpop.f32.mrb[0].mxu0
  %3811 = vmatprep.mubr.f32.mxu0 %v2000
  %3812 = vmatmul.mubr.f32.gmra.mrb[0].mxu0 %v1999
  %v3813 = vpop.f32.mrb[0].mxu0
  %v3814 = vadd.f32 %v2372, %v3813
  %v3815 = vpop.f32.mrb[0].mxu0
  %3816 = vmatprep.mubr.f32.mxu0 %v2002
  %3817 = vmatmul.mubr.f32.gmra.mrb[0].mxu0 %v2001
  %v3818 = vpop.f32.mrb[0].mxu0
  %v3819 = vadd.f32 %v2372, %v3818
  %v3820 = vpop.f32.mrb[0].mxu0
  %3821 = vmatprep.mubr.f32.mxu0 %v2004
  %3822 = vmatmul.mubr.f32.gmra.mrb[0].mxu0 %v2003
  %v3823 = vpop.f32.mrb[0].mxu0
  %v3824 = vadd.f32 %v2372, %v3823
  %v3825 = vpop.f32.mrb[0].mxu0
  %3826 = vmatprep.mubr.f32.mxu0 %v2006
  %3827 = vmatmul.mubr.f32.gmra.mrb[0].mxu0 %v2005
  %v3828 = vpop.f32.mrb[0].mxu0
  %v3829 = vadd.f32 %v2372, %v3828
  %v3830 = vpop.f32.mrb[0].mxu0
  %3831 = vmatprep.mubr.f32.mxu0 %v2008
  %3832 = vmatmul.mubr.f32.gmra.mrb[0].mxu0 %v2007
  %v3833 = vpop.f32.mrb[0].mxu0
  %v3834 = vadd.f32 %v2372, %v3833
  %v3835 = vpop.f32.mrb[0].mxu0
  %3836 = vmatprep.mubr.f32.mxu0 %v2010
  %3837 = vmatmul.mubr.f32.gmra.mrb[0].mxu0 %v2009
  %v3838 = vpop.f32.mrb[0].mxu0
  %v3839 = vadd.f32 %v2372, %v3838
  %v3840 = vpop.f32.mrb[0].mxu0
  %3841 = vmatprep.mubr.f32.mxu0 %v2012
  %3842 = vmatmul.mubr.f32.gmra.mrb[0].mxu0 %v2011
  %v3843 = vpop.f32.mrb[0].mxu0
  %v3844 = vadd.f32 %v2372, %v3843
  %v3845 = vpop.f32.mrb[0].mxu0
  %3846 = vmatprep.mubr.f32.mxu0 %v2014
  %3847 = vmatmul.mubr.f32.gmra.mrb[0].mxu0 %v2013
  %v3848 = vpop.f32.mrb[0].mxu0
  %v3849 = vadd.f32 %v2372, %v3848
  %v3850 = vpop.f32.mrb[0].mxu0
  %3851 = vmatprep.mubr.f32.mxu0 %v2016
  %3852 = vmatmul.mubr.f32.gmra.mrb[0].mxu0 %v2015
  %v3853 = vpop.f32.mrb[0].mxu0
  %v3854 = vadd.f32 %v2372, %v3853
  %v3855 = vpop.f32.mrb[0].mxu0
  %3856 = vmatprep.mubr.f32.mxu0 %v2018
  %3857 = vmatmul.mubr.f32.gmra.mrb[0].mxu0 %v2017
  %v3858 = vpop.f32.mrb[0].mxu0
  %v3859 = vadd.f32 %v2372, %v3858
  %v3860 = vpop.f32.mrb[0].mxu0
  %3861 = vmatprep.mubr.f32.mxu0 %v2020
  %3862 = vmatmul.mubr.f32.gmra.mrb[0].mxu0 %v2019
  %v3863 = vpop.f32.mrb[0].mxu0
  %v3864 = vadd.f32 %v2372, %v3863
  %v3865 = vpop.f32.mrb[0].mxu0
  %3866 = vmatprep.mubr.f32.mxu0 %v2022
  %3867 = vmatmul.mubr.f32.gmra.mrb[0].mxu0 %v2021
  %v3868 = vpop.f32.mrb[0].mxu0
  %v3869 = vadd.f32 %v2372, %v3868
  %v3870 = vpop.f32.mrb[0].mxu0
  %3871 = vmatprep.mubr.f32.mxu0 %v2024
  %3872 = vmatmul.mubr.f32.gmra.mrb[0].mxu0 %v2023
  %v3873 = vpop.f32.mrb[0].mxu0
  %v3874 = vadd.f32 %v2372, %v3873
  %v3875 = vpop.f32.mrb[0].mxu0
  %3876 = vmatprep.mubr.f32.mxu0 %v2026
  %3877 = vmatmul.mubr.f32.gmra.mrb[0].mxu0 %v2025
  %v3878 = vpop.f32.mrb[0].mxu0
  %v3879 = vadd.f32 %v2372, %v3878
  %v3880 = vpop.f32.mrb[0].mxu0
  %3881 = vmatprep.mubr.f32.mxu0 %v2028
  %3882 = vmatmul.mubr.f32.gmra.mrb[0].mxu0 %v2027
  %v3883 = vpop.f32.mrb[0].mxu0
  %v3884 = vadd.f32 %v2372, %v3883
  %v3885 = vpop.f32.mrb[0].mxu0
  %3886 = vmatprep.mubr.f32.mxu0 %v2030
  %3887 = vmatmul.mubr.f32.gmra.mrb[0].mxu0 %v2029
  %v3888 = vpop.f32.mrb[0].mxu0
  %v3889 = vadd.f32 %v2372, %v3888
  %v3890 = vpop.f32.mrb[0].mxu0
  %3891 = vmatprep.mubr.f32.mxu0 %v2032
  %3892 = vmatmul.mubr.f32.gmra.mrb[0].mxu0 %v2031
  %v3893 = vpop.f32.mrb[0].mxu0
  %v3894 = vadd.f32 %v2372, %v3893
  %v3895 = vpop.f32.mrb[0].mxu0
  %3896 = vmatprep.mubr.f32.mxu0 %v2034
  %3897 = vmatmul.mubr.f32.gmra.mrb[0].mxu0 %v2033
  %v3898 = vpop.f32.mrb[0].mxu0
  %v3899 = vadd.f32 %v2372, %v3898
  %v3900 = vpop.f32.mrb[0].mxu0
  %3901 = vmatprep.mubr.f32.mxu0 %v2036
  %3902 = vmatmul.mubr.f32.gmra.mrb[0].mxu0 %v2035
  %v3903 = vpop.f32.mrb[0].mxu0
  %v3904 = vadd.f32 %v2372, %v3903
  %v3905 = vpop.f32.mrb[0].mxu0
  %3906 = vmatprep.mubr.f32.mxu0 %v2038
  %3907 = vmatmul.mubr.f32.gmra.mrb[0].mxu0 %v2037
  %v3908 = vpop.f32.mrb[0].mxu0
  %v3909 = vadd.f32 %v2372, %v3908
  %v3910 = vpop.f32.mrb[0].mxu0
  %3911 = vmatprep.mubr.f32.mxu0 %v2040
  %3912 = vmatmul.mubr.f32.gmra.mrb[0].mxu0 %v2039
  %v3913 = vpop.f32.mrb[0].mxu0
  %v3914 = vadd.f32 %v2372, %v3913
  %v3915 = vpop.f32.mrb[0].mxu0
  %3916 = vmatprep.mubr.f32.mxu0 %v2042
  %3917 = vmatmul.mubr.f32.gmra.mrb[0].mxu0 %v2041
  %v3918 = vpop.f32.mrb[0].mxu0
  %v3919 = vadd.f32 %v2372, %v3918
  %v3920 = vpop.f32.mrb[0].mxu0
  %3921 = vmatprep.mubr.f32.mxu0 %v2044
  %3922 = vmatmul.mubr.f32.gmra.mrb[0].mxu0 %v2043
  %v3923 = vpop.f32.mrb[0].mxu0
  %v3924 = vadd.f32 %v2372, %v3923
  %v3925 = vpop.f32.mrb[0].mxu0
  %3926 = vmatprep.mubr.f32.mxu0 %v2046
  %3927 = vmatmul.mubr.f32.gmra.mrb[0].mxu0 %v2045
  %v3928 = vpop.f32.mrb[0].mxu0
  %v3929 = vadd.f32 %v2372, %v3928
  %v3930 = vpop.f32.mrb[0].mxu0
  %3931 = vmatprep.mubr.f32.mxu0 %v2048
  %3932 = vmatmul.mubr.f32.gmra.mrb[0].mxu0 %v2047
  %v3933 = vpop.f32.mrb[0].mxu0
  %v3934 = vadd.f32 %v2372, %v3933
  %v3935 = vpop.f32.mrb[0].mxu0
  %3936 = vmatprep.mubr.f32.mxu0 %v2050
  %3937 = vmatmul.mubr.f32.gmra.mrb[0].mxu0 %v2049
  %v3938 = vpop.f32.mrb[0].mxu0
  %v3939 = vadd.f32 %v2372, %v3938
  %v3940 = vpop.f32.mrb[0].mxu0
  %3941 = vmatprep.mubr.f32.mxu0 %v2052
  %3942 = vmatmul.mubr.f32.gmra.mrb[0].mxu0 %v2051
  %v3943 = vpop.f32.mrb[0].mxu0
  %v3944 = vadd.f32 %v2372, %v3943
  %v3945 = vpop.f32.mrb[0].mxu0
  %3946 = vmatprep.mubr.f32.mxu0 %v2054
  %3947 = vmatmul.mubr.f32.gmra.mrb[0].mxu0 %v2053
  %v3948 = vpop.f32.mrb[0].mxu0
  %v3949 = vadd.f32 %v2372, %v3948
  %v3950 = vpop.f32.mrb[0].mxu0
  %3951 = vmatprep.mubr.f32.mxu0 %v2056
  %3952 = vmatmul.mubr.f32.gmra.mrb[0].mxu0 %v2055
  %v3953 = vpop.f32.mrb[0].mxu0
  %v3954 = vadd.f32 %v2372, %v3953
  %v3955 = vpop.f32.mrb[0].mxu0
  %3956 = vmatprep.mubr.f32.mxu0 %v2058
  %3957 = vmatmul.mubr.f32.gmra.mrb[0].mxu0 %v2057
  %v3958 = vpop.f32.mrb[0].mxu0
  %v3959 = vadd.f32 %v2372, %v3958
  %v3960 = vpop.f32.mrb[0].mxu0
  %3961 = vmatprep.mubr.f32.mxu0 %v2060
  %3962 = vmatmul.mubr.f32.gmra.mrb[0].mxu0 %v2059
  %v3963 = vpop.f32.mrb[0].mxu0
  %v3964 = vadd.f32 %v2372, %v3963
  %v3965 = vpop.f32.mrb[0].mxu0
  %3966 = vmatprep.mubr.f32.mxu0 %v2062
  %3967 = vmatmul.mubr.f32.gmra.mrb[0].mxu0 %v2061
  %v3968 = vpop.f32.mrb[0].mxu0
  %v3969 = vadd.f32 %v2372, %v3968
  %v3970 = vpop.f32.mrb[0].mxu0
  %3971 = vmatprep.mubr.f32.mxu0 %v2064
  %3972 = vmatmul.mubr.f32.gmra.mrb[0].mxu0 %v2063
  %v3973 = vpop.f32.mrb[0].mxu0
  %v3974 = vadd.f32 %v2372, %v3973
  %v3975 = vpop.f32.mrb[0].mxu0
  %3976 = vmatprep.mubr.f32.mxu0 %v2066
  %3977 = vmatmul.mubr.f32.gmra.mrb[0].mxu0 %v2065
  %v3978 = vpop.f32.mrb[0].mxu0
  %v3979 = vadd.f32 %v2372, %v3978
  %v3980 = vpop.f32.mrb[0].mxu0
  %3981 = vmatprep.mubr.f32.mxu0 %v2068
  %3982 = vmatmul.mubr.f32.gmra.mrb[0].mxu0 %v2067
  %v3983 = vpop.f32.mrb[0].mxu0
  %v3984 = vadd.f32 %v2372, %v3983
  %v3985 = vpop.f32.mrb[0].mxu0
  %3986 = vmatprep.mubr.f32.mxu0 %v2070
  %3987 = vmatmul.mubr.f32.gmra.mrb[0].mxu0 %v2069
  %v3988 = vpop.f32.mrb[0].mxu0
  %v3989 = vadd.f32 %v2372, %v3988
  %v3990 = vpop.f32.mrb[0].mxu0
  %3991 = vmatprep.mubr.f32.mxu0 %v2072
  %3992 = vmatmul.mubr.f32.gmra.mrb[0].mxu0 %v2071
  %v3993 = vpop.f32.mrb[0].mxu0
  %v3994 = vadd.f32 %v2372, %v3993
  %v3995 = vpop.f32.mrb[0].mxu0
  %3996 = vmatprep.mubr.f32.mxu0 %v2074
  %3997 = vmatmul.mubr.f32.gmra.mrb[0].mxu0 %v2073
  %v3998 = vpop.f32.mrb[0].mxu0
  %v3999 = vadd.f32 %v2372, %v3998
  %v4000 = vpop.f32.mrb[0].mxu0
  %4001 = vmatprep.mubr.f32.mxu0 %v2076
  %4002 = vmatmul.mubr.f32.gmra.mrb[0].mxu0 %v2075
  %v4003 = vpop.f32.mrb[0].mxu0
  %v4004 = vadd.f32 %v2372, %v4003
  %v4005 = vpop.f32.mrb[0].mxu0
  %4006 = vmatprep.mubr.f32.mxu0 %v2078
  %4007 = vmatmul.mubr.f32.gmra.mrb[0].mxu0 %v2077
  %v4008 = vpop.f32.mrb[0].mxu0
  %v4009 = vadd.f32 %v2372, %v4008
  %v4010 = vpop.f32.mrb[0].mxu0
  %4011 = vmatprep.mubr.f32.mxu0 %v2080
  %4012 = vmatmul.mubr.f32.gmra.mrb[0].mxu0 %v2079
  %v4013 = vpop.f32.mrb[0].mxu0
  %v4014 = vadd.f32 %v2372, %v4013
  %v4015 = vpop.f32.mrb[0].mxu0
  %4016 = vmatprep.mubr.f32.mxu0 %v2082
  %4017 = vmatmul.mubr.f32.gmra.mrb[0].mxu0 %v2081
  %v4018 = vpop.f32.mrb[0].mxu0
  %v4019 = vadd.f32 %v2372, %v4018
  %v4020 = vpop.f32.mrb[0].mxu0
  %4021 = vmatprep.mubr.f32.mxu0 %v2084
  %4022 = vmatmul.mubr.f32.gmra.mrb[0].mxu0 %v2083
  %v4023 = vpop.f32.mrb[0].mxu0
  %v4024 = vadd.f32 %v2372, %v4023
  %v4025 = vpop.f32.mrb[0].mxu0
  %4026 = vmatprep.mubr.f32.mxu0 %v2086
  %4027 = vmatmul.mubr.f32.gmra.mrb[0].mxu0 %v2085
  %v4028 = vpop.f32.mrb[0].mxu0
  %v4029 = vadd.f32 %v2372, %v4028
  %v4030 = vpop.f32.mrb[0].mxu0
  %4031 = vmatprep.mubr.f32.mxu0 %v2088
  %4032 = vmatmul.mubr.f32.gmra.mrb[0].mxu0 %v2087
  %v4033 = vpop.f32.mrb[0].mxu0
  %v4034 = vadd.f32 %v2372, %v4033
  %v4035 = vpop.f32.mrb[0].mxu0
  %4036 = vmatprep.mubr.f32.mxu0 %v2090
  %4037 = vmatmul.mubr.f32.gmra.mrb[0].mxu0 %v2089
  %v4038 = vpop.f32.mrb[0].mxu0
  %v4039 = vadd.f32 %v2372, %v4038
  %v4040 = vpop.f32.mrb[0].mxu0
  %4041 = vmatprep.mubr.f32.mxu0 %v2092
  %4042 = vmatmul.mubr.f32.gmra.mrb[0].mxu0 %v2091
  %v4043 = vpop.f32.mrb[0].mxu0
  %v4044 = vadd.f32 %v2372, %v4043
  %v4045 = vpop.f32.mrb[0].mxu0
  %4046 = vmatprep.mubr.f32.mxu0 %v2094
  %4047 = vmatmul.mubr.f32.gmra.mrb[0].mxu0 %v2093
  %v4048 = vpop.f32.mrb[0].mxu0
  %v4049 = vadd.f32 %v2372, %v4048
  %v4050 = vpop.f32.mrb[0].mxu0
  %4051 = vmatprep.mubr.f32.mxu0 %v2096
  %4052 = vmatmul.mubr.f32.gmra.mrb[0].mxu0 %v2095
  %v4053 = vpop.f32.mrb[0].mxu0
  %v4054 = vadd.f32 %v2372, %v4053
  %v4055 = vpop.f32.mrb[0].mxu0
  %4056 = vmatprep.mubr.f32.mxu0 %v2098
  %4057 = vmatmul.mubr.f32.gmra.mrb[0].mxu0 %v2097
  %v4058 = vpop.f32.mrb[0].mxu0
  %v4059 = vadd.f32 %v2372, %v4058
  %v4060 = vpop.f32.mrb[0].mxu0
  %4061 = vmatprep.mubr.f32.mxu0 %v2100
  %4062 = vmatmul.mubr.f32.gmra.mrb[0].mxu0 %v2099
  %v4063 = vpop.f32.mrb[0].mxu0
  %v4064 = vadd.f32 %v2372, %v4063
  %v4065 = vpop.f32.mrb[0].mxu0
  %4066 = vmatprep.mubr.f32.mxu0 %v2102
  %4067 = vmatmul.mubr.f32.gmra.mrb[0].mxu0 %v2101
  %v4068 = vpop.f32.mrb[0].mxu0
  %v4069 = vadd.f32 %v2372, %v4068
  %v4070 = vpop.f32.mrb[0].mxu0
  %4071 = vmatprep.mubr.f32.mxu0 %v2104
  %4072 = vmatmul.mubr.f32.gmra.mrb[0].mxu0 %v2103
  %v4073 = vpop.f32.mrb[0].mxu0
  %v4074 = vadd.f32 %v2372, %v4073
  %v4075 = vpop.f32.mrb[0].mxu0
  %4076 = vmatprep.mubr.f32.mxu0 %v2106
  %4077 = vmatmul.mubr.f32.gmra.mrb[0].mxu0 %v2105
  %v4078 = vpop.f32.mrb[0].mxu0
  %v4079 = vadd.f32 %v2372, %v4078
  %v4080 = vpop.f32.mrb[0].mxu0
  %4081 = vmatprep.mubr.f32.mxu0 %v2108
  %4082 = vmatmul.mubr.f32.gmra.mrb[0].mxu0 %v2107
  %v4083 = vpop.f32.mrb[0].mxu0
  %v4084 = vadd.f32 %v2372, %v4083
  %v4085 = vpop.f32.mrb[0].mxu0
  %4086 = vmatprep.mubr.f32.mxu0 %v2110
  %4087 = vmatmul.mubr.f32.gmra.mrb[0].mxu0 %v2109
  %v4088 = vpop.f32.mrb[0].mxu0
  %v4089 = vadd.f32 %v2372, %v4088
  %v4090 = vpop.f32.mrb[0].mxu0
  %4091 = vmatprep.mubr.f32.mxu0 %v2112
  %4092 = vmatmul.mubr.f32.gmra.mrb[0].mxu0 %v2111
  %v4093 = vpop.f32.mrb[0].mxu0
  %v4094 = vadd.f32 %v2372, %v4093
  %v4095 = vpop.f32.mrb[0].mxu0
  %4096 = vmatprep.mubr.f32.mxu0 %v2114
  %4097 = vmatmul.mubr.f32.gmra.mrb[0].mxu0 %v2113
  %v4098 = vpop.f32.mrb[0].mxu0
  %v4099 = vadd.f32 %v2372, %v4098
  %v4100 = vpop.f32.mrb[0].mxu0
  %4101 = vmatprep.mubr.f32.mxu0 %v2116
  %4102 = vmatmul.mubr.f32.gmra.mrb[0].mxu0 %v2115
  %v4103 = vpop.f32.mrb[0].mxu0
  %v4104 = vadd.f32 %v2372, %v4103
  %v4105 = vpop.f32.mrb[0].mxu0
  %4106 = vmatprep.mubr.f32.mxu0 %v2118
  %4107 = vmatmul.mubr.f32.gmra.mrb[0].mxu0 %v2117
  %v4108 = vpop.f32.mrb[0].mxu0
  %v4109 = vadd.f32 %v2372, %v4108
  %v4110 = vpop.f32.mrb[0].mxu0
  %4111 = vdwg.mxu0
  %v4112 = vtanh.pop %v2447
  %v4113 = vtanh.pop %v2449
  %v4114 = vtanh.pop %v2896
  %v4115 = vtanh.pop %v2898
  %v4116 = vtanh.pop %v3345
  %v4117 = vtanh.pop %v3347
  %v4118 = vtanh.pop %v3794
  %v4119 = vtanh.pop %v2453
  %v4120 = vtanh.pop %v2455
  %v4121 = vtanh.pop %v2902
  %v4122 = vtanh.pop %v2904
  %v4123 = vtanh.pop %v3351
  %v4124 = vtanh.pop %v3353
  %v4125 = vtanh.pop %v3799
  %v4126 = vtanh.pop %v2459
  %v4127 = vtanh.pop %v2461
  %v4128 = vtanh.pop %v2908
  %v4129 = vtanh.pop %v2910
  %v4130 = vtanh.pop %v3357
  %v4131 = vtanh.pop %v3359
  %v4132 = vtanh.pop %v3804
  %v4133 = vtanh.pop %v2465
  %v4134 = vtanh.pop %v2467
  %v4135 = vtanh.pop %v2914
  %v4136 = vtanh.pop %v2916
  %v4137 = vtanh.pop %v3363
  %v4138 = vtanh.pop %v3365
  %v4139 = vtanh.pop %v3809
  %v4140 = vtanh.pop %v2471
  %v4141 = vtanh.pop %v2473
  %v4142 = vtanh.pop %v2920
  %v4143 = vtanh.pop %v2922
  %v4144 = vtanh.pop %v3369
  %v4145 = vtanh.pop %v3371
  %v4146 = vtanh.pop %v3814
  %v4147 = vtanh.pop %v2477
  %v4148 = vtanh.pop %v2479
  %v4149 = vtanh.pop %v2926
  %v4150 = vtanh.pop %v2928
  %v4151 = vtanh.pop %v3375
  %v4152 = vtanh.pop %v3377
  %v4153 = vtanh.pop %v3819
  %v4154 = vtanh.pop %v2483
  %v4155 = vtanh.pop %v2485
  %v4156 = vtanh.pop %v2932
  %v4157 = vtanh.pop %v2934
  %v4158 = vtanh.pop %v3381
  %v4159 = vtanh.pop %v3383
  %v4160 = vtanh.pop %v3824
  %v4161 = vtanh.pop %v2489
  %v4162 = vtanh.pop %v2491
  %v4163 = vtanh.pop %v2938
  %v4164 = vtanh.pop %v2940
  %v4165 = vtanh.pop %v3387
  %v4166 = vtanh.pop %v3389
  %v4167 = vtanh.pop %v3829
  %v4168 = vtanh.pop %v2495
  %v4169 = vtanh.pop %v2497
  %v4170 = vtanh.pop %v2944
  %v4171 = vtanh.pop %v2946
  %v4172 = vtanh.pop %v3393
  %v4173 = vtanh.pop %v3395
  %v4174 = vtanh.pop %v3834
  %v4175 = vtanh.pop %v2501
  %v4176 = vtanh.pop %v2503
  %v4177 = vtanh.pop %v2950
  %v4178 = vtanh.pop %v2952
  %v4179 = vtanh.pop %v3399
  %v4180 = vtanh.pop %v3401
  %v4181 = vtanh.pop %v3839
  %v4182 = vtanh.pop %v2507
  %v4183 = vtanh.pop %v2509
  %v4184 = vtanh.pop %v2956
  %v4185 = vtanh.pop %v2958
  %v4186 = vtanh.pop %v3405
  %v4187 = vtanh.pop %v3407
  %v4188 = vtanh.pop %v3844
  %v4189 = vtanh.pop %v2513
  %v4190 = vtanh.pop %v2515
  %v4191 = vtanh.pop %v2962
  %v4192 = vtanh.pop %v2964
  %v4193 = vtanh.pop %v3411
  %v4194 = vtanh.pop %v3413
  %v4195 = vtanh.pop %v3849
  %v4196 = vtanh.pop %v2519
  %v4197 = vtanh.pop %v2521
  %v4198 = vtanh.pop %v2968
  %v4199 = vtanh.pop %v2970
  %v4200 = vtanh.pop %v3417
  %v4201 = vtanh.pop %v3419
  %v4202 = vtanh.pop %v3854
  %v4203 = vtanh.pop %v2525
  %v4204 = vtanh.pop %v2527
  %v4205 = vtanh.pop %v2974
  %v4206 = vtanh.pop %v2976
  %v4207 = vtanh.pop %v3423
  %v4208 = vtanh.pop %v3425
  %v4209 = vtanh.pop %v3859
  %v4210 = vtanh.pop %v2531
  %v4211 = vtanh.pop %v2533
  %v4212 = vtanh.pop %v2980
  %v4213 = vtanh.pop %v2982
  %v4214 = vtanh.pop %v3429
  %v4215 = vtanh.pop %v3431
  %v4216 = vtanh.pop %v3864
  %v4217 = vtanh.pop %v2537
  %v4218 = vtanh.pop %v2539
  %v4219 = vtanh.pop %v2986
  %v4220 = vtanh.pop %v2988
  %v4221 = vtanh.pop %v3435
  %v4222 = vtanh.pop %v3437
  %v4223 = vtanh.pop %v3869
  %v4224 = vtanh.pop %v2543
  %v4225 = vtanh.pop %v2545
  %v4226 = vtanh.pop %v2992
  %v4227 = vtanh.pop %v2994
  %v4228 = vtanh.pop %v3441
  %v4229 = vtanh.pop %v3443
  %v4230 = vtanh.pop %v3874
  %v4231 = vtanh.pop %v2549
  %v4232 = vtanh.pop %v2551
  %v4233 = vtanh.pop %v2998
  %v4234 = vtanh.pop %v3000
  %v4235 = vtanh.pop %v3447
  %v4236 = vtanh.pop %v3449
  %v4237 = vtanh.pop %v3879
  %v4238 = vtanh.pop %v2555
  %v4239 = vtanh.pop %v2557
  %v4240 = vtanh.pop %v3004
  %v4241 = vtanh.pop %v3006
  %v4242 = vtanh.pop %v3453
  %v4243 = vtanh.pop %v3455
  %v4244 = vtanh.pop %v3884
  %v4245 = vtanh.pop %v2561
  %v4246 = vtanh.pop %v2563
  %v4247 = vtanh.pop %v3010
  %v4248 = vtanh.pop %v3012
  %v4249 = vtanh.pop %v3459
  %v4250 = vtanh.pop %v3461
  %v4251 = vtanh.pop %v3889
  %v4252 = vtanh.pop %v2567
  %v4253 = vtanh.pop %v2569
  %v4254 = vtanh.pop %v3016
  %v4255 = vtanh.pop %v3018
  %v4256 = vtanh.pop %v3465
  %v4257 = vtanh.pop %v3467
  %v4258 = vtanh.pop %v3894
  %v4259 = vtanh.pop %v2573
  %v4260 = vtanh.pop %v2575
  %v4261 = vtanh.pop %v3022
  %v4262 = vtanh.pop %v3024
  %v4263 = vtanh.pop %v3471
  %v4264 = vtanh.pop %v3473
  %v4265 = vtanh.pop %v3899
  %v4266 = vtanh.pop %v2579
  %v4267 = vtanh.pop %v2581
  %v4268 = vtanh.pop %v3028
  %v4269 = vtanh.pop %v3030
  %v4270 = vtanh.pop %v3477
  %v4271 = vtanh.pop %v3479
  %v4272 = vtanh.pop %v3904
  %v4273 = vtanh.pop %v2585
  %v4274 = vtanh.pop %v2587
  %v4275 = vtanh.pop %v3034
  %v4276 = vtanh.pop %v3036
  %v4277 = vtanh.pop %v3483
  %v4278 = vtanh.pop %v3485
  %v4279 = vtanh.pop %v3909
  %v4280 = vtanh.pop %v2591
  %v4281 = vtanh.pop %v2593
  %v4282 = vtanh.pop %v3040
  %v4283 = vtanh.pop %v3042
  %v4284 = vtanh.pop %v3489
  %v4285 = vtanh.pop %v3491
  %v4286 = vtanh.pop %v3914
  %v4287 = vtanh.pop %v2597
  %v4288 = vtanh.pop %v2599
  %v4289 = vtanh.pop %v3046
  %v4290 = vtanh.pop %v3048
  %v4291 = vtanh.pop %v3495
  %v4292 = vtanh.pop %v3497
  %v4293 = vtanh.pop %v3919
  %v4294 = vtanh.pop %v2603
  %v4295 = vtanh.pop %v2605
  %v4296 = vtanh.pop %v3052
  %v4297 = vtanh.pop %v3054
  %v4298 = vtanh.pop %v3501
  %v4299 = vtanh.pop %v3503
  %v4300 = vtanh.pop %v3924
  %v4301 = vtanh.pop %v2609
  %v4302 = vtanh.pop %v2611
  %v4303 = vtanh.pop %v3058
  %v4304 = vtanh.pop %v3060
  %v4305 = vtanh.pop %v3507
  %v4306 = vtanh.pop %v3509
  %v4307 = vtanh.pop %v3929
  %v4308 = vtanh.pop %v2615
  %v4309 = vtanh.pop %v2617
  %v4310 = vtanh.pop %v3064
  %v4311 = vtanh.pop %v3066
  %v4312 = vtanh.pop %v3513
  %v4313 = vtanh.pop %v3515
  %v4314 = vtanh.pop %v3934
  %v4315 = vtanh.pop %v2621
  %v4316 = vtanh.pop %v2623
  %v4317 = vtanh.pop %v3070
  %v4318 = vtanh.pop %v3072
  %v4319 = vtanh.pop %v3519
  %v4320 = vtanh.pop %v3521
  %v4321 = vtanh.pop %v3939
  %v4322 = vtanh.pop %v2627
  %v4323 = vtanh.pop %v2629
  %v4324 = vtanh.pop %v3076
  %v4325 = vtanh.pop %v3078
  %v4326 = vtanh.pop %v3525
  %v4327 = vtanh.pop %v3527
  %v4328 = vtanh.pop %v3944
  %v4329 = vtanh.pop %v2633
  %v4330 = vtanh.pop %v2635
  %v4331 = vtanh.pop %v3082
  %v4332 = vtanh.pop %v3084
  %v4333 = vtanh.pop %v3531
  %v4334 = vtanh.pop %v3533
  %v4335 = vtanh.pop %v3949
  %v4336 = vtanh.pop %v2639
  %v4337 = vtanh.pop %v2641
  %v4338 = vtanh.pop %v3088
  %v4339 = vtanh.pop %v3090
  %v4340 = vtanh.pop %v3537
  %v4341 = vtanh.pop %v3539
  %v4342 = vtanh.pop %v3954
  %v4343 = vtanh.pop %v2645
  %v4344 = vtanh.pop %v2647
  %v4345 = vtanh.pop %v3094
  %v4346 = vtanh.pop %v3096
  %v4347 = vtanh.pop %v3543
  %v4348 = vtanh.pop %v3545
  %v4349 = vtanh.pop %v3959
  %v4350 = vtanh.pop %v2651
  %v4351 = vtanh.pop %v2653
  %v4352 = vtanh.pop %v3100
  %v4353 = vtanh.pop %v3102
  %v4354 = vtanh.pop %v3549
  %v4355 = vtanh.pop %v3551
  %v4356 = vtanh.pop %v3964
  %v4357 = vtanh.pop %v2657
  %v4358 = vtanh.pop %v2659
  %v4359 = vtanh.pop %v3106
  %v4360 = vtanh.pop %v3108
  %v4361 = vtanh.pop %v3555
  %v4362 = vtanh.pop %v3557
  %v4363 = vtanh.pop %v3969
  %v4364 = vtanh.pop %v2663
  %v4365 = vtanh.pop %v2665
  %v4366 = vtanh.pop %v3112
  %v4367 = vtanh.pop %v3114
  %v4368 = vtanh.pop %v3561
  %v4369 = vtanh.pop %v3563
  %v4370 = vtanh.pop %v3974
  %v4371 = vtanh.pop %v2669
  %v4372 = vtanh.pop %v2671
  %v4373 = vtanh.pop %v3118
  %v4374 = vtanh.pop %v3120
  %v4375 = vtanh.pop %v3567
  %v4376 = vtanh.pop %v3569
  %v4377 = vtanh.pop %v3979
  %v4378 = vtanh.pop %v2675
  %v4379 = vtanh.pop %v2677
  %v4380 = vtanh.pop %v3124
  %v4381 = vtanh.pop %v3126
  %v4382 = vtanh.pop %v3573
  %v4383 = vtanh.pop %v3575
  %v4384 = vtanh.pop %v3984
  %v4385 = vtanh.pop %v2681
  %v4386 = vtanh.pop %v2683
  %v4387 = vtanh.pop %v3130
  %v4388 = vtanh.pop %v3132
  %v4389 = vtanh.pop %v3579
  %v4390 = vtanh.pop %v3581
  %v4391 = vtanh.pop %v3989
  %v4392 = vtanh.pop %v2687
  %v4393 = vtanh.pop %v2689
  %v4394 = vtanh.pop %v3136
  %v4395 = vtanh.pop %v3138
  %v4396 = vtanh.pop %v3585
  %v4397 = vtanh.pop %v3587
  %v4398 = vtanh.pop %v3994
  %v4399 = vtanh.pop %v2693
  %v4400 = vtanh.pop %v2695
  %v4401 = vtanh.pop %v3142
  %v4402 = vtanh.pop %v3144
  %v4403 = vtanh.pop %v3591
  %v4404 = vtanh.pop %v3593
  %v4405 = vtanh.pop %v3999
  %v4406 = vtanh.pop %v2699
  %v4407 = vtanh.pop %v2701
  %v4408 = vtanh.pop %v3148
  %v4409 = vtanh.pop %v3150
  %v4410 = vtanh.pop %v3597
  %v4411 = vtanh.pop %v3599
  %v4412 = vtanh.pop %v4004
  %v4413 = vtanh.pop %v2705
  %v4414 = vtanh.pop %v2707
  %v4415 = vtanh.pop %v3154
  %v4416 = vtanh.pop %v3156
  %v4417 = vtanh.pop %v3603
  %v4418 = vtanh.pop %v3605
  %v4419 = vtanh.pop %v4009
  %v4420 = vtanh.pop %v2711
  %v4421 = vtanh.pop %v2713
  %v4422 = vtanh.pop %v3160
  %v4423 = vtanh.pop %v3162
  %v4424 = vtanh.pop %v3609
  %v4425 = vtanh.pop %v3611
  %v4426 = vtanh.pop %v4014
  %v4427 = vtanh.pop %v2717
  %v4428 = vtanh.pop %v2719
  %v4429 = vtanh.pop %v3166
  %v4430 = vtanh.pop %v3168
  %v4431 = vtanh.pop %v3615
  %v4432 = vtanh.pop %v3617
  %v4433 = vtanh.pop %v4019
  %v4434 = vtanh.pop %v2723
  %v4435 = vtanh.pop %v2725
  %v4436 = vtanh.pop %v3172
  %v4437 = vtanh.pop %v3174
  %v4438 = vtanh.pop %v3621
  %v4439 = vtanh.pop %v3623
  %v4440 = vtanh.pop %v4024
  %v4441 = vtanh.pop %v2729
  %v4442 = vtanh.pop %v2731
  %v4443 = vtanh.pop %v3178
  %v4444 = vtanh.pop %v3180
  %v4445 = vtanh.pop %v3627
  %v4446 = vtanh.pop %v3629
  %v4447 = vtanh.pop %v4029
  %v4448 = vtanh.pop %v2735
  %v4449 = vtanh.pop %v2737
  %v4450 = vtanh.pop %v3184
  %v4451 = vtanh.pop %v3186
  %v4452 = vtanh.pop %v3633
  %v4453 = vtanh.pop %v3635
  %v4454 = vtanh.pop %v4034
  %v4455 = vtanh.pop %v2741
  %v4456 = vtanh.pop %v2743
  %v4457 = vtanh.pop %v3190
  %v4458 = vtanh.pop %v3192
  %v4459 = vtanh.pop %v3639
  %v4460 = vtanh.pop %v3641
  %v4461 = vtanh.pop %v4039
  %v4462 = vtanh.pop %v2747
  %v4463 = vtanh.pop %v2749
  %v4464 = vtanh.pop %v3196
  %v4465 = vtanh.pop %v3198
  %v4466 = vtanh.pop %v3645
  %v4467 = vtanh.pop %v3647
  %v4468 = vtanh.pop %v4044
  %v4469 = vtanh.pop %v2753
  %v4470 = vtanh.pop %v2755
  %v4471 = vtanh.pop %v3202
  %v4472 = vtanh.pop %v3204
  %v4473 = vtanh.pop %v3651
  %v4474 = vtanh.pop %v3653
  %v4475 = vtanh.pop %v4049
  %v4476 = vtanh.pop %v2759
  %v4477 = vtanh.pop %v2761
  %v4478 = vtanh.pop %v3208
  %v4479 = vtanh.pop %v3210
  %v4480 = vtanh.pop %v3657
  %v4481 = vtanh.pop %v3659
  %v4482 = vtanh.pop %v4054
  %v4483 = vtanh.pop %v2765
  %v4484 = vtanh.pop %v2767
  %v4485 = vtanh.pop %v3214
  %v4486 = vtanh.pop %v3216
  %v4487 = vtanh.pop %v3663
  %v4488 = vtanh.pop %v3665
  %v4489 = vtanh.pop %v4059
  %v4490 = vtanh.pop %v2771
  %v4491 = vtanh.pop %v2773
  %v4492 = vtanh.pop %v3220
  %v4493 = vtanh.pop %v3222
  %v4494 = vtanh.pop %v3669
  %v4495 = vtanh.pop %v3671
  %v4496 = vtanh.pop %v4064
  %v4497 = vtanh.pop %v2777
  %v4498 = vtanh.pop %v2779
  %v4499 = vtanh.pop %v3226
  %v4500 = vtanh.pop %v3228
  %v4501 = vtanh.pop %v3675
  %v4502 = vtanh.pop %v3677
  %v4503 = vtanh.pop %v4069
  %v4504 = vtanh.pop %v2783
  %v4505 = vtanh.pop %v2785
  %v4506 = vtanh.pop %v3232
  %v4507 = vtanh.pop %v3234
  %v4508 = vtanh.pop %v3681
  %v4509 = vtanh.pop %v3683
  %v4510 = vtanh.pop %v4074
  %v4511 = vtanh.pop %v2789
  %v4512 = vtanh.pop %v2791
  %v4513 = vtanh.pop %v3238
  %v4514 = vtanh.pop %v3240
  %v4515 = vtanh.pop %v3687
  %v4516 = vtanh.pop %v3689
  %v4517 = vtanh.pop %v4079
  %v4518 = vtanh.pop %v2795
  %v4519 = vtanh.pop %v2797
  %v4520 = vtanh.pop %v3244
  %v4521 = vtanh.pop %v3246
  %v4522 = vtanh.pop %v3693
  %v4523 = vtanh.pop %v3695
  %v4524 = vtanh.pop %v4084
  %v4525 = vtanh.pop %v2801
  %v4526 = vtanh.pop %v2803
  %v4527 = vtanh.pop %v3250
  %v4528 = vtanh.pop %v3252
  %v4529 = vtanh.pop %v3699
  %v4530 = vtanh.pop %v3701
  %v4531 = vtanh.pop %v4089
  %v4532 = vtanh.pop %v2807
  %v4533 = vtanh.pop %v2809
  %v4534 = vtanh.pop %v3256
  %v4535 = vtanh.pop %v3258
  %v4536 = vtanh.pop %v3705
  %v4537 = vtanh.pop %v3707
  %v4538 = vtanh.pop %v4094
  %v4539 = vtanh.pop %v2813
  %v4540 = vtanh.pop %v2815
  %v4541 = vtanh.pop %v3262
  %v4542 = vtanh.pop %v3264
  %v4543 = vtanh.pop %v3711
  %v4544 = vtanh.pop %v3713
  %v4545 = vtanh.pop %v4099
  %v4546 = vtanh.pop %v2819
  %v4547 = vtanh.pop %v2821
  %v4548 = vtanh.pop %v3268
  %v4549 = vtanh.pop %v3270
  %v4550 = vtanh.pop %v3717
  %v4551 = vtanh.pop %v3719
  %v4552 = vtanh.pop %v4104
  %v4553 = vtanh.pop %v2825
  %v4554 = vtanh.pop %v2827
  %v4555 = vtanh.pop %v3274
  %v4556 = vtanh.pop %v3276
  %v4557 = vtanh.pop %v3723
  %v4558 = vtanh.pop %v3725
  %v4559 = vtanh.pop %v4109
  %4560 = vst [vmem:[%s7] sm:$0xff] %v4112
  %4561 = vst [vmem:[%s7 + $0x8] sm:$0xff] %v4113
  %4562 = vst [vmem:[%s7 + $0x10] sm:$0xff] %v4114
  %4563 = vst [vmem:[%s7 + $0x18] sm:$0xff] %v4115
  %4564 = vst [vmem:[%s7 + $0x20] sm:$0xff] %v4116
  %4565 = vst [vmem:[%s7 + $0x28] sm:$0xff] %v4117
  %vm4566 = vcmask 130048
  %4567 = vst.msk [vmem:[%s7 + $0x30] sm:$0xff] %vm4566, %v4118
  %4568 = vst [vmem:[%s7 + $0x38] sm:$0xff] %v4119
  %4569 = vst [vmem:[%s7 + $0x40] sm:$0xff] %v4120
  %4570 = vst [vmem:[%s7 + $0x48] sm:$0xff] %v4121
  %4571 = vst [vmem:[%s7 + $0x50] sm:$0xff] %v4122
  %4572 = vst [vmem:[%s7 + $0x58] sm:$0xff] %v4123
  %4573 = vst [vmem:[%s7 + $0x60] sm:$0xff] %v4124
  %4574 = vst.msk [vmem:[%s7 + $0x68] sm:$0xff] %vm4566, %v4125
  %4575 = vst [vmem:[%s7 + $0x70] sm:$0xff] %v4126
  %4576 = vst [vmem:[%s7 + $0x78] sm:$0xff] %v4127
  %4577 = vst [vmem:[%s7 + $0x80] sm:$0xff] %v4128
  %4578 = vst [vmem:[%s7 + $0x88] sm:$0xff] %v4129
  %4579 = vst [vmem:[%s7 + $0x90] sm:$0xff] %v4130
  %4580 = vst [vmem:[%s7 + $0x98] sm:$0xff] %v4131
  %4581 = vst.msk [vmem:[%s7 + $0xa0] sm:$0xff] %vm4566, %v4132
  %4582 = vst [vmem:[%s7 + $0xa8] sm:$0xff] %v4133
  %4583 = vst [vmem:[%s7 + $0xb0] sm:$0xff] %v4134
  %4584 = vst [vmem:[%s7 + $0xb8] sm:$0xff] %v4135
  %4585 = vst [vmem:[%s7 + $0xc0] sm:$0xff] %v4136
  %4586 = vst [vmem:[%s7 + $0xc8] sm:$0xff] %v4137
  %4587 = vst [vmem:[%s7 + $0xd0] sm:$0xff] %v4138
  %4588 = vst.msk [vmem:[%s7 + $0xd8] sm:$0xff] %vm4566, %v4139
  %4589 = vst [vmem:[%s7 + $0xe0] sm:$0xff] %v4140
  %4590 = vst [vmem:[%s7 + $0xe8] sm:$0xff] %v4141
  %4591 = vst [vmem:[%s7 + $0xf0] sm:$0xff] %v4142
  %4592 = vst [vmem:[%s7 + $0xf8] sm:$0xff] %v4143
  %4593 = vst [vmem:[%s7 + $0x100] sm:$0xff] %v4144
  %4594 = vst [vmem:[%s7 + $0x108] sm:$0xff] %v4145
  %4595 = vst.msk [vmem:[%s7 + $0x110] sm:$0xff] %vm4566, %v4146
  %4596 = vst [vmem:[%s7 + $0x118] sm:$0xff] %v4147
  %4597 = vst [vmem:[%s7 + $0x120] sm:$0xff] %v4148
  %4598 = vst [vmem:[%s7 + $0x128] sm:$0xff] %v4149
  %4599 = vst [vmem:[%s7 + $0x130] sm:$0xff] %v4150
  %4600 = vst [vmem:[%s7 + $0x138] sm:$0xff] %v4151
  %4601 = vst [vmem:[%s7 + $0x140] sm:$0xff] %v4152
  %4602 = vst.msk [vmem:[%s7 + $0x148] sm:$0xff] %vm4566, %v4153
  %4603 = vst [vmem:[%s7 + $0x150] sm:$0xff] %v4154
  %4604 = vst [vmem:[%s7 + $0x158] sm:$0xff] %v4155
  %4605 = vst [vmem:[%s7 + $0x160] sm:$0xff] %v4156
  %4606 = vst [vmem:[%s7 + $0x168] sm:$0xff] %v4157
  %4607 = vst [vmem:[%s7 + $0x170] sm:$0xff] %v4158
  %4608 = vst [vmem:[%s7 + $0x178] sm:$0xff] %v4159
  %4609 = vst.msk [vmem:[%s7 + $0x180] sm:$0xff] %vm4566, %v4160
  %4610 = vst [vmem:[%s7 + $0x188] sm:$0xff] %v4161
  %4611 = vst [vmem:[%s7 + $0x190] sm:$0xff] %v4162
  %4612 = vst [vmem:[%s7 + $0x198] sm:$0xff] %v4163
  %4613 = vst [vmem:[%s7 + $0x1a0] sm:$0xff] %v4164
  %4614 = vst [vmem:[%s7 + $0x1a8] sm:$0xff] %v4165
  %4615 = vst [vmem:[%s7 + $0x1b0] sm:$0xff] %v4166
  %4616 = vst.msk [vmem:[%s7 + $0x1b8] sm:$0xff] %vm4566, %v4167
  %4617 = vst [vmem:[%s7 + $0x1c0] sm:$0xff] %v4168
  %4618 = vst [vmem:[%s7 + $0x1c8] sm:$0xff] %v4169
  %4619 = vst [vmem:[%s7 + $0x1d0] sm:$0xff] %v4170
  %4620 = vst [vmem:[%s7 + $0x1d8] sm:$0xff] %v4171
  %4621 = vst [vmem:[%s7 + $0x1e0] sm:$0xff] %v4172
  %4622 = vst [vmem:[%s7 + $0x1e8] sm:$0xff] %v4173
  %4623 = vst.msk [vmem:[%s7 + $0x1f0] sm:$0xff] %vm4566, %v4174
  %4624 = vst [vmem:[%s7 + $0x1f8] sm:$0xff] %v4175
  %4625 = vst [vmem:[%s7 + $0x200] sm:$0xff] %v4176
  %4626 = vst [vmem:[%s7 + $0x208] sm:$0xff] %v4177
  %4627 = vst [vmem:[%s7 + $0x210] sm:$0xff] %v4178
  %4628 = vst [vmem:[%s7 + $0x218] sm:$0xff] %v4179
  %4629 = vst [vmem:[%s7 + $0x220] sm:$0xff] %v4180
  %4630 = vst.msk [vmem:[%s7 + $0x228] sm:$0xff] %vm4566, %v4181
  %4631 = vst [vmem:[%s7 + $0x230] sm:$0xff] %v4182
  %4632 = vst [vmem:[%s7 + $0x238] sm:$0xff] %v4183
  %4633 = vst [vmem:[%s7 + $0x240] sm:$0xff] %v4184
  %4634 = vst [vmem:[%s7 + $0x248] sm:$0xff] %v4185
  %4635 = vst [vmem:[%s7 + $0x250] sm:$0xff] %v4186
  %4636 = vst [vmem:[%s7 + $0x258] sm:$0xff] %v4187
  %4637 = vst.msk [vmem:[%s7 + $0x260] sm:$0xff] %vm4566, %v4188
  %4638 = vst [vmem:[%s7 + $0x268] sm:$0xff] %v4189
  %4639 = vst [vmem:[%s7 + $0x270] sm:$0xff] %v4190
  %4640 = vst [vmem:[%s7 + $0x278] sm:$0xff] %v4191
  %4641 = vst [vmem:[%s7 + $0x280] sm:$0xff] %v4192
  %4642 = vst [vmem:[%s7 + $0x288] sm:$0xff] %v4193
  %4643 = vst [vmem:[%s7 + $0x290] sm:$0xff] %v4194
  %4644 = vst.msk [vmem:[%s7 + $0x298] sm:$0xff] %vm4566, %v4195
  %4645 = vst [vmem:[%s7 + $0x2a0] sm:$0xff] %v4196
  %4646 = vst [vmem:[%s7 + $0x2a8] sm:$0xff] %v4197
  %4647 = vst [vmem:[%s7 + $0x2b0] sm:$0xff] %v4198
  %4648 = vst [vmem:[%s7 + $0x2b8] sm:$0xff] %v4199
  %4649 = vst [vmem:[%s7 + $0x2c0] sm:$0xff] %v4200
  %4650 = vst [vmem:[%s7 + $0x2c8] sm:$0xff] %v4201
  %4651 = vst.msk [vmem:[%s7 + $0x2d0] sm:$0xff] %vm4566, %v4202
  %4652 = vst [vmem:[%s7 + $0x2d8] sm:$0xff] %v4203
  %4653 = vst [vmem:[%s7 + $0x2e0] sm:$0xff] %v4204
  %4654 = vst [vmem:[%s7 + $0x2e8] sm:$0xff] %v4205
  %4655 = vst [vmem:[%s7 + $0x2f0] sm:$0xff] %v4206
  %4656 = vst [vmem:[%s7 + $0x2f8] sm:$0xff] %v4207
  %4657 = vst [vmem:[%s7 + $0x300] sm:$0xff] %v4208
  %4658 = vst.msk [vmem:[%s7 + $0x308] sm:$0xff] %vm4566, %v4209
  %4659 = vst [vmem:[%s7 + $0x310] sm:$0xff] %v4210
  %4660 = vst [vmem:[%s7 + $0x318] sm:$0xff] %v4211
  %4661 = vst [vmem:[%s7 + $0x320] sm:$0xff] %v4212
  %4662 = vst [vmem:[%s7 + $0x328] sm:$0xff] %v4213
  %4663 = vst [vmem:[%s7 + $0x330] sm:$0xff] %v4214
  %4664 = vst [vmem:[%s7 + $0x338] sm:$0xff] %v4215
  %4665 = vst.msk [vmem:[%s7 + $0x340] sm:$0xff] %vm4566, %v4216
  %4666 = vst [vmem:[%s7 + $0x348] sm:$0xff] %v4217
  %4667 = vst [vmem:[%s7 + $0x350] sm:$0xff] %v4218
  %4668 = vst [vmem:[%s7 + $0x358] sm:$0xff] %v4219
  %4669 = vst [vmem:[%s7 + $0x360] sm:$0xff] %v4220
  %4670 = vst [vmem:[%s7 + $0x368] sm:$0xff] %v4221
  %4671 = vst [vmem:[%s7 + $0x370] sm:$0xff] %v4222
  %4672 = vst.msk [vmem:[%s7 + $0x378] sm:$0xff] %vm4566, %v4223
  %4673 = vst [vmem:[%s7 + $0x380] sm:$0xff] %v4224
  %4674 = vst [vmem:[%s7 + $0x388] sm:$0xff] %v4225
  %4675 = vst [vmem:[%s7 + $0x390] sm:$0xff] %v4226
  %4676 = vst [vmem:[%s7 + $0x398] sm:$0xff] %v4227
  %4677 = vst [vmem:[%s7 + $0x3a0] sm:$0xff] %v4228
  %4678 = vst [vmem:[%s7 + $0x3a8] sm:$0xff] %v4229
  %4679 = vst.msk [vmem:[%s7 + $0x3b0] sm:$0xff] %vm4566, %v4230
  %4680 = vst [vmem:[%s7 + $0x3b8] sm:$0xff] %v4231
  %4681 = vst [vmem:[%s7 + $0x3c0] sm:$0xff] %v4232
  %4682 = vst [vmem:[%s7 + $0x3c8] sm:$0xff] %v4233
  %4683 = vst [vmem:[%s7 + $0x3d0] sm:$0xff] %v4234
  %4684 = vst [vmem:[%s7 + $0x3d8] sm:$0xff] %v4235
  %4685 = vst [vmem:[%s7 + $0x3e0] sm:$0xff] %v4236
  %4686 = vst.msk [vmem:[%s7 + $0x3e8] sm:$0xff] %vm4566, %v4237
  %4687 = vst [vmem:[%s7 + $0x3f0] sm:$0xff] %v4238
  %4688 = vst [vmem:[%s7 + $0x3f8] sm:$0xff] %v4239
  %4689 = vst [vmem:[%s7 + $0x400] sm:$0xff] %v4240
  %4690 = vst [vmem:[%s7 + $0x408] sm:$0xff] %v4241
  %4691 = vst [vmem:[%s7 + $0x410] sm:$0xff] %v4242
  %4692 = vst [vmem:[%s7 + $0x418] sm:$0xff] %v4243
  %4693 = vst.msk [vmem:[%s7 + $0x420] sm:$0xff] %vm4566, %v4244
  %4694 = vst [vmem:[%s7 + $0x428] sm:$0xff] %v4245
  %4695 = vst [vmem:[%s7 + $0x430] sm:$0xff] %v4246
  %4696 = vst [vmem:[%s7 + $0x438] sm:$0xff] %v4247
  %4697 = vst [vmem:[%s7 + $0x440] sm:$0xff] %v4248
  %4698 = vst [vmem:[%s7 + $0x448] sm:$0xff] %v4249
  %4699 = vst [vmem:[%s7 + $0x450] sm:$0xff] %v4250
  %4700 = vst.msk [vmem:[%s7 + $0x458] sm:$0xff] %vm4566, %v4251
  %4701 = vst [vmem:[%s7 + $0x460] sm:$0xff] %v4252
  %4702 = vst [vmem:[%s7 + $0x468] sm:$0xff] %v4253
  %4703 = vst [vmem:[%s7 + $0x470] sm:$0xff] %v4254
  %4704 = vst [vmem:[%s7 + $0x478] sm:$0xff] %v4255
  %4705 = vst [vmem:[%s7 + $0x480] sm:$0xff] %v4256
  %4706 = vst [vmem:[%s7 + $0x488] sm:$0xff] %v4257
  %4707 = vst.msk [vmem:[%s7 + $0x490] sm:$0xff] %vm4566, %v4258
  %4708 = vst [vmem:[%s7 + $0x498] sm:$0xff] %v4259
  %4709 = vst [vmem:[%s7 + $0x4a0] sm:$0xff] %v4260
  %4710 = vst [vmem:[%s7 + $0x4a8] sm:$0xff] %v4261
  %4711 = vst [vmem:[%s7 + $0x4b0] sm:$0xff] %v4262
  %4712 = vst [vmem:[%s7 + $0x4b8] sm:$0xff] %v4263
  %4713 = vst [vmem:[%s7 + $0x4c0] sm:$0xff] %v4264
  %4714 = vst.msk [vmem:[%s7 + $0x4c8] sm:$0xff] %vm4566, %v4265
  %4715 = vst [vmem:[%s7 + $0x4d0] sm:$0xff] %v4266
  %4716 = vst [vmem:[%s7 + $0x4d8] sm:$0xff] %v4267
  %4717 = vst [vmem:[%s7 + $0x4e0] sm:$0xff] %v4268
  %4718 = vst [vmem:[%s7 + $0x4e8] sm:$0xff] %v4269
  %4719 = vst [vmem:[%s7 + $0x4f0] sm:$0xff] %v4270
  %4720 = vst [vmem:[%s7 + $0x4f8] sm:$0xff] %v4271
  %4721 = vst.msk [vmem:[%s7 + $0x500] sm:$0xff] %vm4566, %v4272
  %4722 = vst [vmem:[%s7 + $0x508] sm:$0xff] %v4273
  %4723 = vst [vmem:[%s7 + $0x510] sm:$0xff] %v4274
  %4724 = vst [vmem:[%s7 + $0x518] sm:$0xff] %v4275
  %4725 = vst [vmem:[%s7 + $0x520] sm:$0xff] %v4276
  %4726 = vst [vmem:[%s7 + $0x528] sm:$0xff] %v4277
  %4727 = vst [vmem:[%s7 + $0x530] sm:$0xff] %v4278
  %4728 = vst.msk [vmem:[%s7 + $0x538] sm:$0xff] %vm4566, %v4279
  %4729 = vst [vmem:[%s7 + $0x540] sm:$0xff] %v4280
  %4730 = vst [vmem:[%s7 + $0x548] sm:$0xff] %v4281
  %4731 = vst [vmem:[%s7 + $0x550] sm:$0xff] %v4282
  %4732 = vst [vmem:[%s7 + $0x558] sm:$0xff] %v4283
  %4733 = vst [vmem:[%s7 + $0x560] sm:$0xff] %v4284
  %4734 = vst [vmem:[%s7 + $0x568] sm:$0xff] %v4285
  %4735 = vst.msk [vmem:[%s7 + $0x570] sm:$0xff] %vm4566, %v4286
  %4736 = vst [vmem:[%s7 + $0x578] sm:$0xff] %v4287
  %4737 = vst [vmem:[%s7 + $0x580] sm:$0xff] %v4288
  %4738 = vst [vmem:[%s7 + $0x588] sm:$0xff] %v4289
  %4739 = vst [vmem:[%s7 + $0x590] sm:$0xff] %v4290
  %4740 = vst [vmem:[%s7 + $0x598] sm:$0xff] %v4291
  %4741 = vst [vmem:[%s7 + $0x5a0] sm:$0xff] %v4292
  %4742 = vst.msk [vmem:[%s7 + $0x5a8] sm:$0xff] %vm4566, %v4293
  %4743 = vst [vmem:[%s7 + $0x5b0] sm:$0xff] %v4294
  %4744 = vst [vmem:[%s7 + $0x5b8] sm:$0xff] %v4295
  %4745 = vst [vmem:[%s7 + $0x5c0] sm:$0xff] %v4296
  %4746 = vst [vmem:[%s7 + $0x5c8] sm:$0xff] %v4297
  %4747 = vst [vmem:[%s7 + $0x5d0] sm:$0xff] %v4298
  %4748 = vst [vmem:[%s7 + $0x5d8] sm:$0xff] %v4299
  %4749 = vst.msk [vmem:[%s7 + $0x5e0] sm:$0xff] %vm4566, %v4300
  %4750 = vst [vmem:[%s7 + $0x5e8] sm:$0xff] %v4301
  %4751 = vst [vmem:[%s7 + $0x5f0] sm:$0xff] %v4302
  %4752 = vst [vmem:[%s7 + $0x5f8] sm:$0xff] %v4303
  %4753 = vst [vmem:[%s7 + $0x600] sm:$0xff] %v4304
  %4754 = vst [vmem:[%s7 + $0x608] sm:$0xff] %v4305
  %4755 = vst [vmem:[%s7 + $0x610] sm:$0xff] %v4306
  %4756 = vst.msk [vmem:[%s7 + $0x618] sm:$0xff] %vm4566, %v4307
  %4757 = vst [vmem:[%s7 + $0x620] sm:$0xff] %v4308
  %4758 = vst [vmem:[%s7 + $0x628] sm:$0xff] %v4309
  %4759 = vst [vmem:[%s7 + $0x630] sm:$0xff] %v4310
  %4760 = vst [vmem:[%s7 + $0x638] sm:$0xff] %v4311
  %4761 = vst [vmem:[%s7 + $0x640] sm:$0xff] %v4312
  %4762 = vst [vmem:[%s7 + $0x648] sm:$0xff] %v4313
  %4763 = vst.msk [vmem:[%s7 + $0x650] sm:$0xff] %vm4566, %v4314
  %4764 = vst [vmem:[%s7 + $0x658] sm:$0xff] %v4315
  %4765 = vst [vmem:[%s7 + $0x660] sm:$0xff] %v4316
  %4766 = vst [vmem:[%s7 + $0x668] sm:$0xff] %v4317
  %4767 = vst [vmem:[%s7 + $0x670] sm:$0xff] %v4318
  %4768 = vst [vmem:[%s7 + $0x678] sm:$0xff] %v4319
  %4769 = vst [vmem:[%s7 + $0x680] sm:$0xff] %v4320
  %4770 = vst.msk [vmem:[%s7 + $0x688] sm:$0xff] %vm4566, %v4321
  %4771 = vst [vmem:[%s7 + $0x690] sm:$0xff] %v4322
  %4772 = vst [vmem:[%s7 + $0x698] sm:$0xff] %v4323
  %4773 = vst [vmem:[%s7 + $0x6a0] sm:$0xff] %v4324
  %4774 = vst [vmem:[%s7 + $0x6a8] sm:$0xff] %v4325
  %4775 = vst [vmem:[%s7 + $0x6b0] sm:$0xff] %v4326
  %4776 = vst [vmem:[%s7 + $0x6b8] sm:$0xff] %v4327
  %4777 = vst.msk [vmem:[%s7 + $0x6c0] sm:$0xff] %vm4566, %v4328
  %4778 = vst [vmem:[%s7 + $0x6c8] sm:$0xff] %v4329
  %4779 = vst [vmem:[%s7 + $0x6d0] sm:$0xff] %v4330
  %4780 = vst [vmem:[%s7 + $0x6d8] sm:$0xff] %v4331
  %4781 = vst [vmem:[%s7 + $0x6e0] sm:$0xff] %v4332
  %4782 = vst [vmem:[%s7 + $0x6e8] sm:$0xff] %v4333
  %4783 = vst [vmem:[%s7 + $0x6f0] sm:$0xff] %v4334
  %4784 = vst.msk [vmem:[%s7 + $0x6f8] sm:$0xff] %vm4566, %v4335
  %4785 = vst [vmem:[%s7 + $0x700] sm:$0xff] %v4336
  %4786 = vst [vmem:[%s7 + $0x708] sm:$0xff] %v4337
  %4787 = vst [vmem:[%s7 + $0x710] sm:$0xff] %v4338
  %4788 = vst [vmem:[%s7 + $0x718] sm:$0xff] %v4339
  %4789 = vst [vmem:[%s7 + $0x720] sm:$0xff] %v4340
  %4790 = vst [vmem:[%s7 + $0x728] sm:$0xff] %v4341
  %4791 = vst.msk [vmem:[%s7 + $0x730] sm:$0xff] %vm4566, %v4342
  %4792 = vst [vmem:[%s7 + $0x738] sm:$0xff] %v4343
  %4793 = vst [vmem:[%s7 + $0x740] sm:$0xff] %v4344
  %4794 = vst [vmem:[%s7 + $0x748] sm:$0xff] %v4345
  %4795 = vst [vmem:[%s7 + $0x750] sm:$0xff] %v4346
  %4796 = vst [vmem:[%s7 + $0x758] sm:$0xff] %v4347
  %4797 = vst [vmem:[%s7 + $0x760] sm:$0xff] %v4348
  %4798 = vst.msk [vmem:[%s7 + $0x768] sm:$0xff] %vm4566, %v4349
  %4799 = vst [vmem:[%s7 + $0x770] sm:$0xff] %v4350
  %4800 = vst [vmem:[%s7 + $0x778] sm:$0xff] %v4351
  %4801 = vst [vmem:[%s7 + $0x780] sm:$0xff] %v4352
  %4802 = vst [vmem:[%s7 + $0x788] sm:$0xff] %v4353
  %4803 = vst [vmem:[%s7 + $0x790] sm:$0xff] %v4354
  %4804 = vst [vmem:[%s7 + $0x798] sm:$0xff] %v4355
  %4805 = vst.msk [vmem:[%s7 + $0x7a0] sm:$0xff] %vm4566, %v4356
  %4806 = vst [vmem:[%s7 + $0x7a8] sm:$0xff] %v4357
  %4807 = vst [vmem:[%s7 + $0x7b0] sm:$0xff] %v4358
  %4808 = vst [vmem:[%s7 + $0x7b8] sm:$0xff] %v4359
  %4809 = vst [vmem:[%s7 + $0x7c0] sm:$0xff] %v4360
  %4810 = vst [vmem:[%s7 + $0x7c8] sm:$0xff] %v4361
  %4811 = vst [vmem:[%s7 + $0x7d0] sm:$0xff] %v4362
  %4812 = vst.msk [vmem:[%s7 + $0x7d8] sm:$0xff] %vm4566, %v4363
  %4813 = vst [vmem:[%s7 + $0x7e0] sm:$0xff] %v4364
  %4814 = vst [vmem:[%s7 + $0x7e8] sm:$0xff] %v4365
  %4815 = vst [vmem:[%s7 + $0x7f0] sm:$0xff] %v4366
  %4816 = vst [vmem:[%s7 + $0x7f8] sm:$0xff] %v4367
  %4817 = vst [vmem:[%s7 + $0x800] sm:$0xff] %v4368
  %4818 = vst [vmem:[%s7 + $0x808] sm:$0xff] %v4369
  %4819 = vst.msk [vmem:[%s7 + $0x810] sm:$0xff] %vm4566, %v4370
  %4820 = vst [vmem:[%s7 + $0x818] sm:$0xff] %v4371
  %4821 = vst [vmem:[%s7 + $0x820] sm:$0xff] %v4372
  %4822 = vst [vmem:[%s7 + $0x828] sm:$0xff] %v4373
  %4823 = vst [vmem:[%s7 + $0x830] sm:$0xff] %v4374
  %4824 = vst [vmem:[%s7 + $0x838] sm:$0xff] %v4375
  %4825 = vst [vmem:[%s7 + $0x840] sm:$0xff] %v4376
  %4826 = vst.msk [vmem:[%s7 + $0x848] sm:$0xff] %vm4566, %v4377
  %4827 = vst [vmem:[%s7 + $0x850] sm:$0xff] %v4378
  %4828 = vst [vmem:[%s7 + $0x858] sm:$0xff] %v4379
  %4829 = vst [vmem:[%s7 + $0x860] sm:$0xff] %v4380
  %4830 = vst [vmem:[%s7 + $0x868] sm:$0xff] %v4381
  %4831 = vst [vmem:[%s7 + $0x870] sm:$0xff] %v4382
  %4832 = vst [vmem:[%s7 + $0x878] sm:$0xff] %v4383
  %4833 = vst.msk [vmem:[%s7 + $0x880] sm:$0xff] %vm4566, %v4384
  %4834 = vst [vmem:[%s7 + $0x888] sm:$0xff] %v4385
  %4835 = vst [vmem:[%s7 + $0x890] sm:$0xff] %v4386
  %4836 = vst [vmem:[%s7 + $0x898] sm:$0xff] %v4387
  %4837 = vst [vmem:[%s7 + $0x8a0] sm:$0xff] %v4388
  %4838 = vst [vmem:[%s7 + $0x8a8] sm:$0xff] %v4389
  %4839 = vst [vmem:[%s7 + $0x8b0] sm:$0xff] %v4390
  %4840 = vst.msk [vmem:[%s7 + $0x8b8] sm:$0xff] %vm4566, %v4391
  %4841 = vst [vmem:[%s7 + $0x8c0] sm:$0xff] %v4392
  %4842 = vst [vmem:[%s7 + $0x8c8] sm:$0xff] %v4393
  %4843 = vst [vmem:[%s7 + $0x8d0] sm:$0xff] %v4394
  %4844 = vst [vmem:[%s7 + $0x8d8] sm:$0xff] %v4395
  %4845 = vst [vmem:[%s7 + $0x8e0] sm:$0xff] %v4396
  %4846 = vst [vmem:[%s7 + $0x8e8] sm:$0xff] %v4397
  %4847 = vst.msk [vmem:[%s7 + $0x8f0] sm:$0xff] %vm4566, %v4398
  %4848 = vst [vmem:[%s7 + $0x8f8] sm:$0xff] %v4399
  %4849 = vst [vmem:[%s7 + $0x900] sm:$0xff] %v4400
  %4850 = vst [vmem:[%s7 + $0x908] sm:$0xff] %v4401
  %4851 = vst [vmem:[%s7 + $0x910] sm:$0xff] %v4402
  %4852 = vst [vmem:[%s7 + $0x918] sm:$0xff] %v4403
  %4853 = vst [vmem:[%s7 + $0x920] sm:$0xff] %v4404
  %4854 = vst.msk [vmem:[%s7 + $0x928] sm:$0xff] %vm4566, %v4405
  %4855 = vst [vmem:[%s7 + $0x930] sm:$0xff] %v4406
  %4856 = vst [vmem:[%s7 + $0x938] sm:$0xff] %v4407
  %4857 = vst [vmem:[%s7 + $0x940] sm:$0xff] %v4408
  %4858 = vst [vmem:[%s7 + $0x948] sm:$0xff] %v4409
  %4859 = vst [vmem:[%s7 + $0x950] sm:$0xff] %v4410
  %4860 = vst [vmem:[%s7 + $0x958] sm:$0xff] %v4411
  %4861 = vst.msk [vmem:[%s7 + $0x960] sm:$0xff] %vm4566, %v4412
  %4862 = vst [vmem:[%s7 + $0x968] sm:$0xff] %v4413
  %4863 = vst [vmem:[%s7 + $0x970] sm:$0xff] %v4414
  %4864 = vst [vmem:[%s7 + $0x978] sm:$0xff] %v4415
  %4865 = vst [vmem:[%s7 + $0x980] sm:$0xff] %v4416
  %4866 = vst [vmem:[%s7 + $0x988] sm:$0xff] %v4417
  %4867 = vst [vmem:[%s7 + $0x990] sm:$0xff] %v4418
  %4868 = vst.msk [vmem:[%s7 + $0x998] sm:$0xff] %vm4566, %v4419
  %4869 = vst [vmem:[%s7 + $0x9a0] sm:$0xff] %v4420
  %4870 = vst [vmem:[%s7 + $0x9a8] sm:$0xff] %v4421
  %4871 = vst [vmem:[%s7 + $0x9b0] sm:$0xff] %v4422
  %4872 = vst [vmem:[%s7 + $0x9b8] sm:$0xff] %v4423
  %4873 = vst [vmem:[%s7 + $0x9c0] sm:$0xff] %v4424
  %4874 = vst [vmem:[%s7 + $0x9c8] sm:$0xff] %v4425
  %4875 = vst.msk [vmem:[%s7 + $0x9d0] sm:$0xff] %vm4566, %v4426
  %4876 = vst [vmem:[%s7 + $0x9d8] sm:$0xff] %v4427
  %4877 = vst [vmem:[%s7 + $0x9e0] sm:$0xff] %v4428
  %4878 = vst [vmem:[%s7 + $0x9e8] sm:$0xff] %v4429
  %4879 = vst [vmem:[%s7 + $0x9f0] sm:$0xff] %v4430
  %4880 = vst [vmem:[%s7 + $0x9f8] sm:$0xff] %v4431
  %4881 = vst [vmem:[%s7 + $0xa00] sm:$0xff] %v4432
  %4882 = vst.msk [vmem:[%s7 + $0xa08] sm:$0xff] %vm4566, %v4433
  %4883 = vst [vmem:[%s7 + $0xa10] sm:$0xff] %v4434
  %4884 = vst [vmem:[%s7 + $0xa18] sm:$0xff] %v4435
  %4885 = vst [vmem:[%s7 + $0xa20] sm:$0xff] %v4436
  %4886 = vst [vmem:[%s7 + $0xa28] sm:$0xff] %v4437
  %4887 = vst [vmem:[%s7 + $0xa30] sm:$0xff] %v4438
  %4888 = vst [vmem:[%s7 + $0xa38] sm:$0xff] %v4439
  %4889 = vst.msk [vmem:[%s7 + $0xa40] sm:$0xff] %vm4566, %v4440
  %4890 = vst [vmem:[%s7 + $0xa48] sm:$0xff] %v4441
  %4891 = vst [vmem:[%s7 + $0xa50] sm:$0xff] %v4442
  %4892 = vst [vmem:[%s7 + $0xa58] sm:$0xff] %v4443
  %4893 = vst [vmem:[%s7 + $0xa60] sm:$0xff] %v4444
  %4894 = vst [vmem:[%s7 + $0xa68] sm:$0xff] %v4445
  %4895 = vst [vmem:[%s7 + $0xa70] sm:$0xff] %v4446
  %4896 = vst.msk [vmem:[%s7 + $0xa78] sm:$0xff] %vm4566, %v4447
  %4897 = vst [vmem:[%s7 + $0xa80] sm:$0xff] %v4448
  %4898 = vst [vmem:[%s7 + $0xa88] sm:$0xff] %v4449
  %4899 = vst [vmem:[%s7 + $0xa90] sm:$0xff] %v4450
  %4900 = vst [vmem:[%s7 + $0xa98] sm:$0xff] %v4451
  %4901 = vst [vmem:[%s7 + $0xaa0] sm:$0xff] %v4452
  %4902 = vst [vmem:[%s7 + $0xaa8] sm:$0xff] %v4453
  %4903 = vst.msk [vmem:[%s7 + $0xab0] sm:$0xff] %vm4566, %v4454
  %4904 = vst [vmem:[%s7 + $0xab8] sm:$0xff] %v4455
  %4905 = vst [vmem:[%s7 + $0xac0] sm:$0xff] %v4456
  %4906 = vst [vmem:[%s7 + $0xac8] sm:$0xff] %v4457
  %4907 = vst [vmem:[%s7 + $0xad0] sm:$0xff] %v4458
  %4908 = vst [vmem:[%s7 + $0xad8] sm:$0xff] %v4459
  %4909 = vst [vmem:[%s7 + $0xae0] sm:$0xff] %v4460
  %4910 = vst.msk [vmem:[%s7 + $0xae8] sm:$0xff] %vm4566, %v4461
  %4911 = vst [vmem:[%s7 + $0xaf0] sm:$0xff] %v4462
  %4912 = vst [vmem:[%s7 + $0xaf8] sm:$0xff] %v4463
  %4913 = vst [vmem:[%s7 + $0xb00] sm:$0xff] %v4464
  %4914 = vst [vmem:[%s7 + $0xb08] sm:$0xff] %v4465
  %4915 = vst [vmem:[%s7 + $0xb10] sm:$0xff] %v4466
  %4916 = vst [vmem:[%s7 + $0xb18] sm:$0xff] %v4467
  %4917 = vst.msk [vmem:[%s7 + $0xb20] sm:$0xff] %vm4566, %v4468
  %4918 = vst [vmem:[%s7 + $0xb28] sm:$0xff] %v4469
  %4919 = vst [vmem:[%s7 + $0xb30] sm:$0xff] %v4470
  %4920 = vst [vmem:[%s7 + $0xb38] sm:$0xff] %v4471
  %4921 = vst [vmem:[%s7 + $0xb40] sm:$0xff] %v4472
  %4922 = vst [vmem:[%s7 + $0xb48] sm:$0xff] %v4473
  %4923 = vst [vmem:[%s7 + $0xb50] sm:$0xff] %v4474
  %4924 = vst.msk [vmem:[%s7 + $0xb58] sm:$0xff] %vm4566, %v4475
  %4925 = vst [vmem:[%s7 + $0xb60] sm:$0xff] %v4476
  %4926 = vst [vmem:[%s7 + $0xb68] sm:$0xff] %v4477
  %4927 = vst [vmem:[%s7 + $0xb70] sm:$0xff] %v4478
  %4928 = vst [vmem:[%s7 + $0xb78] sm:$0xff] %v4479
  %4929 = vst [vmem:[%s7 + $0xb80] sm:$0xff] %v4480
  %4930 = vst [vmem:[%s7 + $0xb88] sm:$0xff] %v4481
  %4931 = vst.msk [vmem:[%s7 + $0xb90] sm:$0xff] %vm4566, %v4482
  %4932 = vst [vmem:[%s7 + $0xb98] sm:$0xff] %v4483
  %4933 = vst [vmem:[%s7 + $0xba0] sm:$0xff] %v4484
  %4934 = vst [vmem:[%s7 + $0xba8] sm:$0xff] %v4485
  %4935 = vst [vmem:[%s7 + $0xbb0] sm:$0xff] %v4486
  %4936 = vst [vmem:[%s7 + $0xbb8] sm:$0xff] %v4487
  %4937 = vst [vmem:[%s7 + $0xbc0] sm:$0xff] %v4488
  %4938 = vst.msk [vmem:[%s7 + $0xbc8] sm:$0xff] %vm4566, %v4489
  %4939 = vst [vmem:[%s7 + $0xbd0] sm:$0xff] %v4490
  %4940 = vst [vmem:[%s7 + $0xbd8] sm:$0xff] %v4491
  %4941 = vst [vmem:[%s7 + $0xbe0] sm:$0xff] %v4492
  %4942 = vst [vmem:[%s7 + $0xbe8] sm:$0xff] %v4493
  %4943 = vst [vmem:[%s7 + $0xbf0] sm:$0xff] %v4494
  %4944 = vst [vmem:[%s7 + $0xbf8] sm:$0xff] %v4495
  %4945 = vst.msk [vmem:[%s7 + $0xc00] sm:$0xff] %vm4566, %v4496
  %4946 = vst [vmem:[%s7 + $0xc08] sm:$0xff] %v4497
  %4947 = vst [vmem:[%s7 + $0xc10] sm:$0xff] %v4498
  %4948 = vst [vmem:[%s7 + $0xc18] sm:$0xff] %v4499
  %4949 = vst [vmem:[%s7 + $0xc20] sm:$0xff] %v4500
  %4950 = vst [vmem:[%s7 + $0xc28] sm:$0xff] %v4501
  %4951 = vst [vmem:[%s7 + $0xc30] sm:$0xff] %v4502
  %4952 = vst.msk [vmem:[%s7 + $0xc38] sm:$0xff] %vm4566, %v4503
  %4953 = vst [vmem:[%s7 + $0xc40] sm:$0xff] %v4504
  %4954 = vst [vmem:[%s7 + $0xc48] sm:$0xff] %v4505
  %4955 = vst [vmem:[%s7 + $0xc50] sm:$0xff] %v4506
  %4956 = vst [vmem:[%s7 + $0xc58] sm:$0xff] %v4507
  %4957 = vst [vmem:[%s7 + $0xc60] sm:$0xff] %v4508
  %4958 = vst [vmem:[%s7 + $0xc68] sm:$0xff] %v4509
  %4959 = vst.msk [vmem:[%s7 + $0xc70] sm:$0xff] %vm4566, %v4510
  %4960 = vst [vmem:[%s7 + $0xc78] sm:$0xff] %v4511
  %4961 = vst [vmem:[%s7 + $0xc80] sm:$0xff] %v4512
  %4962 = vst [vmem:[%s7 + $0xc88] sm:$0xff] %v4513
  %4963 = vst [vmem:[%s7 + $0xc90] sm:$0xff] %v4514
  %4964 = vst [vmem:[%s7 + $0xc98] sm:$0xff] %v4515
  %4965 = vst [vmem:[%s7 + $0xca0] sm:$0xff] %v4516
  %4966 = vst.msk [vmem:[%s7 + $0xca8] sm:$0xff] %vm4566, %v4517
  %4967 = vst [vmem:[%s7 + $0xcb0] sm:$0xff] %v4518
  %4968 = vst [vmem:[%s7 + $0xcb8] sm:$0xff] %v4519
  %4969 = vst [vmem:[%s7 + $0xcc0] sm:$0xff] %v4520
  %4970 = vst [vmem:[%s7 + $0xcc8] sm:$0xff] %v4521
  %4971 = vst [vmem:[%s7 + $0xcd0] sm:$0xff] %v4522
  %4972 = vst [vmem:[%s7 + $0xcd8] sm:$0xff] %v4523
  %4973 = vst.msk [vmem:[%s7 + $0xce0] sm:$0xff] %vm4566, %v4524
  %4974 = vst [vmem:[%s7 + $0xce8] sm:$0xff] %v4525
  %4975 = vst [vmem:[%s7 + $0xcf0] sm:$0xff] %v4526
  %4976 = vst [vmem:[%s7 + $0xcf8] sm:$0xff] %v4527
  %4977 = vst [vmem:[%s7 + $0xd00] sm:$0xff] %v4528
  %4978 = vst [vmem:[%s7 + $0xd08] sm:$0xff] %v4529
  %4979 = vst [vmem:[%s7 + $0xd10] sm:$0xff] %v4530
  %4980 = vst.msk [vmem:[%s7 + $0xd18] sm:$0xff] %vm4566, %v4531
  %4981 = vst [vmem:[%s7 + $0xd20] sm:$0xff] %v4532
  %4982 = vst [vmem:[%s7 + $0xd28] sm:$0xff] %v4533
  %4983 = vst [vmem:[%s7 + $0xd30] sm:$0xff] %v4534
  %4984 = vst [vmem:[%s7 + $0xd38] sm:$0xff] %v4535
  %4985 = vst [vmem:[%s7 + $0xd40] sm:$0xff] %v4536
  %4986 = vst [vmem:[%s7 + $0xd48] sm:$0xff] %v4537
  %4987 = vst.msk [vmem:[%s7 + $0xd50] sm:$0xff] %vm4566, %v4538
  %4988 = vst [vmem:[%s7 + $0xd58] sm:$0xff] %v4539
  %4989 = vst [vmem:[%s7 + $0xd60] sm:$0xff] %v4540
  %4990 = vst [vmem:[%s7 + $0xd68] sm:$0xff] %v4541
  %4991 = vst [vmem:[%s7 + $0xd70] sm:$0xff] %v4542
  %4992 = vst [vmem:[%s7 + $0xd78] sm:$0xff] %v4543
  %4993 = vst [vmem:[%s7 + $0xd80] sm:$0xff] %v4544
  %4994 = vst.msk [vmem:[%s7 + $0xd88] sm:$0xff] %vm4566, %v4545
  %4995 = vst [vmem:[%s7 + $0xd90] sm:$0xff] %v4546
  %4996 = vst [vmem:[%s7 + $0xd98] sm:$0xff] %v4547
  %4997 = vst [vmem:[%s7 + $0xda0] sm:$0xff] %v4548
  %4998 = vst [vmem:[%s7 + $0xda8] sm:$0xff] %v4549
  %4999 = vst [vmem:[%s7 + $0xdb0] sm:$0xff] %v4550
  %5000 = vst [vmem:[%s7 + $0xdb8] sm:$0xff] %v4551
  %5001 = vst.msk [vmem:[%s7 + $0xdc0] sm:$0xff] %vm4566, %v4552
  %5002 = vst [vmem:[%s7 + $0xdc8] sm:$0xff] %v4553
  %5003 = vst [vmem:[%s7 + $0xdd0] sm:$0xff] %v4554
  %5004 = vst [vmem:[%s7 + $0xdd8] sm:$0xff] %v4555
  %5005 = vst [vmem:[%s7 + $0xde0] sm:$0xff] %v4556
  %5006 = vst [vmem:[%s7 + $0xde8] sm:$0xff] %v4557
  %5007 = vst [vmem:[%s7 + $0xdf0] sm:$0xff] %v4558
  %5008 = vst.msk [vmem:[%s7 + $0xdf8] sm:$0xff] %vm4566, %v4559
  // Predicated region
  $region30: #{tpu_custom_call.1} parent=0 // pred_check
    _
  $region31: #{tpu_custom_call.1} parent=0 // pred_check_branch
    %5010 = sbr.rel (0) target = $region33
  $region32: #{tpu_custom_call.1} parent=0 // pred_region
    _
  $region33: #{tpu_custom_call.1} parent=0 // pred_fallthru
    _
  // Predicated region
  $region34: #{tpu_custom_call.1} parent=0 // pred_check
    _
  $region35: #{tpu_custom_call.1} parent=0 // pred_check_branch
    %5012 = sbr.rel (0) target = $region37
  $region36: #{tpu_custom_call.1} parent=0 // pred_region
    _
  $region37: #{tpu_custom_call.1} parent=0 // pred_fallthru
    _

</llo_original>
